<compile_context>
chip_gen: v7x
topology: tpu7x:2x2x1
jax: 0.10.0
libtpu: 0.0.40
codegen_flags: <defaults>
</compile_context>

<pallas_src>
import jax
import jax.numpy as jnp
from jax import lax
from jax.experimental import pallas as pl
from jax.experimental.pallas import tpu as pltpu

EPS = 1e-5


def _pick_row_tile(H, W, max_rows):
    """Largest divisor TH of H such that TH*W <= max_rows (at least 1)."""
    best = 1
    for d in range(1, H + 1):
        if H % d == 0 and d * W <= max_rows:
            best = d
    return best


# ---------------- ConvTranspose2d(k=2, s=2) as a tiled matmul kernel ----------------
def _upconv_kernel(x_ref, w_ref, b_ref, o_ref):
    # x_ref: (1, TH, W, Cin)    input row tile (NHWC)
    # w_ref: (Cin, 4*Cup)       columns ordered dy*(2*Cup) + dx*Cup + oc
    # b_ref: (1, 4*Cup)
    # o_ref: (TH, 2, W, 2*Cup)  packed as (low-res row, dy, low-res col, dx*Cup+oc)
    TH, W, Cin = x_ref.shape[1], x_ref.shape[2], x_ref.shape[3]
    C2 = o_ref.shape[3]                                      # 2 * Cup
    x2d = x_ref[0].reshape(TH * W, Cin)
    y = jnp.dot(x2d, w_ref[...], preferred_element_type=jnp.float32) + b_ref[...]
    o_ref[:, 0, :, :] = y[:, :C2].reshape(TH, W, C2).astype(o_ref.dtype)
    o_ref[:, 1, :, :] = y[:, C2:].reshape(TH, W, C2).astype(o_ref.dtype)


def conv_transpose_2x2_s2(x_nhwc, w, b, *, out_dtype=None, max_rows=512):
    """w: (Cin, Cup, 2, 2) [PyTorch ConvTranspose2d layout], b: (Cup,).
    Returns (N, 2H, 2W, Cup) NHWC; the interleave comes from the output layout + a free reshape."""
    N, H, W, Cin = map(int, x_nhwc.shape)
    Cup = int(w.shape[1])
    dt = x_nhwc.dtype
    out_dtype = out_dtype or dt
    TH = _pick_row_tile(H, W, max_rows)
    RT = H // TH

    # column index = dy*(2*Cup) + dx*Cup + oc
    w_flat = jnp.transpose(w, (0, 2, 3, 1)).reshape(Cin, 4 * Cup).astype(dt)
    b_flat = jnp.tile(b, 4).reshape(1, 4 * Cup).astype(jnp.float32)

    flops = 2 * N * H * W * Cin * 4 * Cup
    bytes_acc = (N * H * W * Cin * x_nhwc.dtype.itemsize
                 + Cin * 4 * Cup * jnp.dtype(dt).itemsize + 4 * 4 * Cup
                 + N * H * W * 4 * Cup * jnp.dtype(out_dtype).itemsize)

    out = pl.pallas_call(
        _upconv_kernel,
        out_shape=jax.ShapeDtypeStruct((N * H, 2, W, 2 * Cup), out_dtype),
        grid=(N, RT),
        in_specs=[
            pl.BlockSpec((1, TH, W, Cin), lambda n, r: (n, r, 0, 0)),
            pl.BlockSpec((Cin, 4 * Cup), lambda n, r: (0, 0)),
            pl.BlockSpec((1, 4 * Cup), lambda n, r: (0, 0)),
        ],
        out_specs=pl.BlockSpec((TH, 2, W, 2 * Cup),
                               lambda n, r: (n * RT + r, 0, 0, 0)),
        compiler_params=pltpu.CompilerParams(
            dimension_semantics=("parallel", "parallel"),
            vmem_limit_bytes=32 * 1024 * 1024),
        cost_estimate=pl.CostEstimate(flops=flops, transcendentals=0,
                                      bytes_accessed=int(bytes_acc)),
    )(x_nhwc, w_flat, b_flat)
    # (N*H, 2, W, 2*Cup) -> (N, 2H, 2W, Cup): pure row-major merge/split, no data movement.
    return out.reshape(N, 2 * H, 2 * W, Cup)


# -------- Fused [concat] + Conv2d(3x3, s=1, SAME) + folded BatchNorm + ReLU --------
def _make_conv3x3_kernel(n_inputs):
    def kernel(*args):
        in_refs = args[:n_inputs]
        w_ref, s_ref, b_ref, o_ref, pad_ref, col_ref = args[n_inputs:]
        TH, W, Cout = o_ref.shape[1], o_ref.shape[2], o_ref.shape[3]
        C = pad_ref.shape[2]
        r = pl.program_id(1)
        row0 = r * TH

        # Zero-padded, channel-concatenated input window, built only in VMEM
        # (fuses torch.cat and the SAME padding: no extra HBM passes).
        pad_ref[...] = jnp.zeros_like(pad_ref)

        def fill(dst_row, src_row, nrows):
            off = 0
            for ref in in_refs:
                c = ref.shape[3]
                pad_ref[dst_row:dst_row + nrows, 1:W + 1, off:off + c] = (
                    ref[0, pl.ds(src_row, nrows), :, :].astype(pad_ref.dtype))
                off += c

        fill(1, row0, TH)                         # tile body rows

        @pl.when(r > 0)
        def _():                                  # top halo row
            fill(0, row0 - 1, 1)

        @pl.when(r < pl.num_programs(1) - 1)
        def _():                                  # bottom halo row
            fill(TH + 1, row0 + TH, 1)

        # im2col patch matrix -> a single K = 9*C MXU matmul.
        xpad = pad_ref[...]
        for ky in range(3):
            for kx in range(3):
                t = ky * 3 + kx
                col_ref[:, t * C:(t + 1) * C] = (
                    xpad[ky:ky + TH, kx:kx + W, :].reshape(TH * W, C))

        acc = jnp.dot(col_ref[...], w_ref[...],
                      preferred_element_type=jnp.float32)
        y = jnp.maximum(acc * s_ref[...] + b_ref[...], 0.0)   # folded BN + ReLU (f32)
        o_ref[...] = y.reshape(1, TH, W, Cout).astype(o_ref.dtype)
    return kernel


def conv3x3_bn_relu(inputs, w_hwio, scale, bias, *, out_dtype=None, max_rows=256):
    """inputs: list of NHWC arrays sharing (N,H,W); channel-concat is fused into the kernel."""
    N, H, W = map(int, inputs[0].shape[:3])
    cs = [int(x.shape[3]) for x in inputs]
    C = sum(cs)
    Cout = int(w_hwio.shape[-1])
    dt = inputs[0].dtype
    out_dtype = out_dtype or dt
    TH = _pick_row_tile(H, W, max_rows)
    RT = H // TH

    w2d = w_hwio.astype(dt).reshape(9 * C, Cout)        # rows ordered (ky, kx, c)
    s2 = scale.reshape(1, Cout).astype(jnp.float32)
    b2 = bias.reshape(1, Cout).astype(jnp.float32)

    in_specs = [pl.BlockSpec((1, H, W, c), lambda n, r: (n, 0, 0, 0)) for c in cs]
    in_specs += [
        pl.BlockSpec((9 * C, Cout), lambda n, r: (0, 0)),
        pl.BlockSpec((1, Cout), lambda n, r: (0, 0)),
        pl.BlockSpec((1, Cout), lambda n, r: (0, 0)),
    ]

    flops = 2 * N * H * W * 9 * C * Cout
    bytes_acc = (sum(int(x.size) * x.dtype.itemsize for x in inputs)
                 + 9 * C * Cout * jnp.dtype(dt).itemsize + 8 * Cout
                 + N * H * W * Cout * jnp.dtype(out_dtype).itemsize)

    return pl.pallas_call(
        _make_conv3x3_kernel(len(inputs)),
        out_shape=jax.ShapeDtypeStruct((N, H, W, Cout), out_dtype),
        grid=(N, RT),
        in_specs=in_specs,
        out_specs=pl.BlockSpec((1, TH, W, Cout), lambda n, r: (n, r, 0, 0)),
        scratch_shapes=[
            pltpu.VMEM((TH + 2, W + 2, C), dt),          # padded concat window
            pltpu.VMEM((TH * W, 9 * C), dt),             # im2col patch matrix
        ],
        compiler_params=pltpu.CompilerParams(
            dimension_semantics=("parallel", "parallel"),
            vmem_limit_bytes=32 * 1024 * 1024),
        cost_estimate=pl.CostEstimate(flops=flops, transcendentals=0,
                                      bytes_accessed=int(bytes_acc)),
    )(*inputs, w2d, s2, b2)


# ---------------- Module wrapper ----------------
def fold_bn(conv_bias, bn):
    # BatchNorm applied in eval mode (running stats) folded into a per-channel affine.
    # TODO(synk): training-mode batch statistics are not reproduced.
    gamma, beta, mean, var = bn
    s = gamma / jnp.sqrt(var + EPS)
    b = (conv_bias - mean) * s + beta
    return s, b


def upsampling_forward(params, x1_nchw, x2_nchw):
    x1 = jnp.transpose(x1_nchw, (0, 2, 3, 1))   # NCHW -> NHWC (module boundary only)
    x2 = jnp.transpose(x2_nchw, (0, 2, 3, 1))
    up = conv_transpose_2x2_s2(x1, params['up_w'], params['up_b'])
    s1, b1 = fold_bn(params['c1_b'], params['bn1'])
    y = conv3x3_bn_relu([up, x2], params['c1_w'], s1, b1)   # concat fused in-kernel
    s2, b2 = fold_bn(params['c2_b'], params['bn2'])
    y = conv3x3_bn_relu([y], params['c2_w'], s2, b2)
    return jnp.transpose(y, (0, 3, 1, 2))       # back to NCHW


# ---------------- Pure-JAX reference ----------------
def ref_forward(params, x1_nchw, x2_nchw):
    x1 = jnp.transpose(x1_nchw, (0, 2, 3, 1))
    x2 = jnp.transpose(x2_nchw, (0, 2, 3, 1))
    N, H, W, Cin = x1.shape
    Cup = Cin // 2
    up = jnp.einsum('nhwc,codk->nhwdko', x1, params['up_w']) + params['up_b']
    up = jnp.transpose(up, (0, 1, 3, 2, 4, 5)).reshape(N, 2 * H, 2 * W, Cup)
    cat = jnp.concatenate([up, x2], axis=-1)

    def conv_bn_relu(x, w, cb, bn):
        g, be, m, v = bn
        y = lax.conv_general_dilated(x, w, (1, 1), 'SAME',
                                     dimension_numbers=('NHWC', 'HWIO', 'NHWC'))
        y = y + cb
        y = g * (y - m) / jnp.sqrt(v + EPS) + be
        return jnp.maximum(y, 0.0)

    y = conv_bn_relu(cat, params['c1_w'], params['c1_b'], params['bn1'])
    y = conv_bn_relu(y, params['c2_w'], params['c2_b'], params['bn2'])
    return jnp.transpose(y, (0, 3, 1, 2))


# ---------------- Deterministic parameter init ----------------
def init_params(key, in_ch, out_ch):
    cup = in_ch // 2
    k = jax.random.split(key, 14)
    f32 = jnp.float32
    p = {
        'up_w': 0.1 * jax.random.normal(k[0], (in_ch, cup, 2, 2), f32),
        'up_b': 0.1 * jax.random.normal(k[1], (cup,), f32),
        'c1_w': 0.1 * jax.random.normal(k[2], (3, 3, in_ch, out_ch), f32),
        'c1_b': 0.1 * jax.random.normal(k[3], (out_ch,), f32),
        'bn1': (1.0 + 0.1 * jax.random.normal(k[4], (out_ch,), f32),
                0.1 * jax.random.normal(k[5], (out_ch,), f32),
                0.1 * jax.random.normal(k[6], (out_ch,), f32),
                1.0 + 0.1 * jnp.abs(jax.random.normal(k[7], (out_ch,), f32))),
        'c2_w': 0.1 * jax.random.normal(k[8], (3, 3, out_ch, out_ch), f32),
        'c2_b': 0.1 * jax.random.normal(k[9], (out_ch,), f32),
        'bn2': (1.0 + 0.1 * jax.random.normal(k[10], (out_ch,), f32),
                0.1 * jax.random.normal(k[11], (out_ch,), f32),
                0.1 * jax.random.normal(k[12], (out_ch,), f32),
                1.0 + 0.1 * jnp.abs(jax.random.normal(k[13], (out_ch,), f32))),
    }
    return p


if __name__ == "__main__":
    IN_CH, OUT_CH = 8, 4
    N, H, W = 2, 16, 16
    key = jax.random.PRNGKey(0)
    kp, kx1, kx2 = jax.random.split(key, 3)
    params = init_params(kp, IN_CH, OUT_CH)
    x1 = jax.random.normal(kx1, (N, IN_CH, H, W), jnp.float32)           # NCHW
    x2 = jax.random.normal(kx2, (N, IN_CH // 2, 2 * H, 2 * W), jnp.float32)

    fwd = jax.jit(upsampling_forward)
    out = jax.block_until_ready(fwd(params, x1, x2))
    ref = jax.block_until_ready(ref_forward(params, x1, x2))

    assert out.shape == (N, OUT_CH, 2 * H, 2 * W), out.shape
    err = float(jnp.max(jnp.abs(out - ref)))
    assert jnp.allclose(out, ref, atol=2e-3, rtol=2e-3), err
    print("KERNEL_OK")
</pallas_src>

<mosaic_0001>
module attributes {stable_mosaic.version = 11 : i64} {
  func.func @_upconv_kernel(%arg0: i32, %arg1: i32, %arg2: memref<1x16x16x8xf32, #tpu.memory_space<vmem>>, %arg3: memref<8x16xf32, #tpu.memory_space<vmem>>, %arg4: memref<1x16xf32, #tpu.memory_space<vmem>>, %arg5: memref<16x2x16x8xf32, #tpu.memory_space<vmem>>) attributes {dimension_semantics = [#tpu.dimension_semantics<parallel>, #tpu.dimension_semantics<parallel>], iteration_bounds = array<i64: 2, 1>, scalar_prefetch = 0 : i64, scratch_operands = 0 : i64, tpu.core_type = #tpu.core_type<tc>, window_params = [{transform_indices = @transform_0, window_bounds = array<i64: 1, 16, 16, 8>}, {pipeline_mode = #tpu.pipeline_mode<synchronous>, transform_indices = @transform_1, window_bounds = array<i64: 8, 16>}, {pipeline_mode = #tpu.pipeline_mode<synchronous>, transform_indices = @transform_2, window_bounds = array<i64: 1, 16>}, {transform_indices = @transform_3, window_bounds = array<i64: 16, 2, 16, 8>}]} {
    %c0 = arith.constant 0 : index
    %c0_0 = arith.constant 0 : index
    %c0_1 = arith.constant 0 : index
    %c0_2 = arith.constant 0 : index
    %0 = vector.load %arg2[%c0, %c0_0, %c0_1, %c0_2] : memref<1x16x16x8xf32, #tpu.memory_space<vmem>>, vector<1x16x16x8xf32>
    %1 = vector.shape_cast %0 : vector<1x16x16x8xf32> to vector<16x16x8xf32>
    %2 = vector.shape_cast %1 : vector<16x16x8xf32> to vector<256x8xf32>
    %c0_3 = arith.constant 0 : index
    %c0_4 = arith.constant 0 : index
    %3 = vector.load %arg3[%c0_3, %c0_4] : memref<8x16xf32, #tpu.memory_space<vmem>>, vector<8x16xf32>
    %cst = arith.constant dense<0.000000e+00> : vector<256x16xf32>
    %4 = tpu.matmul %2, %3, %cst {dimension_numbers = #tpu.dot_dimension_numbers<[1], [0], [0], [1], [0, 0, 1, 1], [], []>} : vector<256x8xf32>, vector<8x16xf32>, vector<256x16xf32> -> vector<256x16xf32>
    %c0_5 = arith.constant 0 : index
    %c0_6 = arith.constant 0 : index
    %5 = vector.load %arg4[%c0_5, %c0_6] : memref<1x16xf32, #tpu.memory_space<vmem>>, vector<1x16xf32>
    %6 = vector.broadcast %5 : vector<1x16xf32> to vector<256x16xf32>
    %7 = arith.addf %4, %6 : vector<256x16xf32>
    %8 = vector.extract_strided_slice %7 {offsets = [0, 0], sizes = [256, 8], strides = [1, 1]} : vector<256x16xf32> to vector<256x8xf32>
    %9 = vector.shape_cast %8 : vector<256x8xf32> to vector<16x16x8xf32>
    %c0_7 = arith.constant 0 : index
    %c0_8 = arith.constant 0 : index
    %c0_9 = arith.constant 0 : index
    %c0_10 = arith.constant 0 : index
    %10 = vector.load %arg5[%c0_7, %c0_8, %c0_9, %c0_10] : memref<16x2x16x8xf32, #tpu.memory_space<vmem>>, vector<16x1x16x8xf32>
    %11 = vector.shape_cast %10 : vector<16x1x16x8xf32> to vector<16x16x8xf32>
    %12 = vector.shape_cast %9 : vector<16x16x8xf32> to vector<16x1x16x8xf32>
    tpu.vector_store %arg5[%c0_7, %c0_8, %c0_9, %c0_10], %12 {strides = array<i32>} : memref<16x2x16x8xf32, #tpu.memory_space<vmem>>, vector<16x1x16x8xf32>,
    %13 = vector.extract_strided_slice %7 {offsets = [0, 8], sizes = [256, 8], strides = [1, 1]} : vector<256x16xf32> to vector<256x8xf32>
    %14 = vector.shape_cast %13 : vector<256x8xf32> to vector<16x16x8xf32>
    %c0_11 = arith.constant 0 : index
    %c1 = arith.constant 1 : index
    %c0_12 = arith.constant 0 : index
    %c0_13 = arith.constant 0 : index
    %15 = vector.load %arg5[%c0_11, %c1, %c0_12, %c0_13] : memref<16x2x16x8xf32, #tpu.memory_space<vmem>>, vector<16x1x16x8xf32>
    %16 = vector.shape_cast %15 : vector<16x1x16x8xf32> to vector<16x16x8xf32>
    %17 = vector.shape_cast %14 : vector<16x16x8xf32> to vector<16x1x16x8xf32>
    tpu.vector_store %arg5[%c0_11, %c1, %c0_12, %c0_13], %17 {strides = array<i32>} : memref<16x2x16x8xf32, #tpu.memory_space<vmem>>, vector<16x1x16x8xf32>,
    return
  }
  func.func @transform_0(%arg0: i32, %arg1: i32) -> (i32, i32, i32, i32) {
    %c0_i32 = arith.constant 0 : i32
    %c0_i32_0 = arith.constant 0 : i32
    %c0_i32_1 = arith.constant 0 : i32
    return %arg0, %arg1, %c0_i32, %c0_i32_0 : i32, i32, i32, i32
  }
  func.func @transform_1(%arg0: i32, %arg1: i32) -> (i32, i32) {
    %c0_i32 = arith.constant 0 : i32
    %c0_i32_0 = arith.constant 0 : i32
    %c0_i32_1 = arith.constant 0 : i32
    return %c0_i32, %c0_i32_0 : i32, i32
  }
  func.func @transform_2(%arg0: i32, %arg1: i32) -> (i32, i32) {
    %c0_i32 = arith.constant 0 : i32
    %c0_i32_0 = arith.constant 0 : i32
    %c0_i32_1 = arith.constant 0 : i32
    return %c0_i32, %c0_i32_0 : i32, i32
  }
  func.func @transform_3(%arg0: i32, %arg1: i32) -> (i32, i32, i32, i32) {
    %c1_i32 = arith.constant 1 : i32
    %0 = arith.muli %arg0, %c1_i32 : i32
    %1 = arith.addi %0, %arg1 : i32
    %c0_i32 = arith.constant 0 : i32
    %c0_i32_0 = arith.constant 0 : i32
    %c0_i32_1 = arith.constant 0 : i32
    %c0_i32_2 = arith.constant 0 : i32
    return %1, %c0_i32, %c0_i32_0, %c0_i32_1 : i32, i32, i32, i32
  }
}

module attributes {stable_mosaic.version = 11 : i64} {
  func.func @kernel(%arg0: i32, %arg1: i32, %arg2: memref<1x32x32x4xf32, #tpu.memory_space<vmem>>, %arg3: memref<1x32x32x4xf32, #tpu.memory_space<vmem>>, %arg4: memref<72x4xf32, #tpu.memory_space<vmem>>, %arg5: memref<1x4xf32, #tpu.memory_space<vmem>>, %arg6: memref<1x4xf32, #tpu.memory_space<vmem>>, %arg7: memref<1x8x32x4xf32, #tpu.memory_space<vmem>>, %arg8: memref<10x34x8xf32, #tpu.memory_space<vmem>>, %arg9: memref<256x72xf32, #tpu.memory_space<vmem>>) attributes {dimension_semantics = [#tpu.dimension_semantics<parallel>, #tpu.dimension_semantics<parallel>], iteration_bounds = array<i64: 2, 4>, scalar_prefetch = 0 : i64, scratch_operands = 2 : i64, tpu.core_type = #tpu.core_type<tc>, window_params = [{transform_indices = @transform_0, window_bounds = array<i64: 1, 32, 32, 4>}, {transform_indices = @transform_1, window_bounds = array<i64: 1, 32, 32, 4>}, {pipeline_mode = #tpu.pipeline_mode<synchronous>, transform_indices = @transform_2, window_bounds = array<i64: 72, 4>}, {pipeline_mode = #tpu.pipeline_mode<synchronous>, transform_indices = @transform_3, window_bounds = array<i64: 1, 4>}, {pipeline_mode = #tpu.pipeline_mode<synchronous>, transform_indices = @transform_4, window_bounds = array<i64: 1, 4>}, {transform_indices = @transform_5, window_bounds = array<i64: 1, 8, 32, 4>}]} {
    %c8_i32 = arith.constant 8 : i32
    %0 = arith.muli %arg1, %c8_i32 : i32
    %cst = arith.constant 0.000000e+00 : f32
    %1 = vector.broadcast %cst : f32 to vector<10x34x8xf32>
    %c0 = arith.constant 0 : index
    %c0_0 = arith.constant 0 : index
    %c0_1 = arith.constant 0 : index
    %2 = vector.load %arg8[%c0, %c0_0, %c0_1] : memref<10x34x8xf32, #tpu.memory_space<vmem>>, vector<10x34x8xf32>
    tpu.vector_store %arg8[%c0, %c0_0, %c0_1], %1 {strides = array<i32>} : memref<10x34x8xf32, #tpu.memory_space<vmem>>, vector<10x34x8xf32>,
    %c0_2 = arith.constant 0 : index
    %3 = arith.index_cast %0 : i32 to index
    %c0_3 = arith.constant 0 : index
    %c0_4 = arith.constant 0 : index
    %4 = vector.load %arg2[%c0_2, %3, %c0_3, %c0_4] : memref<1x32x32x4xf32, #tpu.memory_space<vmem>>, vector<1x8x32x4xf32>
    %5 = vector.shape_cast %4 : vector<1x8x32x4xf32> to vector<8x32x4xf32>
    %c1 = arith.constant 1 : index
    %c1_5 = arith.constant 1 : index
    %c0_6 = arith.constant 0 : index
    %6 = vector.load %arg8[%c1, %c1_5, %c0_6] : memref<10x34x8xf32, #tpu.memory_space<vmem>>, vector<8x32x4xf32>
    tpu.vector_store %arg8[%c1, %c1_5, %c0_6], %5 {strides = array<i32>} : memref<10x34x8xf32, #tpu.memory_space<vmem>>, vector<8x32x4xf32>,
    %c0_7 = arith.constant 0 : index
    %7 = arith.index_cast %0 : i32 to index
    %c0_8 = arith.constant 0 : index
    %c0_9 = arith.constant 0 : index
    %8 = vector.load %arg3[%c0_7, %7, %c0_8, %c0_9] : memref<1x32x32x4xf32, #tpu.memory_space<vmem>>, vector<1x8x32x4xf32>
    %9 = vector.shape_cast %8 : vector<1x8x32x4xf32> to vector<8x32x4xf32>
    %c1_10 = arith.constant 1 : index
    %c1_11 = arith.constant 1 : index
    %c4 = arith.constant 4 : index
    %10 = vector.load %arg8[%c1_10, %c1_11, %c4] : memref<10x34x8xf32, #tpu.memory_space<vmem>>, vector<8x32x4xf32>
    tpu.vector_store %arg8[%c1_10, %c1_11, %c4], %9 {strides = array<i32>} : memref<10x34x8xf32, #tpu.memory_space<vmem>>, vector<8x32x4xf32>,
    %c0_i32 = arith.constant 0 : i32
    %11 = arith.cmpi sgt, %arg1, %c0_i32 : i32
    %12 = arith.extui %11 : i1 to i32
    %c0_i32_12 = arith.constant 0 : i32
    %13 = arith.cmpi ne, %12, %c0_i32_12 : i32
    scf.if %13 {
      %c1_i32 = arith.constant 1 : i32
      %58 = arith.subi %0, %c1_i32 : i32
      %c0_41 = arith.constant 0 : index
      %59 = arith.index_cast %58 : i32 to index
      %c0_42 = arith.constant 0 : index
      %c0_43 = arith.constant 0 : index
      %60 = vector.load %arg2[%c0_41, %59, %c0_42, %c0_43] : memref<1x32x32x4xf32, #tpu.memory_space<vmem>>, vector<1x1x32x4xf32>
      %61 = vector.shape_cast %60 : vector<1x1x32x4xf32> to vector<1x32x4xf32>
      %c0_44 = arith.constant 0 : index
      %c1_45 = arith.constant 1 : index
      %c0_46 = arith.constant 0 : index
      %62 = vector.load %arg8[%c0_44, %c1_45, %c0_46] : memref<10x34x8xf32, #tpu.memory_space<vmem>>, vector<1x32x4xf32>
      tpu.vector_store %arg8[%c0_44, %c1_45, %c0_46], %61 {strides = array<i32>} : memref<10x34x8xf32, #tpu.memory_space<vmem>>, vector<1x32x4xf32>,
      %c0_47 = arith.constant 0 : index
      %63 = arith.index_cast %58 : i32 to index
      %c0_48 = arith.constant 0 : index
      %c0_49 = arith.constant 0 : index
      %64 = vector.load %arg3[%c0_47, %63, %c0_48, %c0_49] : memref<1x32x32x4xf32, #tpu.memory_space<vmem>>, vector<1x1x32x4xf32>
      %65 = vector.shape_cast %64 : vector<1x1x32x4xf32> to vector<1x32x4xf32>
      %c0_50 = arith.constant 0 : index
      %c1_51 = arith.constant 1 : index
      %c4_52 = arith.constant 4 : index
      %66 = vector.load %arg8[%c0_50, %c1_51, %c4_52] : memref<10x34x8xf32, #tpu.memory_space<vmem>>, vector<1x32x4xf32>
      tpu.vector_store %arg8[%c0_50, %c1_51, %c4_52], %65 {strides = array<i32>} : memref<10x34x8xf32, #tpu.memory_space<vmem>>, vector<1x32x4xf32>,
    } else {
    }
    %c3_i32 = arith.constant 3 : i32
    %14 = arith.cmpi slt, %arg1, %c3_i32 : i32
    %15 = arith.extui %14 : i1 to i32
    %c0_i32_13 = arith.constant 0 : i32
    %16 = arith.cmpi ne, %15, %c0_i32_13 : i32
    scf.if %16 {
      %c8_i32_41 = arith.constant 8 : i32
      %58 = arith.addi %0, %c8_i32_41 : i32
      %c0_42 = arith.constant 0 : index
      %59 = arith.index_cast %58 : i32 to index
      %c0_43 = arith.constant 0 : index
      %c0_44 = arith.constant 0 : index
      %60 = vector.load %arg2[%c0_42, %59, %c0_43, %c0_44] : memref<1x32x32x4xf32, #tpu.memory_space<vmem>>, vector<1x1x32x4xf32>
      %61 = vector.shape_cast %60 : vector<1x1x32x4xf32> to vector<1x32x4xf32>
      %c9 = arith.constant 9 : index
      %c1_45 = arith.constant 1 : index
      %c0_46 = arith.constant 0 : index
      %62 = vector.load %arg8[%c9, %c1_45, %c0_46] : memref<10x34x8xf32, #tpu.memory_space<vmem>>, vector<1x32x4xf32>
      tpu.vector_store %arg8[%c9, %c1_45, %c0_46], %61 {strides = array<i32>} : memref<10x34x8xf32, #tpu.memory_space<vmem>>, vector<1x32x4xf32>,
      %c0_47 = arith.constant 0 : index
      %63 = arith.index_cast %58 : i32 to index
      %c0_48 = arith.constant 0 : index
      %c0_49 = arith.constant 0 : index
      %64 = vector.load %arg3[%c0_47, %63, %c0_48, %c0_49] : memref<1x32x32x4xf32, #tpu.memory_space<vmem>>, vector<1x1x32x4xf32>
      %65 = vector.shape_cast %64 : vector<1x1x32x4xf32> to vector<1x32x4xf32>
      %c9_50 = arith.constant 9 : index
      %c1_51 = arith.constant 1 : index
      %c4_52 = arith.constant 4 : index
      %66 = vector.load %arg8[%c9_50, %c1_51, %c4_52] : memref<10x34x8xf32, #tpu.memory_space<vmem>>, vector<1x32x4xf32>
      tpu.vector_store %arg8[%c9_50, %c1_51, %c4_52], %65 {strides = array<i32>} : memref<10x34x8xf32, #tpu.memory_space<vmem>>, vector<1x32x4xf32>,
    } else {
    }
    %c0_14 = arith.constant 0 : index
    %c0_15 = arith.constant 0 : index
    %c0_16 = arith.constant 0 : index
    %17 = vector.load %arg8[%c0_14, %c0_15, %c0_16] : memref<10x34x8xf32, #tpu.memory_space<vmem>>, vector<10x34x8xf32>
    %18 = vector.extract_strided_slice %17 {offsets = [0, 0, 0], sizes = [8, 32, 8], strides = [1, 1, 1]} : vector<10x34x8xf32> to vector<8x32x8xf32>
    %19 = vector.shape_cast %18 : vector<8x32x8xf32> to vector<256x8xf32>
    %c0_17 = arith.constant 0 : index
    %c0_18 = arith.constant 0 : index
    %20 = vector.load %arg9[%c0_17, %c0_18] : memref<256x72xf32, #tpu.memory_space<vmem>>, vector<256x8xf32>
    tpu.vector_store %arg9[%c0_17, %c0_18], %19 {strides = array<i32>} : memref<256x72xf32, #tpu.memory_space<vmem>>, vector<256x8xf32>,
    %21 = vector.extract_strided_slice %17 {offsets = [0, 1, 0], sizes = [8, 32, 8], strides = [1, 1, 1]} : vector<10x34x8xf32> to vector<8x32x8xf32>
    %22 = vector.shape_cast %21 : vector<8x32x8xf32> to vector<256x8xf32>
    %c0_19 = arith.constant 0 : index
    %c8 = arith.constant 8 : index
    %23 = vector.load %arg9[%c0_19, %c8] : memref<256x72xf32, #tpu.memory_space<vmem>>, vector<256x8xf32>
    tpu.vector_store %arg9[%c0_19, %c8], %22 {strides = array<i32>} : memref<256x72xf32, #tpu.memory_space<vmem>>, vector<256x8xf32>,
    %24 = vector.extract_strided_slice %17 {offsets = [0, 2, 0], sizes = [8, 32, 8], strides = [1, 1, 1]} : vector<10x34x8xf32> to vector<8x32x8xf32>
    %25 = vector.shape_cast %24 : vector<8x32x8xf32> to vector<256x8xf32>
    %c0_20 = arith.constant 0 : index
    %c16 = arith.constant 16 : index
    %26 = vector.load %arg9[%c0_20, %c16] : memref<256x72xf32, #tpu.memory_space<vmem>>, vector<256x8xf32>
    tpu.vector_store %arg9[%c0_20, %c16], %25 {strides = array<i32>} : memref<256x72xf32, #tpu.memory_space<vmem>>, vector<256x8xf32>,
    %27 = vector.extract_strided_slice %17 {offsets = [1, 0, 0], sizes = [8, 32, 8], strides = [1, 1, 1]} : vector<10x34x8xf32> to vector<8x32x8xf32>
    %28 = vector.shape_cast %27 : vector<8x32x8xf32> to vector<256x8xf32>
    %c0_21 = arith.constant 0 : index
    %c24 = arith.constant 24 : index
    %29 = vector.load %arg9[%c0_21, %c24] : memref<256x72xf32, #tpu.memory_space<vmem>>, vector<256x8xf32>
    tpu.vector_store %arg9[%c0_21, %c24], %28 {strides = array<i32>} : memref<256x72xf32, #tpu.memory_space<vmem>>, vector<256x8xf32>,
    %30 = vector.extract_strided_slice %17 {offsets = [1, 1, 0], sizes = [8, 32, 8], strides = [1, 1, 1]} : vector<10x34x8xf32> to vector<8x32x8xf32>
    %31 = vector.shape_cast %30 : vector<8x32x8xf32> to vector<256x8xf32>
    %c0_22 = arith.constant 0 : index
    %c32 = arith.constant 32 : index
    %32 = vector.load %arg9[%c0_22, %c32] : memref<256x72xf32, #tpu.memory_space<vmem>>, vector<256x8xf32>
    tpu.vector_store %arg9[%c0_22, %c32], %31 {strides = array<i32>} : memref<256x72xf32, #tpu.memory_space<vmem>>, vector<256x8xf32>,
    %33 = vector.extract_strided_slice %17 {offsets = [1, 2, 0], sizes = [8, 32, 8], strides = [1, 1, 1]} : vector<10x34x8xf32> to vector<8x32x8xf32>
    %34 = vector.shape_cast %33 : vector<8x32x8xf32> to vector<256x8xf32>
    %c0_23 = arith.constant 0 : index
    %c40 = arith.constant 40 : index
    %35 = vector.load %arg9[%c0_23, %c40] : memref<256x72xf32, #tpu.memory_space<vmem>>, vector<256x8xf32>
    tpu.vector_store %arg9[%c0_23, %c40], %34 {strides = array<i32>} : memref<256x72xf32, #tpu.memory_space<vmem>>, vector<256x8xf32>,
    %36 = vector.extract_strided_slice %17 {offsets = [2, 0, 0], sizes = [8, 32, 8], strides = [1, 1, 1]} : vector<10x34x8xf32> to vector<8x32x8xf32>
    %37 = vector.shape_cast %36 : vector<8x32x8xf32> to vector<256x8xf32>
    %c0_24 = arith.constant 0 : index
    %c48 = arith.constant 48 : index
    %38 = vector.load %arg9[%c0_24, %c48] : memref<256x72xf32, #tpu.memory_space<vmem>>, vector<256x8xf32>
    tpu.vector_store %arg9[%c0_24, %c48], %37 {strides = array<i32>} : memref<256x72xf32, #tpu.memory_space<vmem>>, vector<256x8xf32>,
    %39 = vector.extract_strided_slice %17 {offsets = [2, 1, 0], sizes = [8, 32, 8], strides = [1, 1, 1]} : vector<10x34x8xf32> to vector<8x32x8xf32>
    %40 = vector.shape_cast %39 : vector<8x32x8xf32> to vector<256x8xf32>
    %c0_25 = arith.constant 0 : index
    %c56 = arith.constant 56 : index
    %41 = vector.load %arg9[%c0_25, %c56] : memref<256x72xf32, #tpu.memory_space<vmem>>, vector<256x8xf32>
    tpu.vector_store %arg9[%c0_25, %c56], %40 {strides = array<i32>} : memref<256x72xf32, #tpu.memory_space<vmem>>, vector<256x8xf32>,
    %42 = vector.extract_strided_slice %17 {offsets = [2, 2, 0], sizes = [8, 32, 8], strides = [1, 1, 1]} : vector<10x34x8xf32> to vector<8x32x8xf32>
    %43 = vector.shape_cast %42 : vector<8x32x8xf32> to vector<256x8xf32>
    %c0_26 = arith.constant 0 : index
    %c64 = arith.constant 64 : index
    %44 = vector.load %arg9[%c0_26, %c64] : memref<256x72xf32, #tpu.memory_space<vmem>>, vector<256x8xf32>
    tpu.vector_store %arg9[%c0_26, %c64], %43 {strides = array<i32>} : memref<256x72xf32, #tpu.memory_space<vmem>>, vector<256x8xf32>,
    %c0_27 = arith.constant 0 : index
    %c0_28 = arith.constant 0 : index
    %45 = vector.load %arg9[%c0_27, %c0_28] : memref<256x72xf32, #tpu.memory_space<vmem>>, vector<256x72xf32>
    %c0_29 = arith.constant 0 : index
    %c0_30 = arith.constant 0 : index
    %46 = vector.load %arg4[%c0_29, %c0_30] : memref<72x4xf32, #tpu.memory_space<vmem>>, vector<72x4xf32>
    %cst_31 = arith.constant dense<0.000000e+00> : vector<256x4xf32>
    %47 = tpu.matmul %45, %46, %cst_31 {dimension_numbers = #tpu.dot_dimension_numbers<[1], [0], [0], [1], [0, 0, 1, 1], [], []>} : vector<256x72xf32>, vector<72x4xf32>, vector<256x4xf32> -> vector<256x4xf32>
    %c0_32 = arith.constant 0 : index
    %c0_33 = arith.constant 0 : index
    %48 = vector.load %arg5[%c0_32, %c0_33] : memref<1x4xf32, #tpu.memory_space<vmem>>, vector<1x4xf32>
    %49 = vector.broadcast %48 : vector<1x4xf32> to vector<256x4xf32>
    %50 = arith.mulf %47, %49 : vector<256x4xf32>
    %c0_34 = arith.constant 0 : index
    %c0_35 = arith.constant 0 : index
    %51 = vector.load %arg6[%c0_34, %c0_35] : memref<1x4xf32, #tpu.memory_space<vmem>>, vector<1x4xf32>
    %52 = vector.broadcast %51 : vector<1x4xf32> to vector<256x4xf32>
    %53 = arith.addf %50, %52 : vector<256x4xf32>
    %cst_36 = arith.constant 0.000000e+00 : f32
    %54 = vector.broadcast %cst_36 : f32 to vector<256x4xf32>
    %55 = arith.maximumf %53, %54 : vector<256x4xf32>
    %56 = vector.shape_cast %55 : vector<256x4xf32> to vector<1x8x32x4xf32>
    %c0_37 = arith.constant 0 : index
    %c0_38 = arith.constant 0 : index
    %c0_39 = arith.constant 0 : index
    %c0_40 = arith.constant 0 : index
    %57 = vector.load %arg7[%c0_37, %c0_38, %c0_39, %c0_40] : memref<1x8x32x4xf32, #tpu.memory_space<vmem>>, vector<1x8x32x4xf32>
    tpu.vector_store %arg7[%c0_37, %c0_38, %c0_39, %c0_40], %56 {strides = array<i32>} : memref<1x8x32x4xf32, #tpu.memory_space<vmem>>, vector<1x8x32x4xf32>,
    return
  }
  func.func @transform_0(%arg0: i32, %arg1: i32) -> (i32, i32, i32, i32) {
    %c0_i32 = arith.constant 0 : i32
    %c0_i32_0 = arith.constant 0 : i32
    %c0_i32_1 = arith.constant 0 : i32
    %c0_i32_2 = arith.constant 0 : i32
    return %arg0, %c0_i32, %c0_i32_0, %c0_i32_1 : i32, i32, i32, i32
  }
  func.func @transform_1(%arg0: i32, %arg1: i32) -> (i32, i32, i32, i32) {
    %c0_i32 = arith.constant 0 : i32
    %c0_i32_0 = arith.constant 0 : i32
    %c0_i32_1 = arith.constant 0 : i32
    %c0_i32_2 = arith.constant 0 : i32
    return %arg0, %c0_i32, %c0_i32_0, %c0_i32_1 : i32, i32, i32, i32
  }
  func.func @transform_2(%arg0: i32, %arg1: i32) -> (i32, i32) {
    %c0_i32 = arith.constant 0 : i32
    %c0_i32_0 = arith.constant 0 : i32
    %c0_i32_1 = arith.constant 0 : i32
    return %c0_i32, %c0_i32_0 : i32, i32
  }
  func.func @transform_3(%arg0: i32, %arg1: i32) -> (i32, i32) {
    %c0_i32 = arith.constant 0 : i32
    %c0_i32_0 = arith.constant 0 : i32
    %c0_i32_1 = arith.constant 0 : i32
    return %c0_i32, %c0_i32_0 : i32, i32
  }
  func.func @transform_4(%arg0: i32, %arg1: i32) -> (i32, i32) {
    %c0_i32 = arith.constant 0 : i32
    %c0_i32_0 = arith.constant 0 : i32
    %c0_i32_1 = arith.constant 0 : i32
    return %c0_i32, %c0_i32_0 : i32, i32
  }
  func.func @transform_5(%arg0: i32, %arg1: i32) -> (i32, i32, i32, i32) {
    %c0_i32 = arith.constant 0 : i32
    %c0_i32_0 = arith.constant 0 : i32
    %c0_i32_1 = arith.constant 0 : i32
    return %arg0, %arg1, %c0_i32, %c0_i32_0 : i32, i32, i32, i32
  }
}

module attributes {stable_mosaic.version = 11 : i64} {
  func.func @kernel(%arg0: i32, %arg1: i32, %arg2: memref<1x32x32x4xf32, #tpu.memory_space<vmem>>, %arg3: memref<36x4xf32, #tpu.memory_space<vmem>>, %arg4: memref<1x4xf32, #tpu.memory_space<vmem>>, %arg5: memref<1x4xf32, #tpu.memory_space<vmem>>, %arg6: memref<1x8x32x4xf32, #tpu.memory_space<vmem>>, %arg7: memref<10x34x4xf32, #tpu.memory_space<vmem>>, %arg8: memref<256x36xf32, #tpu.memory_space<vmem>>) attributes {dimension_semantics = [#tpu.dimension_semantics<parallel>, #tpu.dimension_semantics<parallel>], iteration_bounds = array<i64: 2, 4>, scalar_prefetch = 0 : i64, scratch_operands = 2 : i64, tpu.core_type = #tpu.core_type<tc>, window_params = [{transform_indices = @transform_0, window_bounds = array<i64: 1, 32, 32, 4>}, {pipeline_mode = #tpu.pipeline_mode<synchronous>, transform_indices = @transform_1, window_bounds = array<i64: 36, 4>}, {pipeline_mode = #tpu.pipeline_mode<synchronous>, transform_indices = @transform_2, window_bounds = array<i64: 1, 4>}, {pipeline_mode = #tpu.pipeline_mode<synchronous>, transform_indices = @transform_3, window_bounds = array<i64: 1, 4>}, {transform_indices = @transform_4, window_bounds = array<i64: 1, 8, 32, 4>}]} {
    %c8_i32 = arith.constant 8 : i32
    %0 = arith.muli %arg1, %c8_i32 : i32
    %cst = arith.constant 0.000000e+00 : f32
    %1 = vector.broadcast %cst : f32 to vector<10x34x4xf32>
    %c0 = arith.constant 0 : index
    %c0_0 = arith.constant 0 : index
    %c0_1 = arith.constant 0 : index
    %2 = vector.load %arg7[%c0, %c0_0, %c0_1] : memref<10x34x4xf32, #tpu.memory_space<vmem>>, vector<10x34x4xf32>
    tpu.vector_store %arg7[%c0, %c0_0, %c0_1], %1 {strides = array<i32>} : memref<10x34x4xf32, #tpu.memory_space<vmem>>, vector<10x34x4xf32>,
    %c0_2 = arith.constant 0 : index
    %3 = arith.index_cast %0 : i32 to index
    %c0_3 = arith.constant 0 : index
    %c0_4 = arith.constant 0 : index
    %4 = vector.load %arg2[%c0_2, %3, %c0_3, %c0_4] : memref<1x32x32x4xf32, #tpu.memory_space<vmem>>, vector<1x8x32x4xf32>
    %5 = vector.shape_cast %4 : vector<1x8x32x4xf32> to vector<8x32x4xf32>
    %c1 = arith.constant 1 : index
    %c1_5 = arith.constant 1 : index
    %c0_6 = arith.constant 0 : index
    %6 = vector.load %arg7[%c1, %c1_5, %c0_6] : memref<10x34x4xf32, #tpu.memory_space<vmem>>, vector<8x32x4xf32>
    tpu.vector_store %arg7[%c1, %c1_5, %c0_6], %5 {strides = array<i32>} : memref<10x34x4xf32, #tpu.memory_space<vmem>>, vector<8x32x4xf32>,
    %c0_i32 = arith.constant 0 : i32
    %7 = arith.cmpi sgt, %arg1, %c0_i32 : i32
    %8 = arith.extui %7 : i1 to i32
    %c0_i32_7 = arith.constant 0 : i32
    %9 = arith.cmpi ne, %8, %c0_i32_7 : i32
    scf.if %9 {
      %c1_i32 = arith.constant 1 : i32
      %54 = arith.subi %0, %c1_i32 : i32
      %c0_36 = arith.constant 0 : index
      %55 = arith.index_cast %54 : i32 to index
      %c0_37 = arith.constant 0 : index
      %c0_38 = arith.constant 0 : index
      %56 = vector.load %arg2[%c0_36, %55, %c0_37, %c0_38] : memref<1x32x32x4xf32, #tpu.memory_space<vmem>>, vector<1x1x32x4xf32>
      %57 = vector.shape_cast %56 : vector<1x1x32x4xf32> to vector<1x32x4xf32>
      %c0_39 = arith.constant 0 : index
      %c1_40 = arith.constant 1 : index
      %c0_41 = arith.constant 0 : index
      %58 = vector.load %arg7[%c0_39, %c1_40, %c0_41] : memref<10x34x4xf32, #tpu.memory_space<vmem>>, vector<1x32x4xf32>
      tpu.vector_store %arg7[%c0_39, %c1_40, %c0_41], %57 {strides = array<i32>} : memref<10x34x4xf32, #tpu.memory_space<vmem>>, vector<1x32x4xf32>,
    } else {
    }
    %c3_i32 = arith.constant 3 : i32
    %10 = arith.cmpi slt, %arg1, %c3_i32 : i32
    %11 = arith.extui %10 : i1 to i32
    %c0_i32_8 = arith.constant 0 : i32
    %12 = arith.cmpi ne, %11, %c0_i32_8 : i32
    scf.if %12 {
      %c8_i32_36 = arith.constant 8 : i32
      %54 = arith.addi %0, %c8_i32_36 : i32
      %c0_37 = arith.constant 0 : index
      %55 = arith.index_cast %54 : i32 to index
      %c0_38 = arith.constant 0 : index
      %c0_39 = arith.constant 0 : index
      %56 = vector.load %arg2[%c0_37, %55, %c0_38, %c0_39] : memref<1x32x32x4xf32, #tpu.memory_space<vmem>>, vector<1x1x32x4xf32>
      %57 = vector.shape_cast %56 : vector<1x1x32x4xf32> to vector<1x32x4xf32>
      %c9 = arith.constant 9 : index
      %c1_40 = arith.constant 1 : index
      %c0_41 = arith.constant 0 : index
      %58 = vector.load %arg7[%c9, %c1_40, %c0_41] : memref<10x34x4xf32, #tpu.memory_space<vmem>>, vector<1x32x4xf32>
      tpu.vector_store %arg7[%c9, %c1_40, %c0_41], %57 {strides = array<i32>} : memref<10x34x4xf32, #tpu.memory_space<vmem>>, vector<1x32x4xf32>,
    } else {
    }
    %c0_9 = arith.constant 0 : index
    %c0_10 = arith.constant 0 : index
    %c0_11 = arith.constant 0 : index
    %13 = vector.load %arg7[%c0_9, %c0_10, %c0_11] : memref<10x34x4xf32, #tpu.memory_space<vmem>>, vector<10x34x4xf32>
    %14 = vector.extract_strided_slice %13 {offsets = [0, 0, 0], sizes = [8, 32, 4], strides = [1, 1, 1]} : vector<10x34x4xf32> to vector<8x32x4xf32>
    %15 = vector.shape_cast %14 : vector<8x32x4xf32> to vector<256x4xf32>
    %c0_12 = arith.constant 0 : index
    %c0_13 = arith.constant 0 : index
    %16 = vector.load %arg8[%c0_12, %c0_13] : memref<256x36xf32, #tpu.memory_space<vmem>>, vector<256x4xf32>
    tpu.vector_store %arg8[%c0_12, %c0_13], %15 {strides = array<i32>} : memref<256x36xf32, #tpu.memory_space<vmem>>, vector<256x4xf32>,
    %17 = vector.extract_strided_slice %13 {offsets = [0, 1, 0], sizes = [8, 32, 4], strides = [1, 1, 1]} : vector<10x34x4xf32> to vector<8x32x4xf32>
    %18 = vector.shape_cast %17 : vector<8x32x4xf32> to vector<256x4xf32>
    %c0_14 = arith.constant 0 : index
    %c4 = arith.constant 4 : index
    %19 = vector.load %arg8[%c0_14, %c4] : memref<256x36xf32, #tpu.memory_space<vmem>>, vector<256x4xf32>
    tpu.vector_store %arg8[%c0_14, %c4], %18 {strides = array<i32>} : memref<256x36xf32, #tpu.memory_space<vmem>>, vector<256x4xf32>,
    %20 = vector.extract_strided_slice %13 {offsets = [0, 2, 0], sizes = [8, 32, 4], strides = [1, 1, 1]} : vector<10x34x4xf32> to vector<8x32x4xf32>
    %21 = vector.shape_cast %20 : vector<8x32x4xf32> to vector<256x4xf32>
    %c0_15 = arith.constant 0 : index
    %c8 = arith.constant 8 : index
    %22 = vector.load %arg8[%c0_15, %c8] : memref<256x36xf32, #tpu.memory_space<vmem>>, vector<256x4xf32>
    tpu.vector_store %arg8[%c0_15, %c8], %21 {strides = array<i32>} : memref<256x36xf32, #tpu.memory_space<vmem>>, vector<256x4xf32>,
    %23 = vector.extract_strided_slice %13 {offsets = [1, 0, 0], sizes = [8, 32, 4], strides = [1, 1, 1]} : vector<10x34x4xf32> to vector<8x32x4xf32>
    %24 = vector.shape_cast %23 : vector<8x32x4xf32> to vector<256x4xf32>
    %c0_16 = arith.constant 0 : index
    %c12 = arith.constant 12 : index
    %25 = vector.load %arg8[%c0_16, %c12] : memref<256x36xf32, #tpu.memory_space<vmem>>, vector<256x4xf32>
    tpu.vector_store %arg8[%c0_16, %c12], %24 {strides = array<i32>} : memref<256x36xf32, #tpu.memory_space<vmem>>, vector<256x4xf32>,
    %26 = vector.extract_strided_slice %13 {offsets = [1, 1, 0], sizes = [8, 32, 4], strides = [1, 1, 1]} : vector<10x34x4xf32> to vector<8x32x4xf32>
    %27 = vector.shape_cast %26 : vector<8x32x4xf32> to vector<256x4xf32>
    %c0_17 = arith.constant 0 : index
    %c16 = arith.constant 16 : index
    %28 = vector.load %arg8[%c0_17, %c16] : memref<256x36xf32, #tpu.memory_space<vmem>>, vector<256x4xf32>
    tpu.vector_store %arg8[%c0_17, %c16], %27 {strides = array<i32>} : memref<256x36xf32, #tpu.memory_space<vmem>>, vector<256x4xf32>,
    %29 = vector.extract_strided_slice %13 {offsets = [1, 2, 0], sizes = [8, 32, 4], strides = [1, 1, 1]} : vector<10x34x4xf32> to vector<8x32x4xf32>
    %30 = vector.shape_cast %29 : vector<8x32x4xf32> to vector<256x4xf32>
    %c0_18 = arith.constant 0 : index
    %c20 = arith.constant 20 : index
    %31 = vector.load %arg8[%c0_18, %c20] : memref<256x36xf32, #tpu.memory_space<vmem>>, vector<256x4xf32>
    tpu.vector_store %arg8[%c0_18, %c20], %30 {strides = array<i32>} : memref<256x36xf32, #tpu.memory_space<vmem>>, vector<256x4xf32>,
    %32 = vector.extract_strided_slice %13 {offsets = [2, 0, 0], sizes = [8, 32, 4], strides = [1, 1, 1]} : vector<10x34x4xf32> to vector<8x32x4xf32>
    %33 = vector.shape_cast %32 : vector<8x32x4xf32> to vector<256x4xf32>
    %c0_19 = arith.constant 0 : index
    %c24 = arith.constant 24 : index
    %34 = vector.load %arg8[%c0_19, %c24] : memref<256x36xf32, #tpu.memory_space<vmem>>, vector<256x4xf32>
    tpu.vector_store %arg8[%c0_19, %c24], %33 {strides = array<i32>} : memref<256x36xf32, #tpu.memory_space<vmem>>, vector<256x4xf32>,
    %35 = vector.extract_strided_slice %13 {offsets = [2, 1, 0], sizes = [8, 32, 4], strides = [1, 1, 1]} : vector<10x34x4xf32> to vector<8x32x4xf32>
    %36 = vector.shape_cast %35 : vector<8x32x4xf32> to vector<256x4xf32>
    %c0_20 = arith.constant 0 : index
    %c28 = arith.constant 28 : index
    %37 = vector.load %arg8[%c0_20, %c28] : memref<256x36xf32, #tpu.memory_space<vmem>>, vector<256x4xf32>
    tpu.vector_store %arg8[%c0_20, %c28], %36 {strides = array<i32>} : memref<256x36xf32, #tpu.memory_space<vmem>>, vector<256x4xf32>,
    %38 = vector.extract_strided_slice %13 {offsets = [2, 2, 0], sizes = [8, 32, 4], strides = [1, 1, 1]} : vector<10x34x4xf32> to vector<8x32x4xf32>
    %39 = vector.shape_cast %38 : vector<8x32x4xf32> to vector<256x4xf32>
    %c0_21 = arith.constant 0 : index
    %c32 = arith.constant 32 : index
    %40 = vector.load %arg8[%c0_21, %c32] : memref<256x36xf32, #tpu.memory_space<vmem>>, vector<256x4xf32>
    tpu.vector_store %arg8[%c0_21, %c32], %39 {strides = array<i32>} : memref<256x36xf32, #tpu.memory_space<vmem>>, vector<256x4xf32>,
    %c0_22 = arith.constant 0 : index
    %c0_23 = arith.constant 0 : index
    %41 = vector.load %arg8[%c0_22, %c0_23] : memref<256x36xf32, #tpu.memory_space<vmem>>, vector<256x36xf32>
    %c0_24 = arith.constant 0 : index
    %c0_25 = arith.constant 0 : index
    %42 = vector.load %arg3[%c0_24, %c0_25] : memref<36x4xf32, #tpu.memory_space<vmem>>, vector<36x4xf32>
    %cst_26 = arith.constant dense<0.000000e+00> : vector<256x4xf32>
    %43 = tpu.matmul %41, %42, %cst_26 {dimension_numbers = #tpu.dot_dimension_numbers<[1], [0], [0], [1], [0, 0, 1, 1], [], []>} : vector<256x36xf32>, vector<36x4xf32>, vector<256x4xf32> -> vector<256x4xf32>
    %c0_27 = arith.constant 0 : index
    %c0_28 = arith.constant 0 : index
    %44 = vector.load %arg4[%c0_27, %c0_28] : memref<1x4xf32, #tpu.memory_space<vmem>>, vector<1x4xf32>
    %45 = vector.broadcast %44 : vector<1x4xf32> to vector<256x4xf32>
    %46 = arith.mulf %43, %45 : vector<256x4xf32>
    %c0_29 = arith.constant 0 : index
    %c0_30 = arith.constant 0 : index
    %47 = vector.load %arg5[%c0_29, %c0_30] : memref<1x4xf32, #tpu.memory_space<vmem>>, vector<1x4xf32>
    %48 = vector.broadcast %47 : vector<1x4xf32> to vector<256x4xf32>
    %49 = arith.addf %46, %48 : vector<256x4xf32>
    %cst_31 = arith.constant 0.000000e+00 : f32
    %50 = vector.broadcast %cst_31 : f32 to vector<256x4xf32>
    %51 = arith.maximumf %49, %50 : vector<256x4xf32>
    %52 = vector.shape_cast %51 : vector<256x4xf32> to vector<1x8x32x4xf32>
    %c0_32 = arith.constant 0 : index
    %c0_33 = arith.constant 0 : index
    %c0_34 = arith.constant 0 : index
    %c0_35 = arith.constant 0 : index
    %53 = vector.load %arg6[%c0_32, %c0_33, %c0_34, %c0_35] : memref<1x8x32x4xf32, #tpu.memory_space<vmem>>, vector<1x8x32x4xf32>
    tpu.vector_store %arg6[%c0_32, %c0_33, %c0_34, %c0_35], %52 {strides = array<i32>} : memref<1x8x32x4xf32, #tpu.memory_space<vmem>>, vector<1x8x32x4xf32>,
    return
  }
  func.func @transform_0(%arg0: i32, %arg1: i32) -> (i32, i32, i32, i32) {
    %c0_i32 = arith.constant 0 : i32
    %c0_i32_0 = arith.constant 0 : i32
    %c0_i32_1 = arith.constant 0 : i32
    %c0_i32_2 = arith.constant 0 : i32
    return %arg0, %c0_i32, %c0_i32_0, %c0_i32_1 : i32, i32, i32, i32
  }
  func.func @transform_1(%arg0: i32, %arg1: i32) -> (i32, i32) {
    %c0_i32 = arith.constant 0 : i32
    %c0_i32_0 = arith.constant 0 : i32
    %c0_i32_1 = arith.constant 0 : i32
    return %c0_i32, %c0_i32_0 : i32, i32
  }
  func.func @transform_2(%arg0: i32, %arg1: i32) -> (i32, i32) {
    %c0_i32 = arith.constant 0 : i32
    %c0_i32_0 = arith.constant 0 : i32
    %c0_i32_1 = arith.constant 0 : i32
    return %c0_i32, %c0_i32_0 : i32, i32
  }
  func.func @transform_3(%arg0: i32, %arg1: i32) -> (i32, i32) {
    %c0_i32 = arith.constant 0 : i32
    %c0_i32_0 = arith.constant 0 : i32
    %c0_i32_1 = arith.constant 0 : i32
    return %c0_i32, %c0_i32_0 : i32, i32
  }
  func.func @transform_4(%arg0: i32, %arg1: i32) -> (i32, i32, i32, i32) {
    %c0_i32 = arith.constant 0 : i32
    %c0_i32_0 = arith.constant 0 : i32
    %c0_i32_1 = arith.constant 0 : i32
    return %arg0, %arg1, %c0_i32, %c0_i32_0 : i32, i32, i32, i32
  }
}

</mosaic_0001>

<llo_original>
// kernel: tile.8
$region0: #{tile.8}
  #allocation0 [shape = 's32[1]{0}', space=sflag, size = 0x4, scoped, tag = 'scoped memory for tile.8']
  %s0 = inlined_call_operand.vmem [shape: f32[4], index: 0, kind: input, shape index: {}]
  %s1 = inlined_call_operand.vmem [shape: f32[4,4], index: 1, kind: output, shape index: {}]
  // Predicated region
  $region2: #{tile.8} parent=0 // pred_check
    _
  $region3: #{tile.8} parent=0 // pred_check_branch
    %3 = sbr.rel (0) target = $region5
  $region4: #{tile.8} parent=0 // pred_region
    _
  $region5: #{tile.8} parent=0 // pred_fallthru
    _
  %v4 = vld [vmem:[%s0] ss:$0 sm:$0xff]
  %5 = vst [vmem:[%s1] sm:$0xf] %v4

// kernel: tile.9
$region0: #{tile.9}
  %s0 = inlined_call_operand.vmem [shape: f32[4,4], index: 0, kind: input, shape index: {}]
  %s1 = inlined_call_operand.vmem [shape: f32[1,16], index: 1, kind: output, shape index: {}]
  $region1: #{tile.9} parent=0
    #allocation0 [shape = 'u8[4096]{0}', space=vmem, size = 0x1000, scoped, tag = 'scoped mem for output reshape']
    #allocation1 [shape = 'u8[4096]{0}', space=vmem, size = 0x1000, scoped, tag = 'scoped mem for input reshape']
    %s3 = sshllo.u32 0, 4
    %v4 = vld [vmem:[%s0] sm:%s3]
    %5 = vst [vmem:[#allocation1] sm:%s3] %v4
    %v6 = vld [vmem:[#allocation1] sm:$0x1]
    %vm7 = vcmask 31744
    %8 = vst.msk [vmem:[#allocation0] sm:$0x1] %vm7, %v6
    %s9 = scalar_lea.vmem [#allocation1], 3
    %v10 = vld [vmem:[%s9] sm:$0x1]
    %11 = vrot.lane.b32.xlu0 %v10, 12
    %v12 = vpop.permute.xlu0 %11
    %vm13 = vcmask 130144
    %14 = vst.msk [vmem:[#allocation0] sm:$0x1] %vm13, %v12
    %s15 = scalar_lea.vmem [#allocation1], 2
    %v16 = vld [vmem:[%s15] sm:$0x1]
    %17 = vrot.lane.b32.xlu0 %v16, 8
    %v18 = vpop.permute.xlu0 %17
    %vm19 = vcmask 97344
    %20 = vst.msk [vmem:[#allocation0] sm:$0x1] %vm19, %v18
    %s21 = scalar_lea.vmem [#allocation1], 1
    %v22 = vld [vmem:[%s21] sm:$0x1]
    %23 = vrot.lane.b32.xlu0 %v22, 4
    %v24 = vpop.permute.xlu0 %23
    %vm25 = vcmask 64544
    %26 = vst.msk [vmem:[#allocation0] sm:$0x1] %vm25, %v24
    %s28 = sshllo.u32 0, 1
    %v30 = vld [vmem:[#allocation0] sm:%s28]
    %s31 = sshllo.u32 0, 1
    %32 = vst [vmem:[%s1] sm:%s31] %v30

// kernel: upsampling_forward.3
$region0: #{upsampling_forward.3}
  #allocation0 [shape = 'u32[]', space=smem, size = 0x4, offset = 0x4, fixed_abs, tag = 'smem constant byte address 0x4 - core index']
  #allocation1 [shape = 'u32[144,128]{1,0:T(1,128)}', space=vmem, size = 0x12000, scoped, tag = 'internal scratch']
  %s0 = inlined_call_operand.vmem [shape: f32[2,16,16,8], index: 0, kind: input, shape index: {}]
  %s1 = inlined_call_operand.vmem [shape: f32[8,16], index: 1, kind: input, shape index: {}]
  %s2 = inlined_call_operand.vmem [shape: f32[1,16], index: 2, kind: input, shape index: {}]
  %s3 = inlined_call_operand.vmem [shape: f32[32,2,16,8], index: 3, kind: output, shape index: {}]
  %s4 = sld [smem:[#allocation0]]
  $region45: #{upsampling_forward.3} parent=0
    _
  %s6 = ssub.s32 1, %s4
  %s7 = scalar_select 0, %s6, %s4
  loop: start=0, step=1, limit=4
  $region2: #{upsampling_forward.3} parent=0 // loop_pre_header
    _
  $region3: #{upsampling_forward.3} parent=0 // loop_header
    %s9 = sphi 0, %s13
    %p10 = scmp.ge.s32.totalorder %s9, 4
    %s16 = sphi 0, %s28
    %s17 = sphi 0, %s24
    %s18 = sphi 0, %s16
    %s19 = sphi 0, %s17
    %s20 = sphi 0, %s18
    %s21 = sphi 0, %s19
    %s33 = sphi 0, %s35
    %s36 = sphi 0, %s33
    %s37 = sphi 0, %s36
    %s53 = sphi 0, %s37
    %s57 = sphi 0, %s57
    %s59 = sphi 0, %s57
    %s60 = sphi 0, %s59
    %s74 = sphi 0, %s60
    %s78 = sphi 0, %s78
    %s80 = sphi 0, %s78
    %s81 = sphi 0, %s80
    %s95 = sphi 0, %s81
    %s103 = sphi 0, %s105
    %s106 = sphi 0, %s103
    %s107 = sphi 0, %s106
    %s123 = sphi 0, %s107
  $region4: #{upsampling_forward.3} parent=0 // loop_header_branch
    %12 = sbr.rel (%p10) target = $region8
  $region5: #{upsampling_forward.3} parent=0 // loop_body
    %s14 = ssub.s32 %s9, 1
    %s15 = ssub.s32 %s9, 2
    %s22 = sadd.s32 1, %s17
    %p23 = scmp.ge.s32.totalorder %s22, 1
    %s24 = scalar_select %p23, 0, %s22
    %s25 = sadd.s32 1, %s16
    %s26 = scalar_select %p23, %s25, %s16
    %p27 = scmp.ge.s32.totalorder %s26, 2
    %s28 = scalar_select %p27, 0, %s26
    %s29 = ssub.s32 %s16, %s28
    %s30 = ssub.s32 %s17, %s24
    %s31 = sor.u32 %s29, %s30
    %p32 = scmp.eq.s32.totalorder %s31, 0
    %s34 = sadd.s32 %s33, 1
    %s35 = scalar_select %p32, %s33, %s34
    %p38 = pneg %p32
    %p39 = scmp.eq.s32.totalorder %s9, 1
    %p40 = por %p38, %p39
    %p41 = scmp.ne.s32.totalorder %s33, %s36
    %p42 = scmp.eq.s32.totalorder %s9, 0
    %p43 = por %p41, %p42
    %p44 = scmp.ne.s32.totalorder %s33, %s36
    %p45 = scmp.eq.s32.totalorder %s14, 1
    %p46 = por %p44, %p45
    %p47 = scmp.ne.s32.totalorder %s36, %s37
    %p48 = scmp.eq.s32.totalorder %s14, 0
    %p49 = por %p47, %p48
    %p50 = scmp.ne.s32.totalorder %s36, %s37
    %p51 = scmp.eq.s32.totalorder %s15, 1
    %p52 = por %p50, %p51
    %p54 = scmp.ne.s32.totalorder %s37, %s53
    %p55 = scmp.eq.s32.totalorder %s15, 0
    %p56 = por %p54, %p55
    %s58 = sadd.s32 %s57, 1
    %p61 = scmp.eq.s32.totalorder %s9, 1
    %p62 = scmp.ne.s32.totalorder %s57, %s59
    %p63 = scmp.eq.s32.totalorder %s9, 0
    %p64 = por %p62, %p63
    %p65 = scmp.ne.s32.totalorder %s57, %s59
    %p66 = scmp.eq.s32.totalorder %s14, 1
    %p67 = por %p65, %p66
    %p68 = scmp.ne.s32.totalorder %s59, %s60
    %p69 = scmp.eq.s32.totalorder %s14, 0
    %p70 = por %p68, %p69
    %p71 = scmp.ne.s32.totalorder %s59, %s60
    %p72 = scmp.eq.s32.totalorder %s15, 1
    %p73 = por %p71, %p72
    %p75 = scmp.ne.s32.totalorder %s60, %s74
    %p76 = scmp.eq.s32.totalorder %s15, 0
    %p77 = por %p75, %p76
    %s79 = sadd.s32 %s78, 1
    %p82 = scmp.eq.s32.totalorder %s9, 1
    %p83 = scmp.ne.s32.totalorder %s78, %s80
    %p84 = scmp.eq.s32.totalorder %s9, 0
    %p85 = por %p83, %p84
    %p86 = scmp.ne.s32.totalorder %s78, %s80
    %p87 = scmp.eq.s32.totalorder %s14, 1
    %p88 = por %p86, %p87
    %p89 = scmp.ne.s32.totalorder %s80, %s81
    %p90 = scmp.eq.s32.totalorder %s14, 0
    %p91 = por %p89, %p90
    %p92 = scmp.ne.s32.totalorder %s80, %s81
    %p93 = scmp.eq.s32.totalorder %s15, 1
    %p94 = por %p92, %p93
    %p96 = scmp.ne.s32.totalorder %s81, %s95
    %p97 = scmp.eq.s32.totalorder %s15, 0
    %p98 = por %p96, %p97
    %s99 = sadd.s32 %s16, %s17
    %s100 = sadd.s32 %s28, %s24
    %s101 = ssub.s32 %s99, %s100
    %p102 = scmp.eq.s32.totalorder %s101, 0
    %s104 = sadd.s32 %s103, 1
    %s105 = scalar_select %p102, %s103, %s104
    %p108 = pneg %p102
    %p109 = scmp.eq.s32.totalorder %s9, 1
    %p110 = por %p108, %p109
    %p111 = scmp.ne.s32.totalorder %s103, %s106
    %p112 = scmp.eq.s32.totalorder %s9, 0
    %p113 = por %p111, %p112
    %p114 = scmp.ne.s32.totalorder %s103, %s106
    %p115 = scmp.eq.s32.totalorder %s14, 1
    %p116 = por %p114, %p115
    %p117 = scmp.ne.s32.totalorder %s106, %s107
    %p118 = scmp.eq.s32.totalorder %s14, 0
    %p119 = por %p117, %p118
    %p120 = scmp.ne.s32.totalorder %s106, %s107
    %p121 = scmp.eq.s32.totalorder %s15, 1
    %p122 = por %p120, %p121
    %p124 = scmp.ne.s32.totalorder %s107, %s123
    %p125 = scmp.eq.s32.totalorder %s15, 0
    %p126 = por %p124, %p125
    %p127 = scmp.le.s32.totalorder 1, %s9
    %p128 = scmp.lt.s32.totalorder %s9, 3
    %p129 = pnand %p127, %p128
    %p130 = pneg %p129
    // Predicated region
    $region9: #{upsampling_forward.3} parent=5 // pred_check
      _
    $region10: #{upsampling_forward.3} parent=5 // pred_check_branch
      %132 = sbr.rel (%p129) target = $region12
    $region11: #{upsampling_forward.3} parent=5 // pred_region
      %s133 = ssub.s32 %s9, 1
      // Predicated region
      $region13: #{upsampling_forward.3} parent=11 // pred_check
        %p134 = pneg %p70
      $region14: #{upsampling_forward.3} parent=11 // pred_check_branch
        %136 = sbr.rel (%p134) target = $region16
      $region15: #{upsampling_forward.3} parent=11 // pred_region
        _
      $region16: #{upsampling_forward.3} parent=11 // pred_fallthru
        _
      // Predicated region
      $region17: #{upsampling_forward.3} parent=11 // pred_check
        %p137 = pneg %p91
      $region18: #{upsampling_forward.3} parent=11 // pred_check_branch
        %139 = sbr.rel (%p137) target = $region20
      $region19: #{upsampling_forward.3} parent=11 // pred_region
        _
      $region20: #{upsampling_forward.3} parent=11 // pred_fallthru
        _
    $region12: #{upsampling_forward.3} parent=5 // pred_fallthru
      _
    %p140 = scmp.lt.s32.totalorder %s9, 2
    // Predicated region
    $region21: #{upsampling_forward.3} parent=5 // pred_check
      %p141 = pneg %p140
    $region22: #{upsampling_forward.3} parent=5 // pred_check_branch
      %143 = sbr.rel (%p141) target = $region24
    $region23: #{upsampling_forward.3} parent=5 // pred_region
      // Predicated region
      $region25: #{upsampling_forward.3} parent=23 // pred_check
        %p144 = pneg %p43
      $region26: #{upsampling_forward.3} parent=23 // pred_check_branch
        %146 = sbr.rel (%p144) target = $region28
      $region27: #{upsampling_forward.3} parent=23 // pred_region
        %s147 = smul.u32 16, %s17
        %p148 = scmp.lt.s32.totalorder %s16, 1
        %s149 = scalar_select %p148, %s16, 1
        %p150 = scmp.lt.s32.totalorder %s147, 15
        %s151 = scalar_select %p150, %s147, 15
        %s152 = smul.addr %s151, 2
        %s153 = smul.addr %s149, 32
        %s154 = sadd.s32 %s152, %s153
        %s155 = smul.addr %s154, 8
        %s156 = scalar_lea.vmem %s0, %s155
        %s157 = smul.u32 16, %s17
      $region28: #{upsampling_forward.3} parent=23 // pred_fallthru
        _
    $region24: #{upsampling_forward.3} parent=5 // pred_fallthru
      _
    %p158 = scmp.le.s32.totalorder 1, %s9
    %p159 = scmp.lt.s32.totalorder %s9, 3
    %p160 = pnand %p158, %p159
    %p161 = pneg %p160
    // Predicated region
    $region29: #{upsampling_forward.3} parent=5 // pred_check
      _
    $region30: #{upsampling_forward.3} parent=5 // pred_check_branch
      %163 = sbr.rel (%p160) target = $region32
    $region31: #{upsampling_forward.3} parent=5 // pred_region
      %s164 = ssub.s32 %s9, 1
      %s165 = smul.u32 16, %s19
      %p166 = scmp.lt.s32.totalorder %s18, 1
      %s167 = scalar_select %p166, %s18, 1
      %p168 = scmp.lt.s32.totalorder %s165, 15
      %s169 = scalar_select %p168, %s165, 15
      %s170 = smul.addr %s169, 2
      %s171 = smul.addr %s167, 32
      %s172 = sadd.s32 %s170, %s171
      %s173 = smul.addr %s172, 8
      %s174 = scalar_lea.vmem %s0, %s173
      %p175 = pneg %p49
      %p176 = pneg %p46
      %p177 = pneg %p70
      %p178 = pneg %p67
      %p179 = pneg %p91
      %p180 = pneg %p88
      %p181 = pneg %p119
      %p182 = pneg %p116
      %s183 = sadd.s32 %s18, %s19
      %s184 = smul.u32 16, %s183
      %p185 = scmp.lt.s32.totalorder %s184, 31
      %s186 = scalar_select %p185, %s184, 31
      %s187 = smul.addr %s186, 4
      %s188 = smul.addr %s187, 8
      %s189 = scalar_lea.vmem %s3, %s188
      %s190 = smul.u32 16, %s19
      %p191 = scmp.lt.s32.totalorder %s18, 1
      %s192 = scalar_select %p191, %s18, 1
      %p193 = scmp.lt.s32.totalorder %s190, 15
      %s194 = scalar_select %p193, %s190, 15
      %s195 = smul.addr %s194, 2
      %s196 = smul.addr %s192, 32
      %s197 = sadd.s32 %s195, %s196
      %s198 = smul.addr %s197, 8
      %s199 = scalar_lea.vmem %s0, %s198
      %s200 = smul.u32 16, %s19
      %s201 = sadd.s32 %s18, %s19
      %s202 = smul.u32 16, %s201
      %p203 = scmp.lt.s32.totalorder %s202, 31
      %s204 = scalar_select %p203, %s202, 31
      %s205 = smul.addr %s204, 4
      %s206 = smul.addr %s205, 8
      %s207 = scalar_lea.vmem %s3, %s206
      %s208 = sadd.s32 %s18, %s19
      %s209 = smul.u32 16, %s208
      %v210 = vld [vmem:[%s199] sm:$0xff]
      %v211 = vld [vmem:[%s199 + $0x8] sm:$0xff]
      %v212 = vld [vmem:[%s199 + $0x10] sm:$0xff]
      %v213 = vld [vmem:[%s199 + $0x18] sm:$0xff]
      %v214 = vld [vmem:[%s199 + $0x20] sm:$0xff]
      %v215 = vld [vmem:[%s199 + $0x28] sm:$0xff]
      %v216 = vld [vmem:[%s199 + $0x30] sm:$0xff]
      %v217 = vld [vmem:[%s199 + $0x38] sm:$0xff]
      %v218 = vld [vmem:[%s199 + $0x40] sm:$0xff]
      %v219 = vld [vmem:[%s199 + $0x48] sm:$0xff]
      %v220 = vld [vmem:[%s199 + $0x50] sm:$0xff]
      %v221 = vld [vmem:[%s199 + $0x58] sm:$0xff]
      %v222 = vld [vmem:[%s199 + $0x60] sm:$0xff]
      %v223 = vld [vmem:[%s199 + $0x68] sm:$0xff]
      %v224 = vld [vmem:[%s199 + $0x70] sm:$0xff]
      %v225 = vld [vmem:[%s199 + $0x78] sm:$0xff]
      %v226 = vld [vmem:[%s199 + $0x80] sm:$0xff]
      %v227 = vld [vmem:[%s199 + $0x88] sm:$0xff]
      %v228 = vld [vmem:[%s199 + $0x90] sm:$0xff]
      %v229 = vld [vmem:[%s199 + $0x98] sm:$0xff]
      %v230 = vld [vmem:[%s199 + $0xa0] sm:$0xff]
      %v231 = vld [vmem:[%s199 + $0xa8] sm:$0xff]
      %v232 = vld [vmem:[%s199 + $0xb0] sm:$0xff]
      %v233 = vld [vmem:[%s199 + $0xb8] sm:$0xff]
      %v234 = vld [vmem:[%s199 + $0xc0] sm:$0xff]
      %v235 = vld [vmem:[%s199 + $0xc8] sm:$0xff]
      %v236 = vld [vmem:[%s199 + $0xd0] sm:$0xff]
      %v237 = vld [vmem:[%s199 + $0xd8] sm:$0xff]
      %v238 = vld [vmem:[%s199 + $0xe0] sm:$0xff]
      %v239 = vld [vmem:[%s199 + $0xe8] sm:$0xff]
      %v240 = vld [vmem:[%s199 + $0xf0] sm:$0xff]
      %v241 = vld [vmem:[%s199 + $0xf8] sm:$0xff]
      %v242 = vld [vmem:[%s1] sm:$0xff]
      %v243 = vld [vmem:[%s2] sm:$0x1]
      %v245 = vlaneseq
      %v246 = vshrl.u32 %v245, 7
      %v247 = vsub.s32 0, %v246
      %v248 = vrot.slane %v243, %v247
      %vm250 = vcmask 64512
      %v252 = vsel %vm250, %v210, 0
      %v255 = vsel %vm250, %v211, 0
      %v258 = vsel %vm250, %v212, 0
      %v261 = vsel %vm250, %v213, 0
      %v264 = vsel %vm250, %v214, 0
      %v267 = vsel %vm250, %v215, 0
      %v270 = vsel %vm250, %v216, 0
      %v273 = vsel %vm250, %v217, 0
      %v276 = vsel %vm250, %v218, 0
      %v279 = vsel %vm250, %v219, 0
      %v282 = vsel %vm250, %v220, 0
      %v285 = vsel %vm250, %v221, 0
      %v288 = vsel %vm250, %v222, 0
      %v291 = vsel %vm250, %v223, 0
      %v294 = vsel %vm250, %v224, 0
      %v297 = vsel %vm250, %v225, 0
      %v300 = vsel %vm250, %v226, 0
      %v303 = vsel %vm250, %v227, 0
      %v306 = vsel %vm250, %v228, 0
      %v309 = vsel %vm250, %v229, 0
      %v312 = vsel %vm250, %v230, 0
      %v315 = vsel %vm250, %v231, 0
      %v318 = vsel %vm250, %v232, 0
      %v321 = vsel %vm250, %v233, 0
      %v324 = vsel %vm250, %v234, 0
      %v327 = vsel %vm250, %v235, 0
      %v330 = vsel %vm250, %v236, 0
      %v333 = vsel %vm250, %v237, 0
      %v336 = vsel %vm250, %v238, 0
      %v339 = vsel %vm250, %v239, 0
      %v342 = vsel %vm250, %v240, 0
      %v345 = vsel %vm250, %v241, 0
      %347 = vmatprep.subr.mxu0 0.0
      %348 = vmatpush1.msra.mxu0 %v242
      %349 = vmatprep.subr.mxu0 0.0
      %350 = vmatpush1.msra.mxu0 0.0
      %351 = vmatprep.subr.mxu0 0.0
      %352 = vmatpush1.msra.mxu0 0.0
      %353 = vmatprep.subr.mxu0 0.0
      %354 = vmatpush1.msra.mxu0 0.0
      %355 = vmatprep.subr.mxu0 0.0
      %356 = vmatpush1.msra.mxu0 0.0
      %357 = vmatprep.subr.mxu0 0.0
      %358 = vmatpush1.msra.mxu0 0.0
      %359 = vmatprep.subr.mxu0 0.0
      %360 = vmatpush1.msra.mxu0 0.0
      %361 = vmatprep.subr.mxu0 0.0
      %362 = vmatpush1.msra.mxu0 0.0
      %363 = vmatprep.subr.mxu0 0.0
      %364 = vmatpush1.msra.mxu0 0.0
      %365 = vmatprep.subr.mxu0 0.0
      %366 = vmatpush1.msra.mxu0 0.0
      %367 = vmatprep.subr.mxu0 0.0
      %368 = vmatpush1.msra.mxu0 0.0
      %369 = vmatprep.subr.mxu0 0.0
      %370 = vmatpush1.msra.mxu0 0.0
      %371 = vmatprep.subr.mxu0 0.0
      %372 = vmatpush1.msra.mxu0 0.0
      %373 = vmatprep.subr.mxu0 0.0
      %374 = vmatpush1.msra.mxu0 0.0
      %375 = vmatprep.subr.mxu0 0.0
      %376 = vmatpush1.msra.mxu0 0.0
      %377 = vmatprep.subr.mxu0 0.0
      %378 = vmatpush1.msra.mxu0 0.0
      %379 = vmatprep.subr.mxu0 0.0
      %380 = vmatpush1.msra.mxu0 0.0
      %381 = vmatprep.subr.mxu0 0.0
      %382 = vmatpush1.msra.mxu0 0.0
      %383 = vmatprep.subr.mxu0 0.0
      %384 = vmatpush1.msra.mxu0 0.0
      %385 = vmatprep.subr.mxu0 0.0
      %386 = vmatpush1.msra.mxu0 0.0
      %387 = vmatprep.subr.mxu0 0.0
      %388 = vmatpush1.msra.mxu0 0.0
      %389 = vmatprep.subr.mxu0 0.0
      %390 = vmatpush1.msra.mxu0 0.0
      %391 = vmatprep.subr.mxu0 0.0
      %392 = vmatpush1.msra.mxu0 0.0
      %393 = vmatprep.subr.mxu0 0.0
      %394 = vmatpush1.msra.mxu0 0.0
      %395 = vmatprep.subr.mxu0 0.0
      %396 = vmatpush1.msra.mxu0 0.0
      %397 = vmatprep.subr.mxu0 0.0
      %398 = vmatpush1.msra.mxu0 0.0
      %399 = vmatprep.subr.mxu0 0.0
      %400 = vmatpush1.msra.mxu0 0.0
      %401 = vmatprep.subr.mxu0 0.0
      %402 = vmatpush1.msra.mxu0 0.0
      %403 = vmatprep.subr.mxu0 0.0
      %404 = vmatpush1.msra.mxu0 0.0
      %405 = vmatprep.subr.mxu0 0.0
      %406 = vmatpush1.msra.mxu0 0.0
      %407 = vmatprep.subr.mxu0 0.0
      %408 = vmatpush1.msra.mxu0 0.0
      %409 = vmatprep.subr.mxu0 0.0
      %410 = vmatpush1.msra.mxu0 0.0
      %411 = vmatprep.mubr.f32.mxu0 0.0
      %412 = vmatmul.mubr.f32.gmra.mrb[0].mxu0 %v252
      %v413 = vpop.f32.mrb[0].mxu0
      %v414 = vadd.f32 %v248, %v413
      %v415 = vpop.f32.mrb[0].mxu0
      %416 = vmatprep.mubr.f32.mxu0 0.0
      %417 = vmatmul.mubr.f32.gmra.mrb[0].mxu0 %v255
      %v418 = vpop.f32.mrb[0].mxu0
      %v419 = vadd.f32 %v248, %v418
      %v420 = vpop.f32.mrb[0].mxu0
      %421 = vmatprep.mubr.f32.mxu0 0.0
      %422 = vmatmul.mubr.f32.gmra.mrb[0].mxu0 %v258
      %v423 = vpop.f32.mrb[0].mxu0
      %v424 = vadd.f32 %v248, %v423
      %v425 = vpop.f32.mrb[0].mxu0
      %426 = vmatprep.mubr.f32.mxu0 0.0
      %427 = vmatmul.mubr.f32.gmra.mrb[0].mxu0 %v261
      %v428 = vpop.f32.mrb[0].mxu0
      %v429 = vadd.f32 %v248, %v428
      %v430 = vpop.f32.mrb[0].mxu0
      %431 = vmatprep.mubr.f32.mxu0 0.0
      %432 = vmatmul.mubr.f32.gmra.mrb[0].mxu0 %v264
      %v433 = vpop.f32.mrb[0].mxu0
      %v434 = vadd.f32 %v248, %v433
      %v435 = vpop.f32.mrb[0].mxu0
      %436 = vmatprep.mubr.f32.mxu0 0.0
      %437 = vmatmul.mubr.f32.gmra.mrb[0].mxu0 %v267
      %v438 = vpop.f32.mrb[0].mxu0
      %v439 = vadd.f32 %v248, %v438
      %v440 = vpop.f32.mrb[0].mxu0
      %441 = vmatprep.mubr.f32.mxu0 0.0
      %442 = vmatmul.mubr.f32.gmra.mrb[0].mxu0 %v270
      %v443 = vpop.f32.mrb[0].mxu0
      %v444 = vadd.f32 %v248, %v443
      %v445 = vpop.f32.mrb[0].mxu0
      %446 = vmatprep.mubr.f32.mxu0 0.0
      %447 = vmatmul.mubr.f32.gmra.mrb[0].mxu0 %v273
      %v448 = vpop.f32.mrb[0].mxu0
      %v449 = vadd.f32 %v248, %v448
      %v450 = vpop.f32.mrb[0].mxu0
      %451 = vmatprep.mubr.f32.mxu0 0.0
      %452 = vmatmul.mubr.f32.gmra.mrb[0].mxu0 %v276
      %v453 = vpop.f32.mrb[0].mxu0
      %v454 = vadd.f32 %v248, %v453
      %v455 = vpop.f32.mrb[0].mxu0
      %456 = vmatprep.mubr.f32.mxu0 0.0
      %457 = vmatmul.mubr.f32.gmra.mrb[0].mxu0 %v279
      %v458 = vpop.f32.mrb[0].mxu0
      %v459 = vadd.f32 %v248, %v458
      %v460 = vpop.f32.mrb[0].mxu0
      %461 = vmatprep.mubr.f32.mxu0 0.0
      %462 = vmatmul.mubr.f32.gmra.mrb[0].mxu0 %v282
      %v463 = vpop.f32.mrb[0].mxu0
      %v464 = vadd.f32 %v248, %v463
      %v465 = vpop.f32.mrb[0].mxu0
      %466 = vmatprep.mubr.f32.mxu0 0.0
      %467 = vmatmul.mubr.f32.gmra.mrb[0].mxu0 %v285
      %v468 = vpop.f32.mrb[0].mxu0
      %v469 = vadd.f32 %v248, %v468
      %v470 = vpop.f32.mrb[0].mxu0
      %471 = vmatprep.mubr.f32.mxu0 0.0
      %472 = vmatmul.mubr.f32.gmra.mrb[0].mxu0 %v288
      %v473 = vpop.f32.mrb[0].mxu0
      %v474 = vadd.f32 %v248, %v473
      %v475 = vpop.f32.mrb[0].mxu0
      %476 = vmatprep.mubr.f32.mxu0 0.0
      %477 = vmatmul.mubr.f32.gmra.mrb[0].mxu0 %v291
      %v478 = vpop.f32.mrb[0].mxu0
      %v479 = vadd.f32 %v248, %v478
      %v480 = vpop.f32.mrb[0].mxu0
      %481 = vmatprep.mubr.f32.mxu0 0.0
      %482 = vmatmul.mubr.f32.gmra.mrb[0].mxu0 %v294
      %v483 = vpop.f32.mrb[0].mxu0
      %v484 = vadd.f32 %v248, %v483
      %v485 = vpop.f32.mrb[0].mxu0
      %486 = vmatprep.mubr.f32.mxu0 0.0
      %487 = vmatmul.mubr.f32.gmra.mrb[0].mxu0 %v297
      %v488 = vpop.f32.mrb[0].mxu0
      %v489 = vadd.f32 %v248, %v488
      %v490 = vpop.f32.mrb[0].mxu0
      %491 = vmatprep.mubr.f32.mxu0 0.0
      %492 = vmatmul.mubr.f32.gmra.mrb[0].mxu0 %v300
      %v493 = vpop.f32.mrb[0].mxu0
      %v494 = vadd.f32 %v248, %v493
      %v495 = vpop.f32.mrb[0].mxu0
      %496 = vmatprep.mubr.f32.mxu0 0.0
      %497 = vmatmul.mubr.f32.gmra.mrb[0].mxu0 %v303
      %v498 = vpop.f32.mrb[0].mxu0
      %v499 = vadd.f32 %v248, %v498
      %v500 = vpop.f32.mrb[0].mxu0
      %501 = vmatprep.mubr.f32.mxu0 0.0
      %502 = vmatmul.mubr.f32.gmra.mrb[0].mxu0 %v306
      %v503 = vpop.f32.mrb[0].mxu0
      %v504 = vadd.f32 %v248, %v503
      %v505 = vpop.f32.mrb[0].mxu0
      %506 = vmatprep.mubr.f32.mxu0 0.0
      %507 = vmatmul.mubr.f32.gmra.mrb[0].mxu0 %v309
      %v508 = vpop.f32.mrb[0].mxu0
      %v509 = vadd.f32 %v248, %v508
      %v510 = vpop.f32.mrb[0].mxu0
      %511 = vmatprep.mubr.f32.mxu0 0.0
      %512 = vmatmul.mubr.f32.gmra.mrb[0].mxu0 %v312
      %v513 = vpop.f32.mrb[0].mxu0
      %v514 = vadd.f32 %v248, %v513
      %v515 = vpop.f32.mrb[0].mxu0
      %516 = vmatprep.mubr.f32.mxu0 0.0
      %517 = vmatmul.mubr.f32.gmra.mrb[0].mxu0 %v315
      %v518 = vpop.f32.mrb[0].mxu0
      %v519 = vadd.f32 %v248, %v518
      %v520 = vpop.f32.mrb[0].mxu0
      %521 = vmatprep.mubr.f32.mxu0 0.0
      %522 = vmatmul.mubr.f32.gmra.mrb[0].mxu0 %v318
      %v523 = vpop.f32.mrb[0].mxu0
      %v524 = vadd.f32 %v248, %v523
      %v525 = vpop.f32.mrb[0].mxu0
      %526 = vmatprep.mubr.f32.mxu0 0.0
      %527 = vmatmul.mubr.f32.gmra.mrb[0].mxu0 %v321
      %v528 = vpop.f32.mrb[0].mxu0
      %v529 = vadd.f32 %v248, %v528
      %v530 = vpop.f32.mrb[0].mxu0
      %531 = vmatprep.mubr.f32.mxu0 0.0
      %532 = vmatmul.mubr.f32.gmra.mrb[0].mxu0 %v324
      %v533 = vpop.f32.mrb[0].mxu0
      %v534 = vadd.f32 %v248, %v533
      %v535 = vpop.f32.mrb[0].mxu0
      %536 = vmatprep.mubr.f32.mxu0 0.0
      %537 = vmatmul.mubr.f32.gmra.mrb[0].mxu0 %v327
      %v538 = vpop.f32.mrb[0].mxu0
      %v539 = vadd.f32 %v248, %v538
      %v540 = vpop.f32.mrb[0].mxu0
      %541 = vmatprep.mubr.f32.mxu0 0.0
      %542 = vmatmul.mubr.f32.gmra.mrb[0].mxu0 %v330
      %v543 = vpop.f32.mrb[0].mxu0
      %v544 = vadd.f32 %v248, %v543
      %v545 = vpop.f32.mrb[0].mxu0
      %546 = vmatprep.mubr.f32.mxu0 0.0
      %547 = vmatmul.mubr.f32.gmra.mrb[0].mxu0 %v333
      %v548 = vpop.f32.mrb[0].mxu0
      %v549 = vadd.f32 %v248, %v548
      %v550 = vpop.f32.mrb[0].mxu0
      %551 = vmatprep.mubr.f32.mxu0 0.0
      %552 = vmatmul.mubr.f32.gmra.mrb[0].mxu0 %v336
      %v553 = vpop.f32.mrb[0].mxu0
      %v554 = vadd.f32 %v248, %v553
      %v555 = vpop.f32.mrb[0].mxu0
      %556 = vmatprep.mubr.f32.mxu0 0.0
      %557 = vmatmul.mubr.f32.gmra.mrb[0].mxu0 %v339
      %v558 = vpop.f32.mrb[0].mxu0
      %v559 = vadd.f32 %v248, %v558
      %v560 = vpop.f32.mrb[0].mxu0
      %561 = vmatprep.mubr.f32.mxu0 0.0
      %562 = vmatmul.mubr.f32.gmra.mrb[0].mxu0 %v342
      %v563 = vpop.f32.mrb[0].mxu0
      %v564 = vadd.f32 %v248, %v563
      %v565 = vpop.f32.mrb[0].mxu0
      %566 = vmatprep.mubr.f32.mxu0 0.0
      %567 = vmatmul.mubr.f32.gmra.mrb[0].mxu0 %v345
      %v568 = vpop.f32.mrb[0].mxu0
      %v569 = vadd.f32 %v248, %v568
      %v570 = vpop.f32.mrb[0].mxu0
      %571 = vdwg.mxu0
      %572 = vst.msk [vmem:[%s207] sm:$0xff] %vm250, %v414
      %573 = vst.msk [vmem:[%s207 + $0x8] sm:$0xff] %vm250, %v419
      %574 = vst.msk [vmem:[%s207 + $0x20] sm:$0xff] %vm250, %v424
      %575 = vst.msk [vmem:[%s207 + $0x28] sm:$0xff] %vm250, %v429
      %576 = vst.msk [vmem:[%s207 + $0x40] sm:$0xff] %vm250, %v434
      %577 = vst.msk [vmem:[%s207 + $0x48] sm:$0xff] %vm250, %v439
      %578 = vst.msk [vmem:[%s207 + $0x60] sm:$0xff] %vm250, %v444
      %579 = vst.msk [vmem:[%s207 + $0x68] sm:$0xff] %vm250, %v449
      %580 = vst.msk [vmem:[%s207 + $0x80] sm:$0xff] %vm250, %v454
      %581 = vst.msk [vmem:[%s207 + $0x88] sm:$0xff] %vm250, %v459
      %582 = vst.msk [vmem:[%s207 + $0xa0] sm:$0xff] %vm250, %v464
      %583 = vst.msk [vmem:[%s207 + $0xa8] sm:$0xff] %vm250, %v469
      %584 = vst.msk [vmem:[%s207 + $0xc0] sm:$0xff] %vm250, %v474
      %585 = vst.msk [vmem:[%s207 + $0xc8] sm:$0xff] %vm250, %v479
      %586 = vst.msk [vmem:[%s207 + $0xe0] sm:$0xff] %vm250, %v484
      %587 = vst.msk [vmem:[%s207 + $0xe8] sm:$0xff] %vm250, %v489
      %588 = vst.msk [vmem:[%s207 + $0x100] sm:$0xff] %vm250, %v494
      %589 = vst.msk [vmem:[%s207 + $0x108] sm:$0xff] %vm250, %v499
      %590 = vst.msk [vmem:[%s207 + $0x120] sm:$0xff] %vm250, %v504
      %591 = vst.msk [vmem:[%s207 + $0x128] sm:$0xff] %vm250, %v509
      %592 = vst.msk [vmem:[%s207 + $0x140] sm:$0xff] %vm250, %v514
      %593 = vst.msk [vmem:[%s207 + $0x148] sm:$0xff] %vm250, %v519
      %594 = vst.msk [vmem:[%s207 + $0x160] sm:$0xff] %vm250, %v524
      %595 = vst.msk [vmem:[%s207 + $0x168] sm:$0xff] %vm250, %v529
      %596 = vst.msk [vmem:[%s207 + $0x180] sm:$0xff] %vm250, %v534
      %597 = vst.msk [vmem:[%s207 + $0x188] sm:$0xff] %vm250, %v539
      %598 = vst.msk [vmem:[%s207 + $0x1a0] sm:$0xff] %vm250, %v544
      %599 = vst.msk [vmem:[%s207 + $0x1a8] sm:$0xff] %vm250, %v549
      %600 = vst.msk [vmem:[%s207 + $0x1c0] sm:$0xff] %vm250, %v554
      %601 = vst.msk [vmem:[%s207 + $0x1c8] sm:$0xff] %vm250, %v559
      %602 = vst.msk [vmem:[%s207 + $0x1e0] sm:$0xff] %vm250, %v564
      %603 = vst.msk [vmem:[%s207 + $0x1e8] sm:$0xff] %vm250, %v569
      %636 = vrot.lane.b32.xlu0 %v414, 120
      %v637 = vpop.permute.xlu0 %636
      %638 = vrot.lane.b32.xlu0 %v419, 120
      %v639 = vpop.permute.xlu0 %638
      %640 = vrot.lane.b32.xlu0 %v424, 120
      %v641 = vpop.permute.xlu0 %640
      %642 = vrot.lane.b32.xlu0 %v429, 120
      %v643 = vpop.permute.xlu0 %642
      %644 = vrot.lane.b32.xlu0 %v434, 120
      %v645 = vpop.permute.xlu0 %644
      %646 = vrot.lane.b32.xlu0 %v439, 120
      %v647 = vpop.permute.xlu0 %646
      %648 = vrot.lane.b32.xlu0 %v444, 120
      %v649 = vpop.permute.xlu0 %648
      %650 = vrot.lane.b32.xlu0 %v449, 120
      %v651 = vpop.permute.xlu0 %650
      %652 = vrot.lane.b32.xlu0 %v454, 120
      %v653 = vpop.permute.xlu0 %652
      %654 = vrot.lane.b32.xlu0 %v459, 120
      %v655 = vpop.permute.xlu0 %654
      %656 = vrot.lane.b32.xlu0 %v464, 120
      %v657 = vpop.permute.xlu0 %656
      %658 = vrot.lane.b32.xlu0 %v469, 120
      %v659 = vpop.permute.xlu0 %658
      %660 = vrot.lane.b32.xlu0 %v474, 120
      %v661 = vpop.permute.xlu0 %660
      %662 = vrot.lane.b32.xlu0 %v479, 120
      %v663 = vpop.permute.xlu0 %662
      %664 = vrot.lane.b32.xlu0 %v484, 120
      %v665 = vpop.permute.xlu0 %664
      %666 = vrot.lane.b32.xlu0 %v489, 120
      %v667 = vpop.permute.xlu0 %666
      %668 = vrot.lane.b32.xlu0 %v494, 120
      %v669 = vpop.permute.xlu0 %668
      %670 = vrot.lane.b32.xlu0 %v499, 120
      %v671 = vpop.permute.xlu0 %670
      %672 = vrot.lane.b32.xlu0 %v504, 120
      %v673 = vpop.permute.xlu0 %672
      %674 = vrot.lane.b32.xlu0 %v509, 120
      %v675 = vpop.permute.xlu0 %674
      %676 = vrot.lane.b32.xlu0 %v514, 120
      %v677 = vpop.permute.xlu0 %676
      %678 = vrot.lane.b32.xlu0 %v519, 120
      %v679 = vpop.permute.xlu0 %678
      %680 = vrot.lane.b32.xlu0 %v524, 120
      %v681 = vpop.permute.xlu0 %680
      %682 = vrot.lane.b32.xlu0 %v529, 120
      %v683 = vpop.permute.xlu0 %682
      %684 = vrot.lane.b32.xlu0 %v534, 120
      %v685 = vpop.permute.xlu0 %684
      %686 = vrot.lane.b32.xlu0 %v539, 120
      %v687 = vpop.permute.xlu0 %686
      %688 = vrot.lane.b32.xlu0 %v544, 120
      %v689 = vpop.permute.xlu0 %688
      %690 = vrot.lane.b32.xlu0 %v549, 120
      %v691 = vpop.permute.xlu0 %690
      %692 = vrot.lane.b32.xlu0 %v554, 120
      %v693 = vpop.permute.xlu0 %692
      %694 = vrot.lane.b32.xlu0 %v559, 120
      %v695 = vpop.permute.xlu0 %694
      %696 = vrot.lane.b32.xlu0 %v564, 120
      %v697 = vpop.permute.xlu0 %696
      %698 = vrot.lane.b32.xlu0 %v569, 120
      %v699 = vpop.permute.xlu0 %698
      %s732 = scalar_lea.vmem %s207, 16
      %733 = vst.msk [vmem:[%s732] sm:$0xff] %vm250, %v637
      %734 = vst.msk [vmem:[%s732 + $0x8] sm:$0xff] %vm250, %v639
      %735 = vst.msk [vmem:[%s732 + $0x20] sm:$0xff] %vm250, %v641
      %736 = vst.msk [vmem:[%s732 + $0x28] sm:$0xff] %vm250, %v643
      %737 = vst.msk [vmem:[%s732 + $0x40] sm:$0xff] %vm250, %v645
      %738 = vst.msk [vmem:[%s732 + $0x48] sm:$0xff] %vm250, %v647
      %739 = vst.msk [vmem:[%s732 + $0x60] sm:$0xff] %vm250, %v649
      %740 = vst.msk [vmem:[%s732 + $0x68] sm:$0xff] %vm250, %v651
      %741 = vst.msk [vmem:[%s732 + $0x80] sm:$0xff] %vm250, %v653
      %742 = vst.msk [vmem:[%s732 + $0x88] sm:$0xff] %vm250, %v655
      %743 = vst.msk [vmem:[%s732 + $0xa0] sm:$0xff] %vm250, %v657
      %744 = vst.msk [vmem:[%s732 + $0xa8] sm:$0xff] %vm250, %v659
      %745 = vst.msk [vmem:[%s732 + $0xc0] sm:$0xff] %vm250, %v661
      %746 = vst.msk [vmem:[%s732 + $0xc8] sm:$0xff] %vm250, %v663
      %747 = vst.msk [vmem:[%s732 + $0xe0] sm:$0xff] %vm250, %v665
      %748 = vst.msk [vmem:[%s732 + $0xe8] sm:$0xff] %vm250, %v667
      %749 = vst.msk [vmem:[%s732 + $0x100] sm:$0xff] %vm250, %v669
      %750 = vst.msk [vmem:[%s732 + $0x108] sm:$0xff] %vm250, %v671
      %751 = vst.msk [vmem:[%s732 + $0x120] sm:$0xff] %vm250, %v673
      %752 = vst.msk [vmem:[%s732 + $0x128] sm:$0xff] %vm250, %v675
      %753 = vst.msk [vmem:[%s732 + $0x140] sm:$0xff] %vm250, %v677
      %754 = vst.msk [vmem:[%s732 + $0x148] sm:$0xff] %vm250, %v679
      %755 = vst.msk [vmem:[%s732 + $0x160] sm:$0xff] %vm250, %v681
      %756 = vst.msk [vmem:[%s732 + $0x168] sm:$0xff] %vm250, %v683
      %757 = vst.msk [vmem:[%s732 + $0x180] sm:$0xff] %vm250, %v685
      %758 = vst.msk [vmem:[%s732 + $0x188] sm:$0xff] %vm250, %v687
      %759 = vst.msk [vmem:[%s732 + $0x1a0] sm:$0xff] %vm250, %v689
      %760 = vst.msk [vmem:[%s732 + $0x1a8] sm:$0xff] %vm250, %v691
      %761 = vst.msk [vmem:[%s732 + $0x1c0] sm:$0xff] %vm250, %v693
      %762 = vst.msk [vmem:[%s732 + $0x1c8] sm:$0xff] %vm250, %v695
      %763 = vst.msk [vmem:[%s732 + $0x1e0] sm:$0xff] %vm250, %v697
      %764 = vst.msk [vmem:[%s732 + $0x1e8] sm:$0xff] %vm250, %v699
      %s765 = sadd.s32 %s18, %s19
      %s766 = smul.u32 16, %s765
      %p767 = scmp.lt.s32.totalorder %s766, 31
      %s768 = scalar_select %p767, %s766, 31
      %s769 = smul.addr %s768, 4
      %s770 = smul.addr %s769, 8
      %s771 = scalar_lea.vmem %s3, %s770
      // Predicated region
      $region33: #{upsampling_forward.3} parent=31 // pred_check
        %p772 = pneg %p116
      $region34: #{upsampling_forward.3} parent=31 // pred_check_branch
        %774 = sbr.rel (%p772) target = $region36
      $region35: #{upsampling_forward.3} parent=31 // pred_region
        %s775 = sadd.s32 %s18, %s19
        %s776 = smul.u32 16, %s775
      $region36: #{upsampling_forward.3} parent=31 // pred_fallthru
        _
    $region32: #{upsampling_forward.3} parent=5 // pred_fallthru
      _
    %p777 = scmp.le.s32.totalorder 2, %s9
    // Predicated region
    $region37: #{upsampling_forward.3} parent=5 // pred_check
      %p778 = pneg %p777
    $region38: #{upsampling_forward.3} parent=5 // pred_check_branch
      %780 = sbr.rel (%p778) target = $region40
    $region39: #{upsampling_forward.3} parent=5 // pred_region
      %s781 = ssub.s32 %s9, 2
      // Predicated region
      $region41: #{upsampling_forward.3} parent=39 // pred_check
        %p782 = pneg %p122
      $region42: #{upsampling_forward.3} parent=39 // pred_check_branch
        %784 = sbr.rel (%p782) target = $region44
      $region43: #{upsampling_forward.3} parent=39 // pred_region
        %s785 = sadd.s32 %s20, %s21
        %s786 = smul.u32 16, %s785
        %p787 = scmp.lt.s32.totalorder %s786, 31
        %s788 = scalar_select %p787, %s786, 31
        %s789 = smul.addr %s788, 4
        %s790 = smul.addr %s789, 8
        %s791 = scalar_lea.vmem %s3, %s790
      $region44: #{upsampling_forward.3} parent=39 // pred_fallthru
        _
    $region40: #{upsampling_forward.3} parent=5 // pred_fallthru
      _
  $region6: #{upsampling_forward.3} parent=0 // loop_footer
    %s13 = sadd.s32 1, %s9
  $region7: #{upsampling_forward.3} parent=0 // loop_footer_branch
    %8 = sbr.rel target = $region3
  $region8: #{upsampling_forward.3} parent=0 // loop_exit
    _

// kernel: upsampling_forward.4
$region0: #{upsampling_forward.4}
  #allocation0 [shape = 'u32[]', space=smem, size = 0x4, offset = 0x4, fixed_abs, tag = 'smem constant byte address 0x4 - core index']
  #allocation1 [shape = 'u32[144,128]{1,0:T(1,128)}', space=vmem, size = 0x12000, scoped, tag = 'internal scratch']
  #allocation2 [shape = 'f32[10,34,8]{2,1,0:T(8,128)}', space=vmem, size = 0x32000, scoped, tag = 'scratch operand']
  #allocation3 [shape = 'f32[256,72]{1,0:T(8,128)}', space=vmem, size = 0x20000, scoped, tag = 'scratch operand']
  %s0 = inlined_call_operand.vmem [shape: f32[2,32,32,4], index: 0, kind: input, shape index: {}]
  %s1 = inlined_call_operand.vmem [shape: f32[2,32,32,4], index: 1, kind: input, shape index: {}]
  %s2 = inlined_call_operand.vmem [shape: f32[72,4], index: 2, kind: input, shape index: {}]
  %s3 = inlined_call_operand.vmem [shape: f32[1,4], index: 3, kind: input, shape index: {}]
  %s4 = inlined_call_operand.vmem [shape: f32[1,4], index: 4, kind: input, shape index: {}]
  %s5 = inlined_call_operand.vmem [shape: f32[2,32,32,4], index: 5, kind: output, shape index: {}]
  %s6 = sld [smem:[#allocation0]]
  $region61: #{upsampling_forward.4} parent=0
    _
  %s8 = ssub.s32 1, %s6
  %s9 = scalar_select 0, %s8, %s6
  loop: start=0, step=1, limit=10
  $region2: #{upsampling_forward.4} parent=0 // loop_pre_header
    _
  $region3: #{upsampling_forward.4} parent=0 // loop_header
    %s11 = sphi 0, %s15
    %p12 = scmp.ge.s32.totalorder %s11, 10
    %s18 = sphi 0, %s30
    %s19 = sphi 0, %s26
    %s20 = sphi 0, %s18
    %s21 = sphi 0, %s19
    %s22 = sphi 0, %s20
    %s23 = sphi 0, %s21
    %s33 = sphi 0, %s35
    %s36 = sphi 0, %s33
    %s37 = sphi 0, %s36
    %s53 = sphi 0, %s37
    %s59 = sphi 0, %s61
    %s62 = sphi 0, %s59
    %s63 = sphi 0, %s62
    %s79 = sphi 0, %s63
    %s83 = sphi 0, %s83
    %s85 = sphi 0, %s83
    %s86 = sphi 0, %s85
    %s100 = sphi 0, %s86
    %s104 = sphi 0, %s104
    %s106 = sphi 0, %s104
    %s107 = sphi 0, %s106
    %s121 = sphi 0, %s107
    %s125 = sphi 0, %s125
    %s127 = sphi 0, %s125
    %s128 = sphi 0, %s127
    %s142 = sphi 0, %s128
    %s150 = sphi 0, %s152
    %s153 = sphi 0, %s150
    %s154 = sphi 0, %s153
    %s170 = sphi 0, %s154
  $region4: #{upsampling_forward.4} parent=0 // loop_header_branch
    %14 = sbr.rel (%p12) target = $region8
  $region5: #{upsampling_forward.4} parent=0 // loop_body
    %s16 = ssub.s32 %s11, 1
    %s17 = ssub.s32 %s11, 2
    %s24 = sadd.s32 1, %s19
    %p25 = scmp.ge.s32.totalorder %s24, 4
    %s26 = scalar_select %p25, 0, %s24
    %s27 = sadd.s32 1, %s18
    %s28 = scalar_select %p25, %s27, %s18
    %p29 = scmp.ge.s32.totalorder %s28, 2
    %s30 = scalar_select %p29, 0, %s28
    %s31 = ssub.s32 %s18, %s30
    %p32 = scmp.eq.s32.totalorder %s31, 0
    %s34 = sadd.s32 %s33, 1
    %s35 = scalar_select %p32, %s33, %s34
    %p38 = pneg %p32
    %p39 = scmp.eq.s32.totalorder %s11, 7
    %p40 = por %p38, %p39
    %p41 = scmp.ne.s32.totalorder %s33, %s36
    %p42 = scmp.eq.s32.totalorder %s11, 0
    %p43 = por %p41, %p42
    %p44 = scmp.ne.s32.totalorder %s33, %s36
    %p45 = scmp.eq.s32.totalorder %s16, 7
    %p46 = por %p44, %p45
    %p47 = scmp.ne.s32.totalorder %s36, %s37
    %p48 = scmp.eq.s32.totalorder %s16, 0
    %p49 = por %p47, %p48
    %p50 = scmp.ne.s32.totalorder %s36, %s37
    %p51 = scmp.eq.s32.totalorder %s17, 7
    %p52 = por %p50, %p51
    %p54 = scmp.ne.s32.totalorder %s37, %s53
    %p55 = scmp.eq.s32.totalorder %s17, 0
    %p56 = por %p54, %p55
    %s57 = ssub.s32 %s18, %s30
    %p58 = scmp.eq.s32.totalorder %s57, 0
    %s60 = sadd.s32 %s59, 1
    %s61 = scalar_select %p58, %s59, %s60
    %p64 = pneg %p58
    %p65 = scmp.eq.s32.totalorder %s11, 7
    %p66 = por %p64, %p65
    %p67 = scmp.ne.s32.totalorder %s59, %s62
    %p68 = scmp.eq.s32.totalorder %s11, 0
    %p69 = por %p67, %p68
    %p70 = scmp.ne.s32.totalorder %s59, %s62
    %p71 = scmp.eq.s32.totalorder %s16, 7
    %p72 = por %p70, %p71
    %p73 = scmp.ne.s32.totalorder %s62, %s63
    %p74 = scmp.eq.s32.totalorder %s16, 0
    %p75 = por %p73, %p74
    %p76 = scmp.ne.s32.totalorder %s62, %s63
    %p77 = scmp.eq.s32.totalorder %s17, 7
    %p78 = por %p76, %p77
    %p80 = scmp.ne.s32.totalorder %s63, %s79
    %p81 = scmp.eq.s32.totalorder %s17, 0
    %p82 = por %p80, %p81
    %s84 = sadd.s32 %s83, 1
    %p87 = scmp.eq.s32.totalorder %s11, 7
    %p88 = scmp.ne.s32.totalorder %s83, %s85
    %p89 = scmp.eq.s32.totalorder %s11, 0
    %p90 = por %p88, %p89
    %p91 = scmp.ne.s32.totalorder %s83, %s85
    %p92 = scmp.eq.s32.totalorder %s16, 7
    %p93 = por %p91, %p92
    %p94 = scmp.ne.s32.totalorder %s85, %s86
    %p95 = scmp.eq.s32.totalorder %s16, 0
    %p96 = por %p94, %p95
    %p97 = scmp.ne.s32.totalorder %s85, %s86
    %p98 = scmp.eq.s32.totalorder %s17, 7
    %p99 = por %p97, %p98
    %p101 = scmp.ne.s32.totalorder %s86, %s100
    %p102 = scmp.eq.s32.totalorder %s17, 0
    %p103 = por %p101, %p102
    %s105 = sadd.s32 %s104, 1
    %p108 = scmp.eq.s32.totalorder %s11, 7
    %p109 = scmp.ne.s32.totalorder %s104, %s106
    %p110 = scmp.eq.s32.totalorder %s11, 0
    %p111 = por %p109, %p110
    %p112 = scmp.ne.s32.totalorder %s104, %s106
    %p113 = scmp.eq.s32.totalorder %s16, 7
    %p114 = por %p112, %p113
    %p115 = scmp.ne.s32.totalorder %s106, %s107
    %p116 = scmp.eq.s32.totalorder %s16, 0
    %p117 = por %p115, %p116
    %p118 = scmp.ne.s32.totalorder %s106, %s107
    %p119 = scmp.eq.s32.totalorder %s17, 7
    %p120 = por %p118, %p119
    %p122 = scmp.ne.s32.totalorder %s107, %s121
    %p123 = scmp.eq.s32.totalorder %s17, 0
    %p124 = por %p122, %p123
    %s126 = sadd.s32 %s125, 1
    %p129 = scmp.eq.s32.totalorder %s11, 7
    %p130 = scmp.ne.s32.totalorder %s125, %s127
    %p131 = scmp.eq.s32.totalorder %s11, 0
    %p132 = por %p130, %p131
    %p133 = scmp.ne.s32.totalorder %s125, %s127
    %p134 = scmp.eq.s32.totalorder %s16, 7
    %p135 = por %p133, %p134
    %p136 = scmp.ne.s32.totalorder %s127, %s128
    %p137 = scmp.eq.s32.totalorder %s16, 0
    %p138 = por %p136, %p137
    %p139 = scmp.ne.s32.totalorder %s127, %s128
    %p140 = scmp.eq.s32.totalorder %s17, 7
    %p141 = por %p139, %p140
    %p143 = scmp.ne.s32.totalorder %s128, %s142
    %p144 = scmp.eq.s32.totalorder %s17, 0
    %p145 = por %p143, %p144
    %s146 = ssub.s32 %s18, %s30
    %s147 = ssub.s32 %s19, %s26
    %s148 = sor.u32 %s146, %s147
    %p149 = scmp.eq.s32.totalorder %s148, 0
    %s151 = sadd.s32 %s150, 1
    %s152 = scalar_select %p149, %s150, %s151
    %p155 = pneg %p149
    %p156 = scmp.eq.s32.totalorder %s11, 7
    %p157 = por %p155, %p156
    %p158 = scmp.ne.s32.totalorder %s150, %s153
    %p159 = scmp.eq.s32.totalorder %s11, 0
    %p160 = por %p158, %p159
    %p161 = scmp.ne.s32.totalorder %s150, %s153
    %p162 = scmp.eq.s32.totalorder %s16, 7
    %p163 = por %p161, %p162
    %p164 = scmp.ne.s32.totalorder %s153, %s154
    %p165 = scmp.eq.s32.totalorder %s16, 0
    %p166 = por %p164, %p165
    %p167 = scmp.ne.s32.totalorder %s153, %s154
    %p168 = scmp.eq.s32.totalorder %s17, 7
    %p169 = por %p167, %p168
    %p171 = scmp.ne.s32.totalorder %s154, %s170
    %p172 = scmp.eq.s32.totalorder %s17, 0
    %p173 = por %p171, %p172
    %p174 = scmp.le.s32.totalorder 1, %s11
    %p175 = scmp.lt.s32.totalorder %s11, 9
    %p176 = pnand %p174, %p175
    %p177 = pneg %p176
    // Predicated region
    $region9: #{upsampling_forward.4} parent=5 // pred_check
      _
    $region10: #{upsampling_forward.4} parent=5 // pred_check_branch
      %179 = sbr.rel (%p176) target = $region12
    $region11: #{upsampling_forward.4} parent=5 // pred_region
      %s180 = ssub.s32 %s11, 1
      // Predicated region
      $region13: #{upsampling_forward.4} parent=11 // pred_check
        %p181 = pneg %p96
      $region14: #{upsampling_forward.4} parent=11 // pred_check_branch
        %183 = sbr.rel (%p181) target = $region16
      $region15: #{upsampling_forward.4} parent=11 // pred_region
        _
      $region16: #{upsampling_forward.4} parent=11 // pred_fallthru
        _
      // Predicated region
      $region17: #{upsampling_forward.4} parent=11 // pred_check
        %p184 = pneg %p117
      $region18: #{upsampling_forward.4} parent=11 // pred_check_branch
        %186 = sbr.rel (%p184) target = $region20
      $region19: #{upsampling_forward.4} parent=11 // pred_region
        _
      $region20: #{upsampling_forward.4} parent=11 // pred_fallthru
        _
      // Predicated region
      $region21: #{upsampling_forward.4} parent=11 // pred_check
        %p187 = pneg %p138
      $region22: #{upsampling_forward.4} parent=11 // pred_check_branch
        %189 = sbr.rel (%p187) target = $region24
      $region23: #{upsampling_forward.4} parent=11 // pred_region
        _
      $region24: #{upsampling_forward.4} parent=11 // pred_fallthru
        _
    $region12: #{upsampling_forward.4} parent=5 // pred_fallthru
      _
    %p190 = scmp.lt.s32.totalorder %s11, 8
    // Predicated region
    $region25: #{upsampling_forward.4} parent=5 // pred_check
      %p191 = pneg %p190
    $region26: #{upsampling_forward.4} parent=5 // pred_check_branch
      %193 = sbr.rel (%p191) target = $region28
    $region27: #{upsampling_forward.4} parent=5 // pred_region
      // Predicated region
      $region29: #{upsampling_forward.4} parent=27 // pred_check
        %p194 = pneg %p43
      $region30: #{upsampling_forward.4} parent=27 // pred_check_branch
        %196 = sbr.rel (%p194) target = $region32
      $region31: #{upsampling_forward.4} parent=27 // pred_region
        %p197 = scmp.lt.s32.totalorder %s18, 1
        %s198 = scalar_select %p197, %s18, 1
        %s199 = smul.addr %s198, 128
        %s200 = smul.addr %s199, 8
        %s201 = scalar_lea.vmem %s0, %s200
      $region32: #{upsampling_forward.4} parent=27 // pred_fallthru
        _
      // Predicated region
      $region33: #{upsampling_forward.4} parent=27 // pred_check
        %p202 = pneg %p69
      $region34: #{upsampling_forward.4} parent=27 // pred_check_branch
        %204 = sbr.rel (%p202) target = $region36
      $region35: #{upsampling_forward.4} parent=27 // pred_region
        %p205 = scmp.lt.s32.totalorder %s18, 1
        %s206 = scalar_select %p205, %s18, 1
        %s207 = smul.addr %s206, 128
        %s208 = smul.addr %s207, 8
        %s209 = scalar_lea.vmem %s1, %s208
      $region36: #{upsampling_forward.4} parent=27 // pred_fallthru
        _
    $region28: #{upsampling_forward.4} parent=5 // pred_fallthru
      _
    %p210 = scmp.le.s32.totalorder 1, %s11
    %p211 = scmp.lt.s32.totalorder %s11, 9
    %p212 = pnand %p210, %p211
    %p213 = pneg %p212
    // Predicated region
    $region37: #{upsampling_forward.4} parent=5 // pred_check
      _
    $region38: #{upsampling_forward.4} parent=5 // pred_check_branch
      %215 = sbr.rel (%p212) target = $region40
    $region39: #{upsampling_forward.4} parent=5 // pred_region
      %s216 = ssub.s32 %s11, 1
      %p217 = scmp.lt.s32.totalorder %s20, 1
      %s218 = scalar_select %p217, %s20, 1
      %s219 = smul.addr %s218, 128
      %s220 = smul.addr %s219, 8
      %s221 = scalar_lea.vmem %s0, %s220
      %p222 = pneg %p49
      %p223 = pneg %p46
      %p224 = scmp.lt.s32.totalorder %s20, 1
      %s225 = scalar_select %p224, %s20, 1
      %s226 = smul.addr %s225, 128
      %s227 = smul.addr %s226, 8
      %s228 = scalar_lea.vmem %s1, %s227
      %p229 = pneg %p75
      %p230 = pneg %p72
      %p231 = pneg %p96
      %p232 = pneg %p93
      %p233 = pneg %p117
      %p234 = pneg %p114
      %p235 = pneg %p138
      %p236 = pneg %p135
      %p237 = pneg %p166
      %p238 = pneg %p163
      %s239 = smul.u32 8, %s21
      %p240 = scmp.lt.s32.totalorder %s20, 1
      %s241 = scalar_select %p240, %s20, 1
      %p242 = scmp.lt.s32.totalorder %s239, 31
      %s243 = scalar_select %p242, %s239, 31
      %s244 = smul.addr %s243, 4
      %s245 = smul.addr %s241, 128
      %s246 = sadd.s32 %s244, %s245
      %s247 = smul.addr %s246, 8
      %s248 = scalar_lea.vmem %s5, %s247
      %p249 = scmp.lt.s32.totalorder %s20, 1
      %s250 = scalar_select %p249, %s20, 1
      %s251 = smul.addr %s250, 128
      %s252 = smul.addr %s251, 8
      %s253 = scalar_lea.vmem %s0, %s252
      %p254 = scmp.lt.s32.totalorder %s20, 1
      %s255 = scalar_select %p254, %s20, 1
      %s256 = smul.addr %s255, 128
      %s257 = smul.addr %s256, 8
      %s258 = scalar_lea.vmem %s1, %s257
      %s259 = smul.u32 8, %s21
      %p260 = scmp.lt.s32.totalorder %s20, 1
      %s261 = scalar_select %p260, %s20, 1
      %p262 = scmp.lt.s32.totalorder %s259, 31
      %s263 = scalar_select %p262, %s259, 31
      %s264 = smul.addr %s263, 4
      %s265 = smul.addr %s261, 128
      %s266 = sadd.s32 %s264, %s265
      %s267 = smul.addr %s266, 8
      %s268 = scalar_lea.vmem %s5, %s267
      %s269 = smul.u32 8, %s21
      %s270 = smul.u32 %s21, 8
      %vm271 = vcmask 64512
      %272 = vst.msk [vmem:[#allocation2] sm:$0xff] %vm271, 0.0
      %273 = vst.msk [vmem:[#allocation2 + $0x8] sm:$0xff] %vm271, 0.0
      %274 = vst.msk [vmem:[#allocation2 + $0x10] sm:$0xff] %vm271, 0.0
      %275 = vst.msk [vmem:[#allocation2 + $0x18] sm:$0xff] %vm271, 0.0
      %vm276 = vcmask 58368
      %277 = vst.msk [vmem:[#allocation2 + $0x20] sm:$0x3] %vm276, 0.0
      %278 = vst.msk [vmem:[#allocation2 + $0x28] sm:$0xff] %vm271, 0.0
      %279 = vst.msk [vmem:[#allocation2 + $0x30] sm:$0xff] %vm271, 0.0
      %280 = vst.msk [vmem:[#allocation2 + $0x38] sm:$0xff] %vm271, 0.0
      %281 = vst.msk [vmem:[#allocation2 + $0x40] sm:$0xff] %vm271, 0.0
      %282 = vst.msk [vmem:[#allocation2 + $0x48] sm:$0x3] %vm276, 0.0
      %283 = vst.msk [vmem:[#allocation2 + $0x50] sm:$0xff] %vm271, 0.0
      %284 = vst.msk [vmem:[#allocation2 + $0x58] sm:$0xff] %vm271, 0.0
      %285 = vst.msk [vmem:[#allocation2 + $0x60] sm:$0xff] %vm271, 0.0
      %286 = vst.msk [vmem:[#allocation2 + $0x68] sm:$0xff] %vm271, 0.0
      %287 = vst.msk [vmem:[#allocation2 + $0x70] sm:$0x3] %vm276, 0.0
      %288 = vst.msk [vmem:[#allocation2 + $0x78] sm:$0xff] %vm271, 0.0
      %289 = vst.msk [vmem:[#allocation2 + $0x80] sm:$0xff] %vm271, 0.0
      %290 = vst.msk [vmem:[#allocation2 + $0x88] sm:$0xff] %vm271, 0.0
      %291 = vst.msk [vmem:[#allocation2 + $0x90] sm:$0xff] %vm271, 0.0
      %292 = vst.msk [vmem:[#allocation2 + $0x98] sm:$0x3] %vm276, 0.0
      %293 = vst.msk [vmem:[#allocation2 + $0xa0] sm:$0xff] %vm271, 0.0
      %294 = vst.msk [vmem:[#allocation2 + $0xa8] sm:$0xff] %vm271, 0.0
      %295 = vst.msk [vmem:[#allocation2 + $0xb0] sm:$0xff] %vm271, 0.0
      %296 = vst.msk [vmem:[#allocation2 + $0xb8] sm:$0xff] %vm271, 0.0
      %297 = vst.msk [vmem:[#allocation2 + $0xc0] sm:$0x3] %vm276, 0.0
      %298 = vst.msk [vmem:[#allocation2 + $0xc8] sm:$0xff] %vm271, 0.0
      %299 = vst.msk [vmem:[#allocation2 + $0xd0] sm:$0xff] %vm271, 0.0
      %300 = vst.msk [vmem:[#allocation2 + $0xd8] sm:$0xff] %vm271, 0.0
      %301 = vst.msk [vmem:[#allocation2 + $0xe0] sm:$0xff] %vm271, 0.0
      %302 = vst.msk [vmem:[#allocation2 + $0xe8] sm:$0x3] %vm276, 0.0
      %303 = vst.msk [vmem:[#allocation2 + $0xf0] sm:$0xff] %vm271, 0.0
      %304 = vst.msk [vmem:[#allocation2 + $0xf8] sm:$0xff] %vm271, 0.0
      %305 = vst.msk [vmem:[#allocation2 + $0x100] sm:$0xff] %vm271, 0.0
      %306 = vst.msk [vmem:[#allocation2 + $0x108] sm:$0xff] %vm271, 0.0
      %307 = vst.msk [vmem:[#allocation2 + $0x110] sm:$0x3] %vm276, 0.0
      %308 = vst.msk [vmem:[#allocation2 + $0x118] sm:$0xff] %vm271, 0.0
      %309 = vst.msk [vmem:[#allocation2 + $0x120] sm:$0xff] %vm271, 0.0
      %310 = vst.msk [vmem:[#allocation2 + $0x128] sm:$0xff] %vm271, 0.0
      %311 = vst.msk [vmem:[#allocation2 + $0x130] sm:$0xff] %vm271, 0.0
      %312 = vst.msk [vmem:[#allocation2 + $0x138] sm:$0x3] %vm276, 0.0
      %313 = vst.msk [vmem:[#allocation2 + $0x140] sm:$0xff] %vm271, 0.0
      %314 = vst.msk [vmem:[#allocation2 + $0x148] sm:$0xff] %vm271, 0.0
      %315 = vst.msk [vmem:[#allocation2 + $0x150] sm:$0xff] %vm271, 0.0
      %316 = vst.msk [vmem:[#allocation2 + $0x158] sm:$0xff] %vm271, 0.0
      %317 = vst.msk [vmem:[#allocation2 + $0x160] sm:$0x3] %vm276, 0.0
      %318 = vst.msk [vmem:[#allocation2 + $0x168] sm:$0xff] %vm271, 0.0
      %319 = vst.msk [vmem:[#allocation2 + $0x170] sm:$0xff] %vm271, 0.0
      %320 = vst.msk [vmem:[#allocation2 + $0x178] sm:$0xff] %vm271, 0.0
      %321 = vst.msk [vmem:[#allocation2 + $0x180] sm:$0xff] %vm271, 0.0
      %322 = vst.msk [vmem:[#allocation2 + $0x188] sm:$0x3] %vm276, 0.0
      %s323 = smul.u32 %s270, 32
      %s324 = scalar_lea.vmem %s253, %s323
      %v325 = vld [vmem:[%s324] sm:$0xff]
      %v326 = vld [vmem:[%s324 + $0x8] sm:$0xff]
      %v327 = vld [vmem:[%s324 + $0x10] sm:$0xff]
      %v328 = vld [vmem:[%s324 + $0x18] sm:$0xff]
      %v329 = vld [vmem:[%s324 + $0x20] sm:$0xff]
      %v330 = vld [vmem:[%s324 + $0x28] sm:$0xff]
      %v331 = vld [vmem:[%s324 + $0x30] sm:$0xff]
      %v332 = vld [vmem:[%s324 + $0x38] sm:$0xff]
      %v333 = vld [vmem:[%s324 + $0x40] sm:$0xff]
      %v334 = vld [vmem:[%s324 + $0x48] sm:$0xff]
      %v335 = vld [vmem:[%s324 + $0x50] sm:$0xff]
      %v336 = vld [vmem:[%s324 + $0x58] sm:$0xff]
      %v337 = vld [vmem:[%s324 + $0x60] sm:$0xff]
      %v338 = vld [vmem:[%s324 + $0x68] sm:$0xff]
      %v339 = vld [vmem:[%s324 + $0x70] sm:$0xff]
      %v340 = vld [vmem:[%s324 + $0x78] sm:$0xff]
      %v341 = vld [vmem:[%s324 + $0x80] sm:$0xff]
      %v342 = vld [vmem:[%s324 + $0x88] sm:$0xff]
      %v343 = vld [vmem:[%s324 + $0x90] sm:$0xff]
      %v344 = vld [vmem:[%s324 + $0x98] sm:$0xff]
      %v345 = vld [vmem:[%s324 + $0xa0] sm:$0xff]
      %v346 = vld [vmem:[%s324 + $0xa8] sm:$0xff]
      %v347 = vld [vmem:[%s324 + $0xb0] sm:$0xff]
      %v348 = vld [vmem:[%s324 + $0xb8] sm:$0xff]
      %v349 = vld [vmem:[%s324 + $0xc0] sm:$0xff]
      %v350 = vld [vmem:[%s324 + $0xc8] sm:$0xff]
      %v351 = vld [vmem:[%s324 + $0xd0] sm:$0xff]
      %v352 = vld [vmem:[%s324 + $0xd8] sm:$0xff]
      %v353 = vld [vmem:[%s324 + $0xe0] sm:$0xff]
      %v354 = vld [vmem:[%s324 + $0xe8] sm:$0xff]
      %v355 = vld [vmem:[%s324 + $0xf0] sm:$0xff]
      %v356 = vld [vmem:[%s324 + $0xf8] sm:$0xff]
      %s357 = scalar_lea.vmem [#allocation2], 40
      %vm358 = vcmask 31744
      %359 = vst.msk [vmem:[%s357 + $0x1] sm:$0xff] %vm358, %v325
      %360 = vst.msk [vmem:[%s357 + $0x9] sm:$0xff] %vm358, %v326
      %361 = vst.msk [vmem:[%s357 + $0x11] sm:$0xff] %vm358, %v327
      %362 = vst.msk [vmem:[%s357 + $0x19] sm:$0xff] %vm358, %v328
      %363 = vst.msk [vmem:[%s357 + $0x29] sm:$0xff] %vm358, %v329
      %364 = vst.msk [vmem:[%s357 + $0x31] sm:$0xff] %vm358, %v330
      %365 = vst.msk [vmem:[%s357 + $0x39] sm:$0xff] %vm358, %v331
      %366 = vst.msk [vmem:[%s357 + $0x41] sm:$0xff] %vm358, %v332
      %367 = vst.msk [vmem:[%s357 + $0x51] sm:$0xff] %vm358, %v333
      %368 = vst.msk [vmem:[%s357 + $0x59] sm:$0xff] %vm358, %v334
      %369 = vst.msk [vmem:[%s357 + $0x61] sm:$0xff] %vm358, %v335
      %370 = vst.msk [vmem:[%s357 + $0x69] sm:$0xff] %vm358, %v336
      %371 = vst.msk [vmem:[%s357 + $0x79] sm:$0xff] %vm358, %v337
      %372 = vst.msk [vmem:[%s357 + $0x81] sm:$0xff] %vm358, %v338
      %373 = vst.msk [vmem:[%s357 + $0x89] sm:$0xff] %vm358, %v339
      %374 = vst.msk [vmem:[%s357 + $0x91] sm:$0xff] %vm358, %v340
      %375 = vst.msk [vmem:[%s357 + $0xa1] sm:$0xff] %vm358, %v341
      %376 = vst.msk [vmem:[%s357 + $0xa9] sm:$0xff] %vm358, %v342
      %377 = vst.msk [vmem:[%s357 + $0xb1] sm:$0xff] %vm358, %v343
      %378 = vst.msk [vmem:[%s357 + $0xb9] sm:$0xff] %vm358, %v344
      %379 = vst.msk [vmem:[%s357 + $0xc9] sm:$0xff] %vm358, %v345
      %380 = vst.msk [vmem:[%s357 + $0xd1] sm:$0xff] %vm358, %v346
      %381 = vst.msk [vmem:[%s357 + $0xd9] sm:$0xff] %vm358, %v347
      %382 = vst.msk [vmem:[%s357 + $0xe1] sm:$0xff] %vm358, %v348
      %383 = vst.msk [vmem:[%s357 + $0xf1] sm:$0xff] %vm358, %v349
      %384 = vst.msk [vmem:[%s357 + $0xf9] sm:$0xff] %vm358, %v350
      %385 = vst.msk [vmem:[%s357 + $0x101] sm:$0xff] %vm358, %v351
      %386 = vst.msk [vmem:[%s357 + $0x109] sm:$0xff] %vm358, %v352
      %387 = vst.msk [vmem:[%s357 + $0x119] sm:$0xff] %vm358, %v353
      %388 = vst.msk [vmem:[%s357 + $0x121] sm:$0xff] %vm358, %v354
      %389 = vst.msk [vmem:[%s357 + $0x129] sm:$0xff] %vm358, %v355
      %390 = vst.msk [vmem:[%s357 + $0x131] sm:$0xff] %vm358, %v356
      %s391 = scalar_lea.vmem %s258, %s323
      %v392 = vld [vmem:[%s391] sm:$0xff]
      %v393 = vld [vmem:[%s391 + $0x8] sm:$0xff]
      %v394 = vld [vmem:[%s391 + $0x10] sm:$0xff]
      %v395 = vld [vmem:[%s391 + $0x18] sm:$0xff]
      %v396 = vld [vmem:[%s391 + $0x20] sm:$0xff]
      %v397 = vld [vmem:[%s391 + $0x28] sm:$0xff]
      %v398 = vld [vmem:[%s391 + $0x30] sm:$0xff]
      %v399 = vld [vmem:[%s391 + $0x38] sm:$0xff]
      %v400 = vld [vmem:[%s391 + $0x40] sm:$0xff]
      %v401 = vld [vmem:[%s391 + $0x48] sm:$0xff]
      %v402 = vld [vmem:[%s391 + $0x50] sm:$0xff]
      %v403 = vld [vmem:[%s391 + $0x58] sm:$0xff]
      %v404 = vld [vmem:[%s391 + $0x60] sm:$0xff]
      %v405 = vld [vmem:[%s391 + $0x68] sm:$0xff]
      %v406 = vld [vmem:[%s391 + $0x70] sm:$0xff]
      %v407 = vld [vmem:[%s391 + $0x78] sm:$0xff]
      %v408 = vld [vmem:[%s391 + $0x80] sm:$0xff]
      %v409 = vld [vmem:[%s391 + $0x88] sm:$0xff]
      %v410 = vld [vmem:[%s391 + $0x90] sm:$0xff]
      %v411 = vld [vmem:[%s391 + $0x98] sm:$0xff]
      %v412 = vld [vmem:[%s391 + $0xa0] sm:$0xff]
      %v413 = vld [vmem:[%s391 + $0xa8] sm:$0xff]
      %v414 = vld [vmem:[%s391 + $0xb0] sm:$0xff]
      %v415 = vld [vmem:[%s391 + $0xb8] sm:$0xff]
      %v416 = vld [vmem:[%s391 + $0xc0] sm:$0xff]
      %v417 = vld [vmem:[%s391 + $0xc8] sm:$0xff]
      %v418 = vld [vmem:[%s391 + $0xd0] sm:$0xff]
      %v419 = vld [vmem:[%s391 + $0xd8] sm:$0xff]
      %v420 = vld [vmem:[%s391 + $0xe0] sm:$0xff]
      %v421 = vld [vmem:[%s391 + $0xe8] sm:$0xff]
      %v422 = vld [vmem:[%s391 + $0xf0] sm:$0xff]
      %v423 = vld [vmem:[%s391 + $0xf8] sm:$0xff]
      %456 = vrot.lane.b32.xlu0 %v392, 4
      %v457 = vpop.permute.xlu0 %456
      %458 = vrot.lane.b32.xlu0 %v393, 4
      %v459 = vpop.permute.xlu0 %458
      %460 = vrot.lane.b32.xlu0 %v394, 4
      %v461 = vpop.permute.xlu0 %460
      %462 = vrot.lane.b32.xlu0 %v395, 4
      %v463 = vpop.permute.xlu0 %462
      %464 = vrot.lane.b32.xlu0 %v396, 4
      %v465 = vpop.permute.xlu0 %464
      %466 = vrot.lane.b32.xlu0 %v397, 4
      %v467 = vpop.permute.xlu0 %466
      %468 = vrot.lane.b32.xlu0 %v398, 4
      %v469 = vpop.permute.xlu0 %468
      %470 = vrot.lane.b32.xlu0 %v399, 4
      %v471 = vpop.permute.xlu0 %470
      %472 = vrot.lane.b32.xlu0 %v400, 4
      %v473 = vpop.permute.xlu0 %472
      %474 = vrot.lane.b32.xlu0 %v401, 4
      %v475 = vpop.permute.xlu0 %474
      %476 = vrot.lane.b32.xlu0 %v402, 4
      %v477 = vpop.permute.xlu0 %476
      %478 = vrot.lane.b32.xlu0 %v403, 4
      %v479 = vpop.permute.xlu0 %478
      %480 = vrot.lane.b32.xlu0 %v404, 4
      %v481 = vpop.permute.xlu0 %480
      %482 = vrot.lane.b32.xlu0 %v405, 4
      %v483 = vpop.permute.xlu0 %482
      %484 = vrot.lane.b32.xlu0 %v406, 4
      %v485 = vpop.permute.xlu0 %484
      %486 = vrot.lane.b32.xlu0 %v407, 4
      %v487 = vpop.permute.xlu0 %486
      %488 = vrot.lane.b32.xlu0 %v408, 4
      %v489 = vpop.permute.xlu0 %488
      %490 = vrot.lane.b32.xlu0 %v409, 4
      %v491 = vpop.permute.xlu0 %490
      %492 = vrot.lane.b32.xlu0 %v410, 4
      %v493 = vpop.permute.xlu0 %492
      %494 = vrot.lane.b32.xlu0 %v411, 4
      %v495 = vpop.permute.xlu0 %494
      %496 = vrot.lane.b32.xlu0 %v412, 4
      %v497 = vpop.permute.xlu0 %496
      %498 = vrot.lane.b32.xlu0 %v413, 4
      %v499 = vpop.permute.xlu0 %498
      %500 = vrot.lane.b32.xlu0 %v414, 4
      %v501 = vpop.permute.xlu0 %500
      %502 = vrot.lane.b32.xlu0 %v415, 4
      %v503 = vpop.permute.xlu0 %502
      %504 = vrot.lane.b32.xlu0 %v416, 4
      %v505 = vpop.permute.xlu0 %504
      %506 = vrot.lane.b32.xlu0 %v417, 4
      %v507 = vpop.permute.xlu0 %506
      %508 = vrot.lane.b32.xlu0 %v418, 4
      %v509 = vpop.permute.xlu0 %508
      %510 = vrot.lane.b32.xlu0 %v419, 4
      %v511 = vpop.permute.xlu0 %510
      %512 = vrot.lane.b32.xlu0 %v420, 4
      %v513 = vpop.permute.xlu0 %512
      %514 = vrot.lane.b32.xlu0 %v421, 4
      %v515 = vpop.permute.xlu0 %514
      %516 = vrot.lane.b32.xlu0 %v422, 4
      %v517 = vpop.permute.xlu0 %516
      %518 = vrot.lane.b32.xlu0 %v423, 4
      %v519 = vpop.permute.xlu0 %518
      %vm552 = vcmask 64544
      %553 = vst.msk [vmem:[%s357 + $0x1] sm:$0xff] %vm552, %v457
      %554 = vst.msk [vmem:[%s357 + $0x9] sm:$0xff] %vm552, %v459
      %555 = vst.msk [vmem:[%s357 + $0x11] sm:$0xff] %vm552, %v461
      %556 = vst.msk [vmem:[%s357 + $0x19] sm:$0xff] %vm552, %v463
      %557 = vst.msk [vmem:[%s357 + $0x29] sm:$0xff] %vm552, %v465
      %558 = vst.msk [vmem:[%s357 + $0x31] sm:$0xff] %vm552, %v467
      %559 = vst.msk [vmem:[%s357 + $0x39] sm:$0xff] %vm552, %v469
      %560 = vst.msk [vmem:[%s357 + $0x41] sm:$0xff] %vm552, %v471
      %561 = vst.msk [vmem:[%s357 + $0x51] sm:$0xff] %vm552, %v473
      %562 = vst.msk [vmem:[%s357 + $0x59] sm:$0xff] %vm552, %v475
      %563 = vst.msk [vmem:[%s357 + $0x61] sm:$0xff] %vm552, %v477
      %564 = vst.msk [vmem:[%s357 + $0x69] sm:$0xff] %vm552, %v479
      %565 = vst.msk [vmem:[%s357 + $0x79] sm:$0xff] %vm552, %v481
      %566 = vst.msk [vmem:[%s357 + $0x81] sm:$0xff] %vm552, %v483
      %567 = vst.msk [vmem:[%s357 + $0x89] sm:$0xff] %vm552, %v485
      %568 = vst.msk [vmem:[%s357 + $0x91] sm:$0xff] %vm552, %v487
      %569 = vst.msk [vmem:[%s357 + $0xa1] sm:$0xff] %vm552, %v489
      %570 = vst.msk [vmem:[%s357 + $0xa9] sm:$0xff] %vm552, %v491
      %571 = vst.msk [vmem:[%s357 + $0xb1] sm:$0xff] %vm552, %v493
      %572 = vst.msk [vmem:[%s357 + $0xb9] sm:$0xff] %vm552, %v495
      %573 = vst.msk [vmem:[%s357 + $0xc9] sm:$0xff] %vm552, %v497
      %574 = vst.msk [vmem:[%s357 + $0xd1] sm:$0xff] %vm552, %v499
      %575 = vst.msk [vmem:[%s357 + $0xd9] sm:$0xff] %vm552, %v501
      %576 = vst.msk [vmem:[%s357 + $0xe1] sm:$0xff] %vm552, %v503
      %577 = vst.msk [vmem:[%s357 + $0xf1] sm:$0xff] %vm552, %v505
      %578 = vst.msk [vmem:[%s357 + $0xf9] sm:$0xff] %vm552, %v507
      %579 = vst.msk [vmem:[%s357 + $0x101] sm:$0xff] %vm552, %v509
      %580 = vst.msk [vmem:[%s357 + $0x109] sm:$0xff] %vm552, %v511
      %581 = vst.msk [vmem:[%s357 + $0x119] sm:$0xff] %vm552, %v513
      %582 = vst.msk [vmem:[%s357 + $0x121] sm:$0xff] %vm552, %v515
      %583 = vst.msk [vmem:[%s357 + $0x129] sm:$0xff] %vm552, %v517
      %584 = vst.msk [vmem:[%s357 + $0x131] sm:$0xff] %vm552, %v519
      %p585 = scmp.gt.s32.totalorder %s21, 0
      // Predicated region
      $region41: #{upsampling_forward.4} parent=39 // pred_check
        %p586 = pneg %p585
      $region42: #{upsampling_forward.4} parent=39 // pred_check_branch
        %588 = sbr.rel (%p586) target = $region44
      $region43: #{upsampling_forward.4} parent=39 // pred_region
        %s589 = ssub.s32 %s270, 1
        %s590 = smul.u32 %s589, 32
        %s591 = scalar_lea.vmem %s253, %s590
        %v592 = vld [vmem:[%s591] sm:$0xff]
        %v593 = vld [vmem:[%s591 + $0x8] sm:$0xff]
        %v594 = vld [vmem:[%s591 + $0x10] sm:$0xff]
        %v595 = vld [vmem:[%s591 + $0x18] sm:$0xff]
        %596 = vst.msk [vmem:[#allocation2 + $0x1] sm:$0xff] %vm358, %v592
        %597 = vst.msk [vmem:[#allocation2 + $0x9] sm:$0xff] %vm358, %v593
        %598 = vst.msk [vmem:[#allocation2 + $0x11] sm:$0xff] %vm358, %v594
        %599 = vst.msk [vmem:[#allocation2 + $0x19] sm:$0xff] %vm358, %v595
        %s600 = scalar_lea.vmem %s258, %s590
        %v601 = vld [vmem:[%s600] sm:$0xff]
        %v602 = vld [vmem:[%s600 + $0x8] sm:$0xff]
        %v603 = vld [vmem:[%s600 + $0x10] sm:$0xff]
        %v604 = vld [vmem:[%s600 + $0x18] sm:$0xff]
        %609 = vrot.lane.b32.xlu0 %v601, 4
        %v610 = vpop.permute.xlu0 %609
        %611 = vrot.lane.b32.xlu0 %v602, 4
        %v612 = vpop.permute.xlu0 %611
        %613 = vrot.lane.b32.xlu0 %v603, 4
        %v614 = vpop.permute.xlu0 %613
        %615 = vrot.lane.b32.xlu0 %v604, 4
        %v616 = vpop.permute.xlu0 %615
        %621 = vst.msk [vmem:[#allocation2 + $0x1] sm:$0xff] %vm552, %v610
        %622 = vst.msk [vmem:[#allocation2 + $0x9] sm:$0xff] %vm552, %v612
        %623 = vst.msk [vmem:[#allocation2 + $0x11] sm:$0xff] %vm552, %v614
        %624 = vst.msk [vmem:[#allocation2 + $0x19] sm:$0xff] %vm552, %v616
      $region44: #{upsampling_forward.4} parent=39 // pred_fallthru
        _
      %p625 = scmp.lt.s32.totalorder %s21, 3
      // Predicated region
      $region45: #{upsampling_forward.4} parent=39 // pred_check
        %p626 = pneg %p625
      $region46: #{upsampling_forward.4} parent=39 // pred_check_branch
        %628 = sbr.rel (%p626) target = $region48
      $region47: #{upsampling_forward.4} parent=39 // pred_region
        %s629 = sadd.s32 %s270, 8
        %s630 = smul.u32 %s629, 32
        %s631 = scalar_lea.vmem %s253, %s630
        %v632 = vld [vmem:[%s631] sm:$0xff]
        %v633 = vld [vmem:[%s631 + $0x8] sm:$0xff]
        %v634 = vld [vmem:[%s631 + $0x10] sm:$0xff]
        %v635 = vld [vmem:[%s631 + $0x18] sm:$0xff]
        %s636 = scalar_lea.vmem [#allocation2], 360
        %637 = vst.msk [vmem:[%s636 + $0x1] sm:$0xff] %vm358, %v632
        %638 = vst.msk [vmem:[%s636 + $0x9] sm:$0xff] %vm358, %v633
        %639 = vst.msk [vmem:[%s636 + $0x11] sm:$0xff] %vm358, %v634
        %640 = vst.msk [vmem:[%s636 + $0x19] sm:$0xff] %vm358, %v635
        %s641 = scalar_lea.vmem %s258, %s630
        %v642 = vld [vmem:[%s641] sm:$0xff]
        %v643 = vld [vmem:[%s641 + $0x8] sm:$0xff]
        %v644 = vld [vmem:[%s641 + $0x10] sm:$0xff]
        %v645 = vld [vmem:[%s641 + $0x18] sm:$0xff]
        %650 = vrot.lane.b32.xlu0 %v642, 4
        %v651 = vpop.permute.xlu0 %650
        %652 = vrot.lane.b32.xlu0 %v643, 4
        %v653 = vpop.permute.xlu0 %652
        %654 = vrot.lane.b32.xlu0 %v644, 4
        %v655 = vpop.permute.xlu0 %654
        %656 = vrot.lane.b32.xlu0 %v645, 4
        %v657 = vpop.permute.xlu0 %656
        %662 = vst.msk [vmem:[%s636 + $0x1] sm:$0xff] %vm552, %v651
        %663 = vst.msk [vmem:[%s636 + $0x9] sm:$0xff] %vm552, %v653
        %664 = vst.msk [vmem:[%s636 + $0x11] sm:$0xff] %vm552, %v655
        %665 = vst.msk [vmem:[%s636 + $0x19] sm:$0xff] %vm552, %v657
      $region48: #{upsampling_forward.4} parent=39 // pred_fallthru
        _
      %v666 = vld [vmem:[#allocation2] sm:$0xff]
      %v667 = vld [vmem:[#allocation2 + $0x8] sm:$0xff]
      %v668 = vld [vmem:[#allocation2 + $0x10] sm:$0xff]
      %v669 = vld [vmem:[#allocation2 + $0x18] sm:$0xff]
      %v670 = vld [vmem:[#allocation2 + $0x20] sm:$0x3]
      %v671 = vld [vmem:[#allocation2 + $0x28] sm:$0xff]
      %v672 = vld [vmem:[#allocation2 + $0x30] sm:$0xff]
      %v673 = vld [vmem:[#allocation2 + $0x38] sm:$0xff]
      %v674 = vld [vmem:[#allocation2 + $0x40] sm:$0xff]
      %v675 = vld [vmem:[#allocation2 + $0x48] sm:$0x3]
      %v676 = vld [vmem:[#allocation2 + $0x50] sm:$0xff]
      %v677 = vld [vmem:[#allocation2 + $0x58] sm:$0xff]
      %v678 = vld [vmem:[#allocation2 + $0x60] sm:$0xff]
      %v679 = vld [vmem:[#allocation2 + $0x68] sm:$0xff]
      %v680 = vld [vmem:[#allocation2 + $0x70] sm:$0x3]
      %v681 = vld [vmem:[#allocation2 + $0x78] sm:$0xff]
      %v682 = vld [vmem:[#allocation2 + $0x80] sm:$0xff]
      %v683 = vld [vmem:[#allocation2 + $0x88] sm:$0xff]
      %v684 = vld [vmem:[#allocation2 + $0x90] sm:$0xff]
      %v685 = vld [vmem:[#allocation2 + $0x98] sm:$0x3]
      %v686 = vld [vmem:[#allocation2 + $0xa0] sm:$0xff]
      %v687 = vld [vmem:[#allocation2 + $0xa8] sm:$0xff]
      %v688 = vld [vmem:[#allocation2 + $0xb0] sm:$0xff]
      %v689 = vld [vmem:[#allocation2 + $0xb8] sm:$0xff]
      %v690 = vld [vmem:[#allocation2 + $0xc0] sm:$0x3]
      %v691 = vld [vmem:[#allocation2 + $0xc8] sm:$0xff]
      %v692 = vld [vmem:[#allocation2 + $0xd0] sm:$0xff]
      %v693 = vld [vmem:[#allocation2 + $0xd8] sm:$0xff]
      %v694 = vld [vmem:[#allocation2 + $0xe0] sm:$0xff]
      %v695 = vld [vmem:[#allocation2 + $0xe8] sm:$0x3]
      %v696 = vld [vmem:[#allocation2 + $0xf0] sm:$0xff]
      %v697 = vld [vmem:[#allocation2 + $0xf8] sm:$0xff]
      %v698 = vld [vmem:[#allocation2 + $0x100] sm:$0xff]
      %v699 = vld [vmem:[#allocation2 + $0x108] sm:$0xff]
      %v700 = vld [vmem:[#allocation2 + $0x110] sm:$0x3]
      %v701 = vld [vmem:[#allocation2 + $0x118] sm:$0xff]
      %v702 = vld [vmem:[#allocation2 + $0x120] sm:$0xff]
      %v703 = vld [vmem:[#allocation2 + $0x128] sm:$0xff]
      %v704 = vld [vmem:[#allocation2 + $0x130] sm:$0xff]
      %v705 = vld [vmem:[#allocation2 + $0x138] sm:$0x3]
      %v706 = vld [vmem:[#allocation2 + $0x140] sm:$0xff]
      %v707 = vld [vmem:[#allocation2 + $0x148] sm:$0xff]
      %v708 = vld [vmem:[#allocation2 + $0x150] sm:$0xff]
      %v709 = vld [vmem:[#allocation2 + $0x158] sm:$0xff]
      %v710 = vld [vmem:[#allocation2 + $0x160] sm:$0x3]
      %v711 = vld [vmem:[#allocation2 + $0x168] sm:$0xff]
      %v712 = vld [vmem:[#allocation2 + $0x170] sm:$0xff]
      %v713 = vld [vmem:[#allocation2 + $0x178] sm:$0xff]
      %v714 = vld [vmem:[#allocation2 + $0x180] sm:$0xff]
      %v715 = vld [vmem:[#allocation2 + $0x188] sm:$0x3]
      %716 = vst.msk [vmem:[#allocation3] sm:$0xff] %vm271, %v666
      %717 = vst.msk [vmem:[#allocation3 + $0x8] sm:$0xff] %vm271, %v667
      %718 = vst.msk [vmem:[#allocation3 + $0x10] sm:$0xff] %vm271, %v668
      %719 = vst.msk [vmem:[#allocation3 + $0x18] sm:$0xff] %vm271, %v669
      %720 = vst.msk [vmem:[#allocation3 + $0x20] sm:$0xff] %vm271, %v671
      %721 = vst.msk [vmem:[#allocation3 + $0x28] sm:$0xff] %vm271, %v672
      %722 = vst.msk [vmem:[#allocation3 + $0x30] sm:$0xff] %vm271, %v673
      %723 = vst.msk [vmem:[#allocation3 + $0x38] sm:$0xff] %vm271, %v674
      %724 = vst.msk [vmem:[#allocation3 + $0x40] sm:$0xff] %vm271, %v676
      %725 = vst.msk [vmem:[#allocation3 + $0x48] sm:$0xff] %vm271, %v677
      %726 = vst.msk [vmem:[#allocation3 + $0x50] sm:$0xff] %vm271, %v678
      %727 = vst.msk [vmem:[#allocation3 + $0x58] sm:$0xff] %vm271, %v679
      %728 = vst.msk [vmem:[#allocation3 + $0x60] sm:$0xff] %vm271, %v681
      %729 = vst.msk [vmem:[#allocation3 + $0x68] sm:$0xff] %vm271, %v682
      %730 = vst.msk [vmem:[#allocation3 + $0x70] sm:$0xff] %vm271, %v683
      %731 = vst.msk [vmem:[#allocation3 + $0x78] sm:$0xff] %vm271, %v684
      %732 = vst.msk [vmem:[#allocation3 + $0x80] sm:$0xff] %vm271, %v686
      %733 = vst.msk [vmem:[#allocation3 + $0x88] sm:$0xff] %vm271, %v687
      %734 = vst.msk [vmem:[#allocation3 + $0x90] sm:$0xff] %vm271, %v688
      %735 = vst.msk [vmem:[#allocation3 + $0x98] sm:$0xff] %vm271, %v689
      %736 = vst.msk [vmem:[#allocation3 + $0xa0] sm:$0xff] %vm271, %v691
      %737 = vst.msk [vmem:[#allocation3 + $0xa8] sm:$0xff] %vm271, %v692
      %738 = vst.msk [vmem:[#allocation3 + $0xb0] sm:$0xff] %vm271, %v693
      %739 = vst.msk [vmem:[#allocation3 + $0xb8] sm:$0xff] %vm271, %v694
      %740 = vst.msk [vmem:[#allocation3 + $0xc0] sm:$0xff] %vm271, %v696
      %741 = vst.msk [vmem:[#allocation3 + $0xc8] sm:$0xff] %vm271, %v697
      %742 = vst.msk [vmem:[#allocation3 + $0xd0] sm:$0xff] %vm271, %v698
      %743 = vst.msk [vmem:[#allocation3 + $0xd8] sm:$0xff] %vm271, %v699
      %744 = vst.msk [vmem:[#allocation3 + $0xe0] sm:$0xff] %vm271, %v701
      %745 = vst.msk [vmem:[#allocation3 + $0xe8] sm:$0xff] %vm271, %v702
      %746 = vst.msk [vmem:[#allocation3 + $0xf0] sm:$0xff] %vm271, %v703
      %747 = vst.msk [vmem:[#allocation3 + $0xf8] sm:$0xff] %vm271, %v704
      %vm788 = vcmask 1046528
      %v789 = vrot.slane %v666, 1
      %v790 = vrot.slane %v667, 1
      %v791 = vsel %vm788, %v789, %v790
      %v792 = vrot.slane %v668, 1
      %v793 = vsel %vm788, %v790, %v792
      %v794 = vrot.slane %v669, 1
      %v795 = vsel %vm788, %v792, %v794
      %v796 = vrot.slane %v670, 1
      %v797 = vsel %vm788, %v794, %v796
      %v798 = vrot.slane %v671, 1
      %v799 = vrot.slane %v672, 1
      %v800 = vsel %vm788, %v798, %v799
      %v801 = vrot.slane %v673, 1
      %v802 = vsel %vm788, %v799, %v801
      %v803 = vrot.slane %v674, 1
      %v804 = vsel %vm788, %v801, %v803
      %v805 = vrot.slane %v675, 1
      %v806 = vsel %vm788, %v803, %v805
      %v807 = vrot.slane %v676, 1
      %v808 = vrot.slane %v677, 1
      %v809 = vsel %vm788, %v807, %v808
      %v810 = vrot.slane %v678, 1
      %v811 = vsel %vm788, %v808, %v810
      %v812 = vrot.slane %v679, 1
      %v813 = vsel %vm788, %v810, %v812
      %v814 = vrot.slane %v680, 1
      %v815 = vsel %vm788, %v812, %v814
      %v816 = vrot.slane %v681, 1
      %v817 = vrot.slane %v682, 1
      %v818 = vsel %vm788, %v816, %v817
      %v819 = vrot.slane %v683, 1
      %v820 = vsel %vm788, %v817, %v819
      %v821 = vrot.slane %v684, 1
      %v822 = vsel %vm788, %v819, %v821
      %v823 = vrot.slane %v685, 1
      %v824 = vsel %vm788, %v821, %v823
      %v825 = vrot.slane %v686, 1
      %v826 = vrot.slane %v687, 1
      %v827 = vsel %vm788, %v825, %v826
      %v828 = vrot.slane %v688, 1
      %v829 = vsel %vm788, %v826, %v828
      %v830 = vrot.slane %v689, 1
      %v831 = vsel %vm788, %v828, %v830
      %v832 = vrot.slane %v690, 1
      %v833 = vsel %vm788, %v830, %v832
      %v834 = vrot.slane %v691, 1
      %v835 = vrot.slane %v692, 1
      %v836 = vsel %vm788, %v834, %v835
      %v837 = vrot.slane %v693, 1
      %v838 = vsel %vm788, %v835, %v837
      %v839 = vrot.slane %v694, 1
      %v840 = vsel %vm788, %v837, %v839
      %v841 = vrot.slane %v695, 1
      %v842 = vsel %vm788, %v839, %v841
      %v843 = vrot.slane %v696, 1
      %v844 = vrot.slane %v697, 1
      %v845 = vsel %vm788, %v843, %v844
      %v846 = vrot.slane %v698, 1
      %v847 = vsel %vm788, %v844, %v846
      %v848 = vrot.slane %v699, 1
      %v849 = vsel %vm788, %v846, %v848
      %v850 = vrot.slane %v700, 1
      %v851 = vsel %vm788, %v848, %v850
      %v852 = vrot.slane %v701, 1
      %v853 = vrot.slane %v702, 1
      %v854 = vsel %vm788, %v852, %v853
      %v855 = vrot.slane %v703, 1
      %v856 = vsel %vm788, %v853, %v855
      %v857 = vrot.slane %v704, 1
      %v858 = vsel %vm788, %v855, %v857
      %v859 = vrot.slane %v705, 1
      %v860 = vsel %vm788, %v857, %v859
      %861 = vrot.lane.b32.xlu0 %v791, 8
      %v862 = vpop.permute.xlu0 %861
      %863 = vrot.lane.b32.xlu0 %v793, 8
      %v864 = vpop.permute.xlu0 %863
      %865 = vrot.lane.b32.xlu0 %v795, 8
      %v866 = vpop.permute.xlu0 %865
      %867 = vrot.lane.b32.xlu0 %v797, 8
      %v868 = vpop.permute.xlu0 %867
      %869 = vrot.lane.b32.xlu0 %v800, 8
      %v870 = vpop.permute.xlu0 %869
      %871 = vrot.lane.b32.xlu0 %v802, 8
      %v872 = vpop.permute.xlu0 %871
      %873 = vrot.lane.b32.xlu0 %v804, 8
      %v874 = vpop.permute.xlu0 %873
      %875 = vrot.lane.b32.xlu0 %v806, 8
      %v876 = vpop.permute.xlu0 %875
      %877 = vrot.lane.b32.xlu0 %v809, 8
      %v878 = vpop.permute.xlu0 %877
      %879 = vrot.lane.b32.xlu0 %v811, 8
      %v880 = vpop.permute.xlu0 %879
      %881 = vrot.lane.b32.xlu0 %v813, 8
      %v882 = vpop.permute.xlu0 %881
      %883 = vrot.lane.b32.xlu0 %v815, 8
      %v884 = vpop.permute.xlu0 %883
      %885 = vrot.lane.b32.xlu0 %v818, 8
      %v886 = vpop.permute.xlu0 %885
      %887 = vrot.lane.b32.xlu0 %v820, 8
      %v888 = vpop.permute.xlu0 %887
      %889 = vrot.lane.b32.xlu0 %v822, 8
      %v890 = vpop.permute.xlu0 %889
      %891 = vrot.lane.b32.xlu0 %v824, 8
      %v892 = vpop.permute.xlu0 %891
      %893 = vrot.lane.b32.xlu0 %v827, 8
      %v894 = vpop.permute.xlu0 %893
      %895 = vrot.lane.b32.xlu0 %v829, 8
      %v896 = vpop.permute.xlu0 %895
      %897 = vrot.lane.b32.xlu0 %v831, 8
      %v898 = vpop.permute.xlu0 %897
      %899 = vrot.lane.b32.xlu0 %v833, 8
      %v900 = vpop.permute.xlu0 %899
      %901 = vrot.lane.b32.xlu0 %v836, 8
      %v902 = vpop.permute.xlu0 %901
      %903 = vrot.lane.b32.xlu0 %v838, 8
      %v904 = vpop.permute.xlu0 %903
      %905 = vrot.lane.b32.xlu0 %v840, 8
      %v906 = vpop.permute.xlu0 %905
      %907 = vrot.lane.b32.xlu0 %v842, 8
      %v908 = vpop.permute.xlu0 %907
      %909 = vrot.lane.b32.xlu0 %v845, 8
      %v910 = vpop.permute.xlu0 %909
      %911 = vrot.lane.b32.xlu0 %v847, 8
      %v912 = vpop.permute.xlu0 %911
      %913 = vrot.lane.b32.xlu0 %v849, 8
      %v914 = vpop.permute.xlu0 %913
      %915 = vrot.lane.b32.xlu0 %v851, 8
      %v916 = vpop.permute.xlu0 %915
      %917 = vrot.lane.b32.xlu0 %v854, 8
      %v918 = vpop.permute.xlu0 %917
      %919 = vrot.lane.b32.xlu0 %v856, 8
      %v920 = vpop.permute.xlu0 %919
      %921 = vrot.lane.b32.xlu0 %v858, 8
      %v922 = vpop.permute.xlu0 %921
      %923 = vrot.lane.b32.xlu0 %v860, 8
      %v924 = vpop.permute.xlu0 %923
      %vm957 = vcmask 130112
      %958 = vst.msk [vmem:[#allocation3] sm:$0xff] %vm957, %v862
      %959 = vst.msk [vmem:[#allocation3 + $0x8] sm:$0xff] %vm957, %v864
      %960 = vst.msk [vmem:[#allocation3 + $0x10] sm:$0xff] %vm957, %v866
      %961 = vst.msk [vmem:[#allocation3 + $0x18] sm:$0xff] %vm957, %v868
      %962 = vst.msk [vmem:[#allocation3 + $0x20] sm:$0xff] %vm957, %v870
      %963 = vst.msk [vmem:[#allocation3 + $0x28] sm:$0xff] %vm957, %v872
      %964 = vst.msk [vmem:[#allocation3 + $0x30] sm:$0xff] %vm957, %v874
      %965 = vst.msk [vmem:[#allocation3 + $0x38] sm:$0xff] %vm957, %v876
      %966 = vst.msk [vmem:[#allocation3 + $0x40] sm:$0xff] %vm957, %v878
      %967 = vst.msk [vmem:[#allocation3 + $0x48] sm:$0xff] %vm957, %v880
      %968 = vst.msk [vmem:[#allocation3 + $0x50] sm:$0xff] %vm957, %v882
      %969 = vst.msk [vmem:[#allocation3 + $0x58] sm:$0xff] %vm957, %v884
      %970 = vst.msk [vmem:[#allocation3 + $0x60] sm:$0xff] %vm957, %v886
      %971 = vst.msk [vmem:[#allocation3 + $0x68] sm:$0xff] %vm957, %v888
      %972 = vst.msk [vmem:[#allocation3 + $0x70] sm:$0xff] %vm957, %v890
      %973 = vst.msk [vmem:[#allocation3 + $0x78] sm:$0xff] %vm957, %v892
      %974 = vst.msk [vmem:[#allocation3 + $0x80] sm:$0xff] %vm957, %v894
      %975 = vst.msk [vmem:[#allocation3 + $0x88] sm:$0xff] %vm957, %v896
      %976 = vst.msk [vmem:[#allocation3 + $0x90] sm:$0xff] %vm957, %v898
      %977 = vst.msk [vmem:[#allocation3 + $0x98] sm:$0xff] %vm957, %v900
      %978 = vst.msk [vmem:[#allocation3 + $0xa0] sm:$0xff] %vm957, %v902
      %979 = vst.msk [vmem:[#allocation3 + $0xa8] sm:$0xff] %vm957, %v904
      %980 = vst.msk [vmem:[#allocation3 + $0xb0] sm:$0xff] %vm957, %v906
      %981 = vst.msk [vmem:[#allocation3 + $0xb8] sm:$0xff] %vm957, %v908
      %982 = vst.msk [vmem:[#allocation3 + $0xc0] sm:$0xff] %vm957, %v910
      %983 = vst.msk [vmem:[#allocation3 + $0xc8] sm:$0xff] %vm957, %v912
      %984 = vst.msk [vmem:[#allocation3 + $0xd0] sm:$0xff] %vm957, %v914
      %985 = vst.msk [vmem:[#allocation3 + $0xd8] sm:$0xff] %vm957, %v916
      %986 = vst.msk [vmem:[#allocation3 + $0xe0] sm:$0xff] %vm957, %v918
      %987 = vst.msk [vmem:[#allocation3 + $0xe8] sm:$0xff] %vm957, %v920
      %988 = vst.msk [vmem:[#allocation3 + $0xf0] sm:$0xff] %vm957, %v922
      %989 = vst.msk [vmem:[#allocation3 + $0xf8] sm:$0xff] %vm957, %v924
      %vm990 = vcmask 1045504
      %v991 = vrot.slane %v666, 2
      %v992 = vrot.slane %v667, 2
      %v993 = vsel %vm990, %v991, %v992
      %v994 = vrot.slane %v668, 2
      %v995 = vsel %vm990, %v992, %v994
      %v996 = vrot.slane %v669, 2
      %v997 = vsel %vm990, %v994, %v996
      %v998 = vrot.slane %v670, 2
      %v999 = vsel %vm990, %v996, %v998
      %v1000 = vrot.slane %v671, 2
      %v1001 = vrot.slane %v672, 2
      %v1002 = vsel %vm990, %v1000, %v1001
      %v1003 = vrot.slane %v673, 2
      %v1004 = vsel %vm990, %v1001, %v1003
      %v1005 = vrot.slane %v674, 2
      %v1006 = vsel %vm990, %v1003, %v1005
      %v1007 = vrot.slane %v675, 2
      %v1008 = vsel %vm990, %v1005, %v1007
      %v1009 = vrot.slane %v676, 2
      %v1010 = vrot.slane %v677, 2
      %v1011 = vsel %vm990, %v1009, %v1010
      %v1012 = vrot.slane %v678, 2
      %v1013 = vsel %vm990, %v1010, %v1012
      %v1014 = vrot.slane %v679, 2
      %v1015 = vsel %vm990, %v1012, %v1014
      %v1016 = vrot.slane %v680, 2
      %v1017 = vsel %vm990, %v1014, %v1016
      %v1018 = vrot.slane %v681, 2
      %v1019 = vrot.slane %v682, 2
      %v1020 = vsel %vm990, %v1018, %v1019
      %v1021 = vrot.slane %v683, 2
      %v1022 = vsel %vm990, %v1019, %v1021
      %v1023 = vrot.slane %v684, 2
      %v1024 = vsel %vm990, %v1021, %v1023
      %v1025 = vrot.slane %v685, 2
      %v1026 = vsel %vm990, %v1023, %v1025
      %v1027 = vrot.slane %v686, 2
      %v1028 = vrot.slane %v687, 2
      %v1029 = vsel %vm990, %v1027, %v1028
      %v1030 = vrot.slane %v688, 2
      %v1031 = vsel %vm990, %v1028, %v1030
      %v1032 = vrot.slane %v689, 2
      %v1033 = vsel %vm990, %v1030, %v1032
      %v1034 = vrot.slane %v690, 2
      %v1035 = vsel %vm990, %v1032, %v1034
      %v1036 = vrot.slane %v691, 2
      %v1037 = vrot.slane %v692, 2
      %v1038 = vsel %vm990, %v1036, %v1037
      %v1039 = vrot.slane %v693, 2
      %v1040 = vsel %vm990, %v1037, %v1039
      %v1041 = vrot.slane %v694, 2
      %v1042 = vsel %vm990, %v1039, %v1041
      %v1043 = vrot.slane %v695, 2
      %v1044 = vsel %vm990, %v1041, %v1043
      %v1045 = vrot.slane %v696, 2
      %v1046 = vrot.slane %v697, 2
      %v1047 = vsel %vm990, %v1045, %v1046
      %v1048 = vrot.slane %v698, 2
      %v1049 = vsel %vm990, %v1046, %v1048
      %v1050 = vrot.slane %v699, 2
      %v1051 = vsel %vm990, %v1048, %v1050
      %v1052 = vrot.slane %v700, 2
      %v1053 = vsel %vm990, %v1050, %v1052
      %v1054 = vrot.slane %v701, 2
      %v1055 = vrot.slane %v702, 2
      %v1056 = vsel %vm990, %v1054, %v1055
      %v1057 = vrot.slane %v703, 2
      %v1058 = vsel %vm990, %v1055, %v1057
      %v1059 = vrot.slane %v704, 2
      %v1060 = vsel %vm990, %v1057, %v1059
      %v1061 = vrot.slane %v705, 2
      %v1062 = vsel %vm990, %v1059, %v1061
      %1063 = vrot.lane.b32.xlu0 %v993, 16
      %v1064 = vpop.permute.xlu0 %1063
      %1065 = vrot.lane.b32.xlu0 %v995, 16
      %v1066 = vpop.permute.xlu0 %1065
      %1067 = vrot.lane.b32.xlu0 %v997, 16
      %v1068 = vpop.permute.xlu0 %1067
      %1069 = vrot.lane.b32.xlu0 %v999, 16
      %v1070 = vpop.permute.xlu0 %1069
      %1071 = vrot.lane.b32.xlu0 %v1002, 16
      %v1072 = vpop.permute.xlu0 %1071
      %1073 = vrot.lane.b32.xlu0 %v1004, 16
      %v1074 = vpop.permute.xlu0 %1073
      %1075 = vrot.lane.b32.xlu0 %v1006, 16
      %v1076 = vpop.permute.xlu0 %1075
      %1077 = vrot.lane.b32.xlu0 %v1008, 16
      %v1078 = vpop.permute.xlu0 %1077
      %1079 = vrot.lane.b32.xlu0 %v1011, 16
      %v1080 = vpop.permute.xlu0 %1079
      %1081 = vrot.lane.b32.xlu0 %v1013, 16
      %v1082 = vpop.permute.xlu0 %1081
      %1083 = vrot.lane.b32.xlu0 %v1015, 16
      %v1084 = vpop.permute.xlu0 %1083
      %1085 = vrot.lane.b32.xlu0 %v1017, 16
      %v1086 = vpop.permute.xlu0 %1085
      %1087 = vrot.lane.b32.xlu0 %v1020, 16
      %v1088 = vpop.permute.xlu0 %1087
      %1089 = vrot.lane.b32.xlu0 %v1022, 16
      %v1090 = vpop.permute.xlu0 %1089
      %1091 = vrot.lane.b32.xlu0 %v1024, 16
      %v1092 = vpop.permute.xlu0 %1091
      %1093 = vrot.lane.b32.xlu0 %v1026, 16
      %v1094 = vpop.permute.xlu0 %1093
      %1095 = vrot.lane.b32.xlu0 %v1029, 16
      %v1096 = vpop.permute.xlu0 %1095
      %1097 = vrot.lane.b32.xlu0 %v1031, 16
      %v1098 = vpop.permute.xlu0 %1097
      %1099 = vrot.lane.b32.xlu0 %v1033, 16
      %v1100 = vpop.permute.xlu0 %1099
      %1101 = vrot.lane.b32.xlu0 %v1035, 16
      %v1102 = vpop.permute.xlu0 %1101
      %1103 = vrot.lane.b32.xlu0 %v1038, 16
      %v1104 = vpop.permute.xlu0 %1103
      %1105 = vrot.lane.b32.xlu0 %v1040, 16
      %v1106 = vpop.permute.xlu0 %1105
      %1107 = vrot.lane.b32.xlu0 %v1042, 16
      %v1108 = vpop.permute.xlu0 %1107
      %1109 = vrot.lane.b32.xlu0 %v1044, 16
      %v1110 = vpop.permute.xlu0 %1109
      %1111 = vrot.lane.b32.xlu0 %v1047, 16
      %v1112 = vpop.permute.xlu0 %1111
      %1113 = vrot.lane.b32.xlu0 %v1049, 16
      %v1114 = vpop.permute.xlu0 %1113
      %1115 = vrot.lane.b32.xlu0 %v1051, 16
      %v1116 = vpop.permute.xlu0 %1115
      %1117 = vrot.lane.b32.xlu0 %v1053, 16
      %v1118 = vpop.permute.xlu0 %1117
      %1119 = vrot.lane.b32.xlu0 %v1056, 16
      %v1120 = vpop.permute.xlu0 %1119
      %1121 = vrot.lane.b32.xlu0 %v1058, 16
      %v1122 = vpop.permute.xlu0 %1121
      %1123 = vrot.lane.b32.xlu0 %v1060, 16
      %v1124 = vpop.permute.xlu0 %1123
      %1125 = vrot.lane.b32.xlu0 %v1062, 16
      %v1126 = vpop.permute.xlu0 %1125
      %vm1159 = vcmask 195712
      %1160 = vst.msk [vmem:[#allocation3] sm:$0xff] %vm1159, %v1064
      %1161 = vst.msk [vmem:[#allocation3 + $0x8] sm:$0xff] %vm1159, %v1066
      %1162 = vst.msk [vmem:[#allocation3 + $0x10] sm:$0xff] %vm1159, %v1068
      %1163 = vst.msk [vmem:[#allocation3 + $0x18] sm:$0xff] %vm1159, %v1070
      %1164 = vst.msk [vmem:[#allocation3 + $0x20] sm:$0xff] %vm1159, %v1072
      %1165 = vst.msk [vmem:[#allocation3 + $0x28] sm:$0xff] %vm1159, %v1074
      %1166 = vst.msk [vmem:[#allocation3 + $0x30] sm:$0xff] %vm1159, %v1076
      %1167 = vst.msk [vmem:[#allocation3 + $0x38] sm:$0xff] %vm1159, %v1078
      %1168 = vst.msk [vmem:[#allocation3 + $0x40] sm:$0xff] %vm1159, %v1080
      %1169 = vst.msk [vmem:[#allocation3 + $0x48] sm:$0xff] %vm1159, %v1082
      %1170 = vst.msk [vmem:[#allocation3 + $0x50] sm:$0xff] %vm1159, %v1084
      %1171 = vst.msk [vmem:[#allocation3 + $0x58] sm:$0xff] %vm1159, %v1086
      %1172 = vst.msk [vmem:[#allocation3 + $0x60] sm:$0xff] %vm1159, %v1088
      %1173 = vst.msk [vmem:[#allocation3 + $0x68] sm:$0xff] %vm1159, %v1090
      %1174 = vst.msk [vmem:[#allocation3 + $0x70] sm:$0xff] %vm1159, %v1092
      %1175 = vst.msk [vmem:[#allocation3 + $0x78] sm:$0xff] %vm1159, %v1094
      %1176 = vst.msk [vmem:[#allocation3 + $0x80] sm:$0xff] %vm1159, %v1096
      %1177 = vst.msk [vmem:[#allocation3 + $0x88] sm:$0xff] %vm1159, %v1098
      %1178 = vst.msk [vmem:[#allocation3 + $0x90] sm:$0xff] %vm1159, %v1100
      %1179 = vst.msk [vmem:[#allocation3 + $0x98] sm:$0xff] %vm1159, %v1102
      %1180 = vst.msk [vmem:[#allocation3 + $0xa0] sm:$0xff] %vm1159, %v1104
      %1181 = vst.msk [vmem:[#allocation3 + $0xa8] sm:$0xff] %vm1159, %v1106
      %1182 = vst.msk [vmem:[#allocation3 + $0xb0] sm:$0xff] %vm1159, %v1108
      %1183 = vst.msk [vmem:[#allocation3 + $0xb8] sm:$0xff] %vm1159, %v1110
      %1184 = vst.msk [vmem:[#allocation3 + $0xc0] sm:$0xff] %vm1159, %v1112
      %1185 = vst.msk [vmem:[#allocation3 + $0xc8] sm:$0xff] %vm1159, %v1114
      %1186 = vst.msk [vmem:[#allocation3 + $0xd0] sm:$0xff] %vm1159, %v1116
      %1187 = vst.msk [vmem:[#allocation3 + $0xd8] sm:$0xff] %vm1159, %v1118
      %1188 = vst.msk [vmem:[#allocation3 + $0xe0] sm:$0xff] %vm1159, %v1120
      %1189 = vst.msk [vmem:[#allocation3 + $0xe8] sm:$0xff] %vm1159, %v1122
      %1190 = vst.msk [vmem:[#allocation3 + $0xf0] sm:$0xff] %vm1159, %v1124
      %1191 = vst.msk [vmem:[#allocation3 + $0xf8] sm:$0xff] %vm1159, %v1126
      %1196 = vrot.lane.b32.xlu0 %v671, 24
      %v1197 = vpop.permute.xlu0 %1196
      %1198 = vrot.lane.b32.xlu0 %v672, 24
      %v1199 = vpop.permute.xlu0 %1198
      %1200 = vrot.lane.b32.xlu0 %v673, 24
      %v1201 = vpop.permute.xlu0 %1200
      %1202 = vrot.lane.b32.xlu0 %v674, 24
      %v1203 = vpop.permute.xlu0 %1202
      %1204 = vrot.lane.b32.xlu0 %v676, 24
      %v1205 = vpop.permute.xlu0 %1204
      %1206 = vrot.lane.b32.xlu0 %v677, 24
      %v1207 = vpop.permute.xlu0 %1206
      %1208 = vrot.lane.b32.xlu0 %v678, 24
      %v1209 = vpop.permute.xlu0 %1208
      %1210 = vrot.lane.b32.xlu0 %v679, 24
      %v1211 = vpop.permute.xlu0 %1210
      %1212 = vrot.lane.b32.xlu0 %v681, 24
      %v1213 = vpop.permute.xlu0 %1212
      %1214 = vrot.lane.b32.xlu0 %v682, 24
      %v1215 = vpop.permute.xlu0 %1214
      %1216 = vrot.lane.b32.xlu0 %v683, 24
      %v1217 = vpop.permute.xlu0 %1216
      %1218 = vrot.lane.b32.xlu0 %v684, 24
      %v1219 = vpop.permute.xlu0 %1218
      %1220 = vrot.lane.b32.xlu0 %v686, 24
      %v1221 = vpop.permute.xlu0 %1220
      %1222 = vrot.lane.b32.xlu0 %v687, 24
      %v1223 = vpop.permute.xlu0 %1222
      %1224 = vrot.lane.b32.xlu0 %v688, 24
      %v1225 = vpop.permute.xlu0 %1224
      %1226 = vrot.lane.b32.xlu0 %v689, 24
      %v1227 = vpop.permute.xlu0 %1226
      %1228 = vrot.lane.b32.xlu0 %v691, 24
      %v1229 = vpop.permute.xlu0 %1228
      %1230 = vrot.lane.b32.xlu0 %v692, 24
      %v1231 = vpop.permute.xlu0 %1230
      %1232 = vrot.lane.b32.xlu0 %v693, 24
      %v1233 = vpop.permute.xlu0 %1232
      %1234 = vrot.lane.b32.xlu0 %v694, 24
      %v1235 = vpop.permute.xlu0 %1234
      %1236 = vrot.lane.b32.xlu0 %v696, 24
      %v1237 = vpop.permute.xlu0 %1236
      %1238 = vrot.lane.b32.xlu0 %v697, 24
      %v1239 = vpop.permute.xlu0 %1238
      %1240 = vrot.lane.b32.xlu0 %v698, 24
      %v1241 = vpop.permute.xlu0 %1240
      %1242 = vrot.lane.b32.xlu0 %v699, 24
      %v1243 = vpop.permute.xlu0 %1242
      %1244 = vrot.lane.b32.xlu0 %v701, 24
      %v1245 = vpop.permute.xlu0 %1244
      %1246 = vrot.lane.b32.xlu0 %v702, 24
      %v1247 = vpop.permute.xlu0 %1246
      %1248 = vrot.lane.b32.xlu0 %v703, 24
      %v1249 = vpop.permute.xlu0 %1248
      %1250 = vrot.lane.b32.xlu0 %v704, 24
      %v1251 = vpop.permute.xlu0 %1250
      %1252 = vrot.lane.b32.xlu0 %v706, 24
      %v1253 = vpop.permute.xlu0 %1252
      %1254 = vrot.lane.b32.xlu0 %v707, 24
      %v1255 = vpop.permute.xlu0 %1254
      %1256 = vrot.lane.b32.xlu0 %v708, 24
      %v1257 = vpop.permute.xlu0 %1256
      %1258 = vrot.lane.b32.xlu0 %v709, 24
      %v1259 = vpop.permute.xlu0 %1258
      %vm1292 = vcmask 261312
      %1293 = vst.msk [vmem:[#allocation3] sm:$0xff] %vm1292, %v1197
      %1294 = vst.msk [vmem:[#allocation3 + $0x8] sm:$0xff] %vm1292, %v1199
      %1295 = vst.msk [vmem:[#allocation3 + $0x10] sm:$0xff] %vm1292, %v1201
      %1296 = vst.msk [vmem:[#allocation3 + $0x18] sm:$0xff] %vm1292, %v1203
      %1297 = vst.msk [vmem:[#allocation3 + $0x20] sm:$0xff] %vm1292, %v1205
      %1298 = vst.msk [vmem:[#allocation3 + $0x28] sm:$0xff] %vm1292, %v1207
      %1299 = vst.msk [vmem:[#allocation3 + $0x30] sm:$0xff] %vm1292, %v1209
      %1300 = vst.msk [vmem:[#allocation3 + $0x38] sm:$0xff] %vm1292, %v1211
      %1301 = vst.msk [vmem:[#allocation3 + $0x40] sm:$0xff] %vm1292, %v1213
      %1302 = vst.msk [vmem:[#allocation3 + $0x48] sm:$0xff] %vm1292, %v1215
      %1303 = vst.msk [vmem:[#allocation3 + $0x50] sm:$0xff] %vm1292, %v1217
      %1304 = vst.msk [vmem:[#allocation3 + $0x58] sm:$0xff] %vm1292, %v1219
      %1305 = vst.msk [vmem:[#allocation3 + $0x60] sm:$0xff] %vm1292, %v1221
      %1306 = vst.msk [vmem:[#allocation3 + $0x68] sm:$0xff] %vm1292, %v1223
      %1307 = vst.msk [vmem:[#allocation3 + $0x70] sm:$0xff] %vm1292, %v1225
      %1308 = vst.msk [vmem:[#allocation3 + $0x78] sm:$0xff] %vm1292, %v1227
      %1309 = vst.msk [vmem:[#allocation3 + $0x80] sm:$0xff] %vm1292, %v1229
      %1310 = vst.msk [vmem:[#allocation3 + $0x88] sm:$0xff] %vm1292, %v1231
      %1311 = vst.msk [vmem:[#allocation3 + $0x90] sm:$0xff] %vm1292, %v1233
      %1312 = vst.msk [vmem:[#allocation3 + $0x98] sm:$0xff] %vm1292, %v1235
      %1313 = vst.msk [vmem:[#allocation3 + $0xa0] sm:$0xff] %vm1292, %v1237
      %1314 = vst.msk [vmem:[#allocation3 + $0xa8] sm:$0xff] %vm1292, %v1239
      %1315 = vst.msk [vmem:[#allocation3 + $0xb0] sm:$0xff] %vm1292, %v1241
      %1316 = vst.msk [vmem:[#allocation3 + $0xb8] sm:$0xff] %vm1292, %v1243
      %1317 = vst.msk [vmem:[#allocation3 + $0xc0] sm:$0xff] %vm1292, %v1245
      %1318 = vst.msk [vmem:[#allocation3 + $0xc8] sm:$0xff] %vm1292, %v1247
      %1319 = vst.msk [vmem:[#allocation3 + $0xd0] sm:$0xff] %vm1292, %v1249
      %1320 = vst.msk [vmem:[#allocation3 + $0xd8] sm:$0xff] %vm1292, %v1251
      %1321 = vst.msk [vmem:[#allocation3 + $0xe0] sm:$0xff] %vm1292, %v1253
      %1322 = vst.msk [vmem:[#allocation3 + $0xe8] sm:$0xff] %vm1292, %v1255
      %1323 = vst.msk [vmem:[#allocation3 + $0xf0] sm:$0xff] %vm1292, %v1257
      %1324 = vst.msk [vmem:[#allocation3 + $0xf8] sm:$0xff] %vm1292, %v1259
      %v1326 = vrot.slane %v706, 1
      %v1327 = vrot.slane %v707, 1
      %v1328 = vsel %vm788, %v1326, %v1327
      %v1329 = vrot.slane %v708, 1
      %v1330 = vsel %vm788, %v1327, %v1329
      %v1331 = vrot.slane %v709, 1
      %v1332 = vsel %vm788, %v1329, %v1331
      %v1333 = vrot.slane %v710, 1
      %v1334 = vsel %vm788, %v1331, %v1333
      %1335 = vrot.lane.b32.xlu0 %v800, 32
      %v1336 = vpop.permute.xlu0 %1335
      %1337 = vrot.lane.b32.xlu0 %v802, 32
      %v1338 = vpop.permute.xlu0 %1337
      %1339 = vrot.lane.b32.xlu0 %v804, 32
      %v1340 = vpop.permute.xlu0 %1339
      %1341 = vrot.lane.b32.xlu0 %v806, 32
      %v1342 = vpop.permute.xlu0 %1341
      %1343 = vrot.lane.b32.xlu0 %v809, 32
      %v1344 = vpop.permute.xlu0 %1343
      %1345 = vrot.lane.b32.xlu0 %v811, 32
      %v1346 = vpop.permute.xlu0 %1345
      %1347 = vrot.lane.b32.xlu0 %v813, 32
      %v1348 = vpop.permute.xlu0 %1347
      %1349 = vrot.lane.b32.xlu0 %v815, 32
      %v1350 = vpop.permute.xlu0 %1349
      %1351 = vrot.lane.b32.xlu0 %v818, 32
      %v1352 = vpop.permute.xlu0 %1351
      %1353 = vrot.lane.b32.xlu0 %v820, 32
      %v1354 = vpop.permute.xlu0 %1353
      %1355 = vrot.lane.b32.xlu0 %v822, 32
      %v1356 = vpop.permute.xlu0 %1355
      %1357 = vrot.lane.b32.xlu0 %v824, 32
      %v1358 = vpop.permute.xlu0 %1357
      %1359 = vrot.lane.b32.xlu0 %v827, 32
      %v1360 = vpop.permute.xlu0 %1359
      %1361 = vrot.lane.b32.xlu0 %v829, 32
      %v1362 = vpop.permute.xlu0 %1361
      %1363 = vrot.lane.b32.xlu0 %v831, 32
      %v1364 = vpop.permute.xlu0 %1363
      %1365 = vrot.lane.b32.xlu0 %v833, 32
      %v1366 = vpop.permute.xlu0 %1365
      %1367 = vrot.lane.b32.xlu0 %v836, 32
      %v1368 = vpop.permute.xlu0 %1367
      %1369 = vrot.lane.b32.xlu0 %v838, 32
      %v1370 = vpop.permute.xlu0 %1369
      %1371 = vrot.lane.b32.xlu0 %v840, 32
      %v1372 = vpop.permute.xlu0 %1371
      %1373 = vrot.lane.b32.xlu0 %v842, 32
      %v1374 = vpop.permute.xlu0 %1373
      %1375 = vrot.lane.b32.xlu0 %v845, 32
      %v1376 = vpop.permute.xlu0 %1375
      %1377 = vrot.lane.b32.xlu0 %v847, 32
      %v1378 = vpop.permute.xlu0 %1377
      %1379 = vrot.lane.b32.xlu0 %v849, 32
      %v1380 = vpop.permute.xlu0 %1379
      %1381 = vrot.lane.b32.xlu0 %v851, 32
      %v1382 = vpop.permute.xlu0 %1381
      %1383 = vrot.lane.b32.xlu0 %v854, 32
      %v1384 = vpop.permute.xlu0 %1383
      %1385 = vrot.lane.b32.xlu0 %v856, 32
      %v1386 = vpop.permute.xlu0 %1385
      %1387 = vrot.lane.b32.xlu0 %v858, 32
      %v1388 = vpop.permute.xlu0 %1387
      %1389 = vrot.lane.b32.xlu0 %v860, 32
      %v1390 = vpop.permute.xlu0 %1389
      %1391 = vrot.lane.b32.xlu0 %v1328, 32
      %v1392 = vpop.permute.xlu0 %1391
      %1393 = vrot.lane.b32.xlu0 %v1330, 32
      %v1394 = vpop.permute.xlu0 %1393
      %1395 = vrot.lane.b32.xlu0 %v1332, 32
      %v1396 = vpop.permute.xlu0 %1395
      %1397 = vrot.lane.b32.xlu0 %v1334, 32
      %v1398 = vpop.permute.xlu0 %1397
      %vm1431 = vcmask 326912
      %1432 = vst.msk [vmem:[#allocation3] sm:$0xff] %vm1431, %v1336
      %1433 = vst.msk [vmem:[#allocation3 + $0x8] sm:$0xff] %vm1431, %v1338
      %1434 = vst.msk [vmem:[#allocation3 + $0x10] sm:$0xff] %vm1431, %v1340
      %1435 = vst.msk [vmem:[#allocation3 + $0x18] sm:$0xff] %vm1431, %v1342
      %1436 = vst.msk [vmem:[#allocation3 + $0x20] sm:$0xff] %vm1431, %v1344
      %1437 = vst.msk [vmem:[#allocation3 + $0x28] sm:$0xff] %vm1431, %v1346
      %1438 = vst.msk [vmem:[#allocation3 + $0x30] sm:$0xff] %vm1431, %v1348
      %1439 = vst.msk [vmem:[#allocation3 + $0x38] sm:$0xff] %vm1431, %v1350
      %1440 = vst.msk [vmem:[#allocation3 + $0x40] sm:$0xff] %vm1431, %v1352
      %1441 = vst.msk [vmem:[#allocation3 + $0x48] sm:$0xff] %vm1431, %v1354
      %1442 = vst.msk [vmem:[#allocation3 + $0x50] sm:$0xff] %vm1431, %v1356
      %1443 = vst.msk [vmem:[#allocation3 + $0x58] sm:$0xff] %vm1431, %v1358
      %1444 = vst.msk [vmem:[#allocation3 + $0x60] sm:$0xff] %vm1431, %v1360
      %1445 = vst.msk [vmem:[#allocation3 + $0x68] sm:$0xff] %vm1431, %v1362
      %1446 = vst.msk [vmem:[#allocation3 + $0x70] sm:$0xff] %vm1431, %v1364
      %1447 = vst.msk [vmem:[#allocation3 + $0x78] sm:$0xff] %vm1431, %v1366
      %1448 = vst.msk [vmem:[#allocation3 + $0x80] sm:$0xff] %vm1431, %v1368
      %1449 = vst.msk [vmem:[#allocation3 + $0x88] sm:$0xff] %vm1431, %v1370
      %1450 = vst.msk [vmem:[#allocation3 + $0x90] sm:$0xff] %vm1431, %v1372
      %1451 = vst.msk [vmem:[#allocation3 + $0x98] sm:$0xff] %vm1431, %v1374
      %1452 = vst.msk [vmem:[#allocation3 + $0xa0] sm:$0xff] %vm1431, %v1376
      %1453 = vst.msk [vmem:[#allocation3 + $0xa8] sm:$0xff] %vm1431, %v1378
      %1454 = vst.msk [vmem:[#allocation3 + $0xb0] sm:$0xff] %vm1431, %v1380
      %1455 = vst.msk [vmem:[#allocation3 + $0xb8] sm:$0xff] %vm1431, %v1382
      %1456 = vst.msk [vmem:[#allocation3 + $0xc0] sm:$0xff] %vm1431, %v1384
      %1457 = vst.msk [vmem:[#allocation3 + $0xc8] sm:$0xff] %vm1431, %v1386
      %1458 = vst.msk [vmem:[#allocation3 + $0xd0] sm:$0xff] %vm1431, %v1388
      %1459 = vst.msk [vmem:[#allocation3 + $0xd8] sm:$0xff] %vm1431, %v1390
      %1460 = vst.msk [vmem:[#allocation3 + $0xe0] sm:$0xff] %vm1431, %v1392
      %1461 = vst.msk [vmem:[#allocation3 + $0xe8] sm:$0xff] %vm1431, %v1394
      %1462 = vst.msk [vmem:[#allocation3 + $0xf0] sm:$0xff] %vm1431, %v1396
      %1463 = vst.msk [vmem:[#allocation3 + $0xf8] sm:$0xff] %vm1431, %v1398
      %v1464 = vrot.slane %v706, 2
      %v1465 = vrot.slane %v707, 2
      %v1466 = vsel %vm990, %v1464, %v1465
      %v1467 = vrot.slane %v708, 2
      %v1468 = vsel %vm990, %v1465, %v1467
      %v1469 = vrot.slane %v709, 2
      %v1470 = vsel %vm990, %v1467, %v1469
      %v1471 = vrot.slane %v710, 2
      %v1472 = vsel %vm990, %v1469, %v1471
      %1473 = vrot.lane.b32.xlu0 %v1002, 40
      %v1474 = vpop.permute.xlu0 %1473
      %1475 = vrot.lane.b32.xlu0 %v1004, 40
      %v1476 = vpop.permute.xlu0 %1475
      %1477 = vrot.lane.b32.xlu0 %v1006, 40
      %v1478 = vpop.permute.xlu0 %1477
      %1479 = vrot.lane.b32.xlu0 %v1008, 40
      %v1480 = vpop.permute.xlu0 %1479
      %1481 = vrot.lane.b32.xlu0 %v1011, 40
      %v1482 = vpop.permute.xlu0 %1481
      %1483 = vrot.lane.b32.xlu0 %v1013, 40
      %v1484 = vpop.permute.xlu0 %1483
      %1485 = vrot.lane.b32.xlu0 %v1015, 40
      %v1486 = vpop.permute.xlu0 %1485
      %1487 = vrot.lane.b32.xlu0 %v1017, 40
      %v1488 = vpop.permute.xlu0 %1487
      %1489 = vrot.lane.b32.xlu0 %v1020, 40
      %v1490 = vpop.permute.xlu0 %1489
      %1491 = vrot.lane.b32.xlu0 %v1022, 40
      %v1492 = vpop.permute.xlu0 %1491
      %1493 = vrot.lane.b32.xlu0 %v1024, 40
      %v1494 = vpop.permute.xlu0 %1493
      %1495 = vrot.lane.b32.xlu0 %v1026, 40
      %v1496 = vpop.permute.xlu0 %1495
      %1497 = vrot.lane.b32.xlu0 %v1029, 40
      %v1498 = vpop.permute.xlu0 %1497
      %1499 = vrot.lane.b32.xlu0 %v1031, 40
      %v1500 = vpop.permute.xlu0 %1499
      %1501 = vrot.lane.b32.xlu0 %v1033, 40
      %v1502 = vpop.permute.xlu0 %1501
      %1503 = vrot.lane.b32.xlu0 %v1035, 40
      %v1504 = vpop.permute.xlu0 %1503
      %1505 = vrot.lane.b32.xlu0 %v1038, 40
      %v1506 = vpop.permute.xlu0 %1505
      %1507 = vrot.lane.b32.xlu0 %v1040, 40
      %v1508 = vpop.permute.xlu0 %1507
      %1509 = vrot.lane.b32.xlu0 %v1042, 40
      %v1510 = vpop.permute.xlu0 %1509
      %1511 = vrot.lane.b32.xlu0 %v1044, 40
      %v1512 = vpop.permute.xlu0 %1511
      %1513 = vrot.lane.b32.xlu0 %v1047, 40
      %v1514 = vpop.permute.xlu0 %1513
      %1515 = vrot.lane.b32.xlu0 %v1049, 40
      %v1516 = vpop.permute.xlu0 %1515
      %1517 = vrot.lane.b32.xlu0 %v1051, 40
      %v1518 = vpop.permute.xlu0 %1517
      %1519 = vrot.lane.b32.xlu0 %v1053, 40
      %v1520 = vpop.permute.xlu0 %1519
      %1521 = vrot.lane.b32.xlu0 %v1056, 40
      %v1522 = vpop.permute.xlu0 %1521
      %1523 = vrot.lane.b32.xlu0 %v1058, 40
      %v1524 = vpop.permute.xlu0 %1523
      %1525 = vrot.lane.b32.xlu0 %v1060, 40
      %v1526 = vpop.permute.xlu0 %1525
      %1527 = vrot.lane.b32.xlu0 %v1062, 40
      %v1528 = vpop.permute.xlu0 %1527
      %1529 = vrot.lane.b32.xlu0 %v1466, 40
      %v1530 = vpop.permute.xlu0 %1529
      %1531 = vrot.lane.b32.xlu0 %v1468, 40
      %v1532 = vpop.permute.xlu0 %1531
      %1533 = vrot.lane.b32.xlu0 %v1470, 40
      %v1534 = vpop.permute.xlu0 %1533
      %1535 = vrot.lane.b32.xlu0 %v1472, 40
      %v1536 = vpop.permute.xlu0 %1535
      %vm1569 = vcmask 392512
      %1570 = vst.msk [vmem:[#allocation3] sm:$0xff] %vm1569, %v1474
      %1571 = vst.msk [vmem:[#allocation3 + $0x8] sm:$0xff] %vm1569, %v1476
      %1572 = vst.msk [vmem:[#allocation3 + $0x10] sm:$0xff] %vm1569, %v1478
      %1573 = vst.msk [vmem:[#allocation3 + $0x18] sm:$0xff] %vm1569, %v1480
      %1574 = vst.msk [vmem:[#allocation3 + $0x20] sm:$0xff] %vm1569, %v1482
      %1575 = vst.msk [vmem:[#allocation3 + $0x28] sm:$0xff] %vm1569, %v1484
      %1576 = vst.msk [vmem:[#allocation3 + $0x30] sm:$0xff] %vm1569, %v1486
      %1577 = vst.msk [vmem:[#allocation3 + $0x38] sm:$0xff] %vm1569, %v1488
      %1578 = vst.msk [vmem:[#allocation3 + $0x40] sm:$0xff] %vm1569, %v1490
      %1579 = vst.msk [vmem:[#allocation3 + $0x48] sm:$0xff] %vm1569, %v1492
      %1580 = vst.msk [vmem:[#allocation3 + $0x50] sm:$0xff] %vm1569, %v1494
      %1581 = vst.msk [vmem:[#allocation3 + $0x58] sm:$0xff] %vm1569, %v1496
      %1582 = vst.msk [vmem:[#allocation3 + $0x60] sm:$0xff] %vm1569, %v1498
      %1583 = vst.msk [vmem:[#allocation3 + $0x68] sm:$0xff] %vm1569, %v1500
      %1584 = vst.msk [vmem:[#allocation3 + $0x70] sm:$0xff] %vm1569, %v1502
      %1585 = vst.msk [vmem:[#allocation3 + $0x78] sm:$0xff] %vm1569, %v1504
      %1586 = vst.msk [vmem:[#allocation3 + $0x80] sm:$0xff] %vm1569, %v1506
      %1587 = vst.msk [vmem:[#allocation3 + $0x88] sm:$0xff] %vm1569, %v1508
      %1588 = vst.msk [vmem:[#allocation3 + $0x90] sm:$0xff] %vm1569, %v1510
      %1589 = vst.msk [vmem:[#allocation3 + $0x98] sm:$0xff] %vm1569, %v1512
      %1590 = vst.msk [vmem:[#allocation3 + $0xa0] sm:$0xff] %vm1569, %v1514
      %1591 = vst.msk [vmem:[#allocation3 + $0xa8] sm:$0xff] %vm1569, %v1516
      %1592 = vst.msk [vmem:[#allocation3 + $0xb0] sm:$0xff] %vm1569, %v1518
      %1593 = vst.msk [vmem:[#allocation3 + $0xb8] sm:$0xff] %vm1569, %v1520
      %1594 = vst.msk [vmem:[#allocation3 + $0xc0] sm:$0xff] %vm1569, %v1522
      %1595 = vst.msk [vmem:[#allocation3 + $0xc8] sm:$0xff] %vm1569, %v1524
      %1596 = vst.msk [vmem:[#allocation3 + $0xd0] sm:$0xff] %vm1569, %v1526
      %1597 = vst.msk [vmem:[#allocation3 + $0xd8] sm:$0xff] %vm1569, %v1528
      %1598 = vst.msk [vmem:[#allocation3 + $0xe0] sm:$0xff] %vm1569, %v1530
      %1599 = vst.msk [vmem:[#allocation3 + $0xe8] sm:$0xff] %vm1569, %v1532
      %1600 = vst.msk [vmem:[#allocation3 + $0xf0] sm:$0xff] %vm1569, %v1534
      %1601 = vst.msk [vmem:[#allocation3 + $0xf8] sm:$0xff] %vm1569, %v1536
      %1606 = vrot.lane.b32.xlu0 %v676, 48
      %v1607 = vpop.permute.xlu0 %1606
      %1608 = vrot.lane.b32.xlu0 %v677, 48
      %v1609 = vpop.permute.xlu0 %1608
      %1610 = vrot.lane.b32.xlu0 %v678, 48
      %v1611 = vpop.permute.xlu0 %1610
      %1612 = vrot.lane.b32.xlu0 %v679, 48
      %v1613 = vpop.permute.xlu0 %1612
      %1614 = vrot.lane.b32.xlu0 %v681, 48
      %v1615 = vpop.permute.xlu0 %1614
      %1616 = vrot.lane.b32.xlu0 %v682, 48
      %v1617 = vpop.permute.xlu0 %1616
      %1618 = vrot.lane.b32.xlu0 %v683, 48
      %v1619 = vpop.permute.xlu0 %1618
      %1620 = vrot.lane.b32.xlu0 %v684, 48
      %v1621 = vpop.permute.xlu0 %1620
      %1622 = vrot.lane.b32.xlu0 %v686, 48
      %v1623 = vpop.permute.xlu0 %1622
      %1624 = vrot.lane.b32.xlu0 %v687, 48
      %v1625 = vpop.permute.xlu0 %1624
      %1626 = vrot.lane.b32.xlu0 %v688, 48
      %v1627 = vpop.permute.xlu0 %1626
      %1628 = vrot.lane.b32.xlu0 %v689, 48
      %v1629 = vpop.permute.xlu0 %1628
      %1630 = vrot.lane.b32.xlu0 %v691, 48
      %v1631 = vpop.permute.xlu0 %1630
      %1632 = vrot.lane.b32.xlu0 %v692, 48
      %v1633 = vpop.permute.xlu0 %1632
      %1634 = vrot.lane.b32.xlu0 %v693, 48
      %v1635 = vpop.permute.xlu0 %1634
      %1636 = vrot.lane.b32.xlu0 %v694, 48
      %v1637 = vpop.permute.xlu0 %1636
      %1638 = vrot.lane.b32.xlu0 %v696, 48
      %v1639 = vpop.permute.xlu0 %1638
      %1640 = vrot.lane.b32.xlu0 %v697, 48
      %v1641 = vpop.permute.xlu0 %1640
      %1642 = vrot.lane.b32.xlu0 %v698, 48
      %v1643 = vpop.permute.xlu0 %1642
      %1644 = vrot.lane.b32.xlu0 %v699, 48
      %v1645 = vpop.permute.xlu0 %1644
      %1646 = vrot.lane.b32.xlu0 %v701, 48
      %v1647 = vpop.permute.xlu0 %1646
      %1648 = vrot.lane.b32.xlu0 %v702, 48
      %v1649 = vpop.permute.xlu0 %1648
      %1650 = vrot.lane.b32.xlu0 %v703, 48
      %v1651 = vpop.permute.xlu0 %1650
      %1652 = vrot.lane.b32.xlu0 %v704, 48
      %v1653 = vpop.permute.xlu0 %1652
      %1654 = vrot.lane.b32.xlu0 %v706, 48
      %v1655 = vpop.permute.xlu0 %1654
      %1656 = vrot.lane.b32.xlu0 %v707, 48
      %v1657 = vpop.permute.xlu0 %1656
      %1658 = vrot.lane.b32.xlu0 %v708, 48
      %v1659 = vpop.permute.xlu0 %1658
      %1660 = vrot.lane.b32.xlu0 %v709, 48
      %v1661 = vpop.permute.xlu0 %1660
      %1662 = vrot.lane.b32.xlu0 %v711, 48
      %v1663 = vpop.permute.xlu0 %1662
      %1664 = vrot.lane.b32.xlu0 %v712, 48
      %v1665 = vpop.permute.xlu0 %1664
      %1666 = vrot.lane.b32.xlu0 %v713, 48
      %v1667 = vpop.permute.xlu0 %1666
      %1668 = vrot.lane.b32.xlu0 %v714, 48
      %v1669 = vpop.permute.xlu0 %1668
      %vm1702 = vcmask 458112
      %1703 = vst.msk [vmem:[#allocation3] sm:$0xff] %vm1702, %v1607
      %1704 = vst.msk [vmem:[#allocation3 + $0x8] sm:$0xff] %vm1702, %v1609
      %1705 = vst.msk [vmem:[#allocation3 + $0x10] sm:$0xff] %vm1702, %v1611
      %1706 = vst.msk [vmem:[#allocation3 + $0x18] sm:$0xff] %vm1702, %v1613
      %1707 = vst.msk [vmem:[#allocation3 + $0x20] sm:$0xff] %vm1702, %v1615
      %1708 = vst.msk [vmem:[#allocation3 + $0x28] sm:$0xff] %vm1702, %v1617
      %1709 = vst.msk [vmem:[#allocation3 + $0x30] sm:$0xff] %vm1702, %v1619
      %1710 = vst.msk [vmem:[#allocation3 + $0x38] sm:$0xff] %vm1702, %v1621
      %1711 = vst.msk [vmem:[#allocation3 + $0x40] sm:$0xff] %vm1702, %v1623
      %1712 = vst.msk [vmem:[#allocation3 + $0x48] sm:$0xff] %vm1702, %v1625
      %1713 = vst.msk [vmem:[#allocation3 + $0x50] sm:$0xff] %vm1702, %v1627
      %1714 = vst.msk [vmem:[#allocation3 + $0x58] sm:$0xff] %vm1702, %v1629
      %1715 = vst.msk [vmem:[#allocation3 + $0x60] sm:$0xff] %vm1702, %v1631
      %1716 = vst.msk [vmem:[#allocation3 + $0x68] sm:$0xff] %vm1702, %v1633
      %1717 = vst.msk [vmem:[#allocation3 + $0x70] sm:$0xff] %vm1702, %v1635
      %1718 = vst.msk [vmem:[#allocation3 + $0x78] sm:$0xff] %vm1702, %v1637
      %1719 = vst.msk [vmem:[#allocation3 + $0x80] sm:$0xff] %vm1702, %v1639
      %1720 = vst.msk [vmem:[#allocation3 + $0x88] sm:$0xff] %vm1702, %v1641
      %1721 = vst.msk [vmem:[#allocation3 + $0x90] sm:$0xff] %vm1702, %v1643
      %1722 = vst.msk [vmem:[#allocation3 + $0x98] sm:$0xff] %vm1702, %v1645
      %1723 = vst.msk [vmem:[#allocation3 + $0xa0] sm:$0xff] %vm1702, %v1647
      %1724 = vst.msk [vmem:[#allocation3 + $0xa8] sm:$0xff] %vm1702, %v1649
      %1725 = vst.msk [vmem:[#allocation3 + $0xb0] sm:$0xff] %vm1702, %v1651
      %1726 = vst.msk [vmem:[#allocation3 + $0xb8] sm:$0xff] %vm1702, %v1653
      %1727 = vst.msk [vmem:[#allocation3 + $0xc0] sm:$0xff] %vm1702, %v1655
      %1728 = vst.msk [vmem:[#allocation3 + $0xc8] sm:$0xff] %vm1702, %v1657
      %1729 = vst.msk [vmem:[#allocation3 + $0xd0] sm:$0xff] %vm1702, %v1659
      %1730 = vst.msk [vmem:[#allocation3 + $0xd8] sm:$0xff] %vm1702, %v1661
      %1731 = vst.msk [vmem:[#allocation3 + $0xe0] sm:$0xff] %vm1702, %v1663
      %1732 = vst.msk [vmem:[#allocation3 + $0xe8] sm:$0xff] %vm1702, %v1665
      %1733 = vst.msk [vmem:[#allocation3 + $0xf0] sm:$0xff] %vm1702, %v1667
      %1734 = vst.msk [vmem:[#allocation3 + $0xf8] sm:$0xff] %vm1702, %v1669
      %v1736 = vrot.slane %v711, 1
      %v1737 = vrot.slane %v712, 1
      %v1738 = vsel %vm788, %v1736, %v1737
      %v1739 = vrot.slane %v713, 1
      %v1740 = vsel %vm788, %v1737, %v1739
      %v1741 = vrot.slane %v714, 1
      %v1742 = vsel %vm788, %v1739, %v1741
      %v1743 = vrot.slane %v715, 1
      %v1744 = vsel %vm788, %v1741, %v1743
      %1745 = vrot.lane.b32.xlu0 %v809, 56
      %v1746 = vpop.permute.xlu0 %1745
      %1747 = vrot.lane.b32.xlu0 %v811, 56
      %v1748 = vpop.permute.xlu0 %1747
      %1749 = vrot.lane.b32.xlu0 %v813, 56
      %v1750 = vpop.permute.xlu0 %1749
      %1751 = vrot.lane.b32.xlu0 %v815, 56
      %v1752 = vpop.permute.xlu0 %1751
      %1753 = vrot.lane.b32.xlu0 %v818, 56
      %v1754 = vpop.permute.xlu0 %1753
      %1755 = vrot.lane.b32.xlu0 %v820, 56
      %v1756 = vpop.permute.xlu0 %1755
      %1757 = vrot.lane.b32.xlu0 %v822, 56
      %v1758 = vpop.permute.xlu0 %1757
      %1759 = vrot.lane.b32.xlu0 %v824, 56
      %v1760 = vpop.permute.xlu0 %1759
      %1761 = vrot.lane.b32.xlu0 %v827, 56
      %v1762 = vpop.permute.xlu0 %1761
      %1763 = vrot.lane.b32.xlu0 %v829, 56
      %v1764 = vpop.permute.xlu0 %1763
      %1765 = vrot.lane.b32.xlu0 %v831, 56
      %v1766 = vpop.permute.xlu0 %1765
      %1767 = vrot.lane.b32.xlu0 %v833, 56
      %v1768 = vpop.permute.xlu0 %1767
      %1769 = vrot.lane.b32.xlu0 %v836, 56
      %v1770 = vpop.permute.xlu0 %1769
      %1771 = vrot.lane.b32.xlu0 %v838, 56
      %v1772 = vpop.permute.xlu0 %1771
      %1773 = vrot.lane.b32.xlu0 %v840, 56
      %v1774 = vpop.permute.xlu0 %1773
      %1775 = vrot.lane.b32.xlu0 %v842, 56
      %v1776 = vpop.permute.xlu0 %1775
      %1777 = vrot.lane.b32.xlu0 %v845, 56
      %v1778 = vpop.permute.xlu0 %1777
      %1779 = vrot.lane.b32.xlu0 %v847, 56
      %v1780 = vpop.permute.xlu0 %1779
      %1781 = vrot.lane.b32.xlu0 %v849, 56
      %v1782 = vpop.permute.xlu0 %1781
      %1783 = vrot.lane.b32.xlu0 %v851, 56
      %v1784 = vpop.permute.xlu0 %1783
      %1785 = vrot.lane.b32.xlu0 %v854, 56
      %v1786 = vpop.permute.xlu0 %1785
      %1787 = vrot.lane.b32.xlu0 %v856, 56
      %v1788 = vpop.permute.xlu0 %1787
      %1789 = vrot.lane.b32.xlu0 %v858, 56
      %v1790 = vpop.permute.xlu0 %1789
      %1791 = vrot.lane.b32.xlu0 %v860, 56
      %v1792 = vpop.permute.xlu0 %1791
      %1793 = vrot.lane.b32.xlu0 %v1328, 56
      %v1794 = vpop.permute.xlu0 %1793
      %1795 = vrot.lane.b32.xlu0 %v1330, 56
      %v1796 = vpop.permute.xlu0 %1795
      %1797 = vrot.lane.b32.xlu0 %v1332, 56
      %v1798 = vpop.permute.xlu0 %1797
      %1799 = vrot.lane.b32.xlu0 %v1334, 56
      %v1800 = vpop.permute.xlu0 %1799
      %1801 = vrot.lane.b32.xlu0 %v1738, 56
      %v1802 = vpop.permute.xlu0 %1801
      %1803 = vrot.lane.b32.xlu0 %v1740, 56
      %v1804 = vpop.permute.xlu0 %1803
      %1805 = vrot.lane.b32.xlu0 %v1742, 56
      %v1806 = vpop.permute.xlu0 %1805
      %1807 = vrot.lane.b32.xlu0 %v1744, 56
      %v1808 = vpop.permute.xlu0 %1807
      %vm1841 = vcmask 523712
      %1842 = vst.msk [vmem:[#allocation3] sm:$0xff] %vm1841, %v1746
      %1843 = vst.msk [vmem:[#allocation3 + $0x8] sm:$0xff] %vm1841, %v1748
      %1844 = vst.msk [vmem:[#allocation3 + $0x10] sm:$0xff] %vm1841, %v1750
      %1845 = vst.msk [vmem:[#allocation3 + $0x18] sm:$0xff] %vm1841, %v1752
      %1846 = vst.msk [vmem:[#allocation3 + $0x20] sm:$0xff] %vm1841, %v1754
      %1847 = vst.msk [vmem:[#allocation3 + $0x28] sm:$0xff] %vm1841, %v1756
      %1848 = vst.msk [vmem:[#allocation3 + $0x30] sm:$0xff] %vm1841, %v1758
      %1849 = vst.msk [vmem:[#allocation3 + $0x38] sm:$0xff] %vm1841, %v1760
      %1850 = vst.msk [vmem:[#allocation3 + $0x40] sm:$0xff] %vm1841, %v1762
      %1851 = vst.msk [vmem:[#allocation3 + $0x48] sm:$0xff] %vm1841, %v1764
      %1852 = vst.msk [vmem:[#allocation3 + $0x50] sm:$0xff] %vm1841, %v1766
      %1853 = vst.msk [vmem:[#allocation3 + $0x58] sm:$0xff] %vm1841, %v1768
      %1854 = vst.msk [vmem:[#allocation3 + $0x60] sm:$0xff] %vm1841, %v1770
      %1855 = vst.msk [vmem:[#allocation3 + $0x68] sm:$0xff] %vm1841, %v1772
      %1856 = vst.msk [vmem:[#allocation3 + $0x70] sm:$0xff] %vm1841, %v1774
      %1857 = vst.msk [vmem:[#allocation3 + $0x78] sm:$0xff] %vm1841, %v1776
      %1858 = vst.msk [vmem:[#allocation3 + $0x80] sm:$0xff] %vm1841, %v1778
      %1859 = vst.msk [vmem:[#allocation3 + $0x88] sm:$0xff] %vm1841, %v1780
      %1860 = vst.msk [vmem:[#allocation3 + $0x90] sm:$0xff] %vm1841, %v1782
      %1861 = vst.msk [vmem:[#allocation3 + $0x98] sm:$0xff] %vm1841, %v1784
      %1862 = vst.msk [vmem:[#allocation3 + $0xa0] sm:$0xff] %vm1841, %v1786
      %1863 = vst.msk [vmem:[#allocation3 + $0xa8] sm:$0xff] %vm1841, %v1788
      %1864 = vst.msk [vmem:[#allocation3 + $0xb0] sm:$0xff] %vm1841, %v1790
      %1865 = vst.msk [vmem:[#allocation3 + $0xb8] sm:$0xff] %vm1841, %v1792
      %1866 = vst.msk [vmem:[#allocation3 + $0xc0] sm:$0xff] %vm1841, %v1794
      %1867 = vst.msk [vmem:[#allocation3 + $0xc8] sm:$0xff] %vm1841, %v1796
      %1868 = vst.msk [vmem:[#allocation3 + $0xd0] sm:$0xff] %vm1841, %v1798
      %1869 = vst.msk [vmem:[#allocation3 + $0xd8] sm:$0xff] %vm1841, %v1800
      %1870 = vst.msk [vmem:[#allocation3 + $0xe0] sm:$0xff] %vm1841, %v1802
      %1871 = vst.msk [vmem:[#allocation3 + $0xe8] sm:$0xff] %vm1841, %v1804
      %1872 = vst.msk [vmem:[#allocation3 + $0xf0] sm:$0xff] %vm1841, %v1806
      %1873 = vst.msk [vmem:[#allocation3 + $0xf8] sm:$0xff] %vm1841, %v1808
      %v1874 = vrot.slane %v711, 2
      %v1875 = vrot.slane %v712, 2
      %v1876 = vsel %vm990, %v1874, %v1875
      %v1877 = vrot.slane %v713, 2
      %v1878 = vsel %vm990, %v1875, %v1877
      %v1879 = vrot.slane %v714, 2
      %v1880 = vsel %vm990, %v1877, %v1879
      %v1881 = vrot.slane %v715, 2
      %v1882 = vsel %vm990, %v1879, %v1881
      %1883 = vrot.lane.b32.xlu0 %v1011, 64
      %v1884 = vpop.permute.xlu0 %1883
      %1885 = vrot.lane.b32.xlu0 %v1013, 64
      %v1886 = vpop.permute.xlu0 %1885
      %1887 = vrot.lane.b32.xlu0 %v1015, 64
      %v1888 = vpop.permute.xlu0 %1887
      %1889 = vrot.lane.b32.xlu0 %v1017, 64
      %v1890 = vpop.permute.xlu0 %1889
      %1891 = vrot.lane.b32.xlu0 %v1020, 64
      %v1892 = vpop.permute.xlu0 %1891
      %1893 = vrot.lane.b32.xlu0 %v1022, 64
      %v1894 = vpop.permute.xlu0 %1893
      %1895 = vrot.lane.b32.xlu0 %v1024, 64
      %v1896 = vpop.permute.xlu0 %1895
      %1897 = vrot.lane.b32.xlu0 %v1026, 64
      %v1898 = vpop.permute.xlu0 %1897
      %1899 = vrot.lane.b32.xlu0 %v1029, 64
      %v1900 = vpop.permute.xlu0 %1899
      %1901 = vrot.lane.b32.xlu0 %v1031, 64
      %v1902 = vpop.permute.xlu0 %1901
      %1903 = vrot.lane.b32.xlu0 %v1033, 64
      %v1904 = vpop.permute.xlu0 %1903
      %1905 = vrot.lane.b32.xlu0 %v1035, 64
      %v1906 = vpop.permute.xlu0 %1905
      %1907 = vrot.lane.b32.xlu0 %v1038, 64
      %v1908 = vpop.permute.xlu0 %1907
      %1909 = vrot.lane.b32.xlu0 %v1040, 64
      %v1910 = vpop.permute.xlu0 %1909
      %1911 = vrot.lane.b32.xlu0 %v1042, 64
      %v1912 = vpop.permute.xlu0 %1911
      %1913 = vrot.lane.b32.xlu0 %v1044, 64
      %v1914 = vpop.permute.xlu0 %1913
      %1915 = vrot.lane.b32.xlu0 %v1047, 64
      %v1916 = vpop.permute.xlu0 %1915
      %1917 = vrot.lane.b32.xlu0 %v1049, 64
      %v1918 = vpop.permute.xlu0 %1917
      %1919 = vrot.lane.b32.xlu0 %v1051, 64
      %v1920 = vpop.permute.xlu0 %1919
      %1921 = vrot.lane.b32.xlu0 %v1053, 64
      %v1922 = vpop.permute.xlu0 %1921
      %1923 = vrot.lane.b32.xlu0 %v1056, 64
      %v1924 = vpop.permute.xlu0 %1923
      %1925 = vrot.lane.b32.xlu0 %v1058, 64
      %v1926 = vpop.permute.xlu0 %1925
      %1927 = vrot.lane.b32.xlu0 %v1060, 64
      %v1928 = vpop.permute.xlu0 %1927
      %1929 = vrot.lane.b32.xlu0 %v1062, 64
      %v1930 = vpop.permute.xlu0 %1929
      %1931 = vrot.lane.b32.xlu0 %v1466, 64
      %v1932 = vpop.permute.xlu0 %1931
      %1933 = vrot.lane.b32.xlu0 %v1468, 64
      %v1934 = vpop.permute.xlu0 %1933
      %1935 = vrot.lane.b32.xlu0 %v1470, 64
      %v1936 = vpop.permute.xlu0 %1935
      %1937 = vrot.lane.b32.xlu0 %v1472, 64
      %v1938 = vpop.permute.xlu0 %1937
      %1939 = vrot.lane.b32.xlu0 %v1876, 64
      %v1940 = vpop.permute.xlu0 %1939
      %1941 = vrot.lane.b32.xlu0 %v1878, 64
      %v1942 = vpop.permute.xlu0 %1941
      %1943 = vrot.lane.b32.xlu0 %v1880, 64
      %v1944 = vpop.permute.xlu0 %1943
      %1945 = vrot.lane.b32.xlu0 %v1882, 64
      %v1946 = vpop.permute.xlu0 %1945
      %vm1979 = vcmask 589312
      %1980 = vst.msk [vmem:[#allocation3] sm:$0xff] %vm1979, %v1884
      %1981 = vst.msk [vmem:[#allocation3 + $0x8] sm:$0xff] %vm1979, %v1886
      %1982 = vst.msk [vmem:[#allocation3 + $0x10] sm:$0xff] %vm1979, %v1888
      %1983 = vst.msk [vmem:[#allocation3 + $0x18] sm:$0xff] %vm1979, %v1890
      %1984 = vst.msk [vmem:[#allocation3 + $0x20] sm:$0xff] %vm1979, %v1892
      %1985 = vst.msk [vmem:[#allocation3 + $0x28] sm:$0xff] %vm1979, %v1894
      %1986 = vst.msk [vmem:[#allocation3 + $0x30] sm:$0xff] %vm1979, %v1896
      %1987 = vst.msk [vmem:[#allocation3 + $0x38] sm:$0xff] %vm1979, %v1898
      %1988 = vst.msk [vmem:[#allocation3 + $0x40] sm:$0xff] %vm1979, %v1900
      %1989 = vst.msk [vmem:[#allocation3 + $0x48] sm:$0xff] %vm1979, %v1902
      %1990 = vst.msk [vmem:[#allocation3 + $0x50] sm:$0xff] %vm1979, %v1904
      %1991 = vst.msk [vmem:[#allocation3 + $0x58] sm:$0xff] %vm1979, %v1906
      %1992 = vst.msk [vmem:[#allocation3 + $0x60] sm:$0xff] %vm1979, %v1908
      %1993 = vst.msk [vmem:[#allocation3 + $0x68] sm:$0xff] %vm1979, %v1910
      %1994 = vst.msk [vmem:[#allocation3 + $0x70] sm:$0xff] %vm1979, %v1912
      %1995 = vst.msk [vmem:[#allocation3 + $0x78] sm:$0xff] %vm1979, %v1914
      %1996 = vst.msk [vmem:[#allocation3 + $0x80] sm:$0xff] %vm1979, %v1916
      %1997 = vst.msk [vmem:[#allocation3 + $0x88] sm:$0xff] %vm1979, %v1918
      %1998 = vst.msk [vmem:[#allocation3 + $0x90] sm:$0xff] %vm1979, %v1920
      %1999 = vst.msk [vmem:[#allocation3 + $0x98] sm:$0xff] %vm1979, %v1922
      %2000 = vst.msk [vmem:[#allocation3 + $0xa0] sm:$0xff] %vm1979, %v1924
      %2001 = vst.msk [vmem:[#allocation3 + $0xa8] sm:$0xff] %vm1979, %v1926
      %2002 = vst.msk [vmem:[#allocation3 + $0xb0] sm:$0xff] %vm1979, %v1928
      %2003 = vst.msk [vmem:[#allocation3 + $0xb8] sm:$0xff] %vm1979, %v1930
      %2004 = vst.msk [vmem:[#allocation3 + $0xc0] sm:$0xff] %vm1979, %v1932
      %2005 = vst.msk [vmem:[#allocation3 + $0xc8] sm:$0xff] %vm1979, %v1934
      %2006 = vst.msk [vmem:[#allocation3 + $0xd0] sm:$0xff] %vm1979, %v1936
      %2007 = vst.msk [vmem:[#allocation3 + $0xd8] sm:$0xff] %vm1979, %v1938
      %2008 = vst.msk [vmem:[#allocation3 + $0xe0] sm:$0xff] %vm1979, %v1940
      %2009 = vst.msk [vmem:[#allocation3 + $0xe8] sm:$0xff] %vm1979, %v1942
      %2010 = vst.msk [vmem:[#allocation3 + $0xf0] sm:$0xff] %vm1979, %v1944
      %2011 = vst.msk [vmem:[#allocation3 + $0xf8] sm:$0xff] %vm1979, %v1946
      %v2012 = vld [vmem:[#allocation3] sm:$0xff]
      %v2013 = vld [vmem:[#allocation3 + $0x8] sm:$0xff]
      %v2014 = vld [vmem:[#allocation3 + $0x10] sm:$0xff]
      %v2015 = vld [vmem:[#allocation3 + $0x18] sm:$0xff]
      %v2016 = vld [vmem:[#allocation3 + $0x20] sm:$0xff]
      %v2017 = vld [vmem:[#allocation3 + $0x28] sm:$0xff]
      %v2018 = vld [vmem:[#allocation3 + $0x30] sm:$0xff]
      %v2019 = vld [vmem:[#allocation3 + $0x38] sm:$0xff]
      %v2020 = vld [vmem:[#allocation3 + $0x40] sm:$0xff]
      %v2021 = vld [vmem:[#allocation3 + $0x48] sm:$0xff]
      %v2022 = vld [vmem:[#allocation3 + $0x50] sm:$0xff]
      %v2023 = vld [vmem:[#allocation3 + $0x58] sm:$0xff]
      %v2024 = vld [vmem:[#allocation3 + $0x60] sm:$0xff]
      %v2025 = vld [vmem:[#allocation3 + $0x68] sm:$0xff]
      %v2026 = vld [vmem:[#allocation3 + $0x70] sm:$0xff]
      %v2027 = vld [vmem:[#allocation3 + $0x78] sm:$0xff]
      %v2028 = vld [vmem:[#allocation3 + $0x80] sm:$0xff]
      %v2029 = vld [vmem:[#allocation3 + $0x88] sm:$0xff]
      %v2030 = vld [vmem:[#allocation3 + $0x90] sm:$0xff]
      %v2031 = vld [vmem:[#allocation3 + $0x98] sm:$0xff]
      %v2032 = vld [vmem:[#allocation3 + $0xa0] sm:$0xff]
      %v2033 = vld [vmem:[#allocation3 + $0xa8] sm:$0xff]
      %v2034 = vld [vmem:[#allocation3 + $0xb0] sm:$0xff]
      %v2035 = vld [vmem:[#allocation3 + $0xb8] sm:$0xff]
      %v2036 = vld [vmem:[#allocation3 + $0xc0] sm:$0xff]
      %v2037 = vld [vmem:[#allocation3 + $0xc8] sm:$0xff]
      %v2038 = vld [vmem:[#allocation3 + $0xd0] sm:$0xff]
      %v2039 = vld [vmem:[#allocation3 + $0xd8] sm:$0xff]
      %v2040 = vld [vmem:[#allocation3 + $0xe0] sm:$0xff]
      %v2041 = vld [vmem:[#allocation3 + $0xe8] sm:$0xff]
      %v2042 = vld [vmem:[#allocation3 + $0xf0] sm:$0xff]
      %v2043 = vld [vmem:[#allocation3 + $0xf8] sm:$0xff]
      %v2044 = vld [vmem:[%s2] sm:$0xff]
      %v2045 = vld [vmem:[%s2 + $0x8] sm:$0xff]
      %v2046 = vld [vmem:[%s2 + $0x10] sm:$0xff]
      %v2047 = vld [vmem:[%s2 + $0x18] sm:$0xff]
      %v2048 = vld [vmem:[%s2 + $0x20] sm:$0xff]
      %v2049 = vld [vmem:[%s2 + $0x28] sm:$0xff]
      %v2050 = vld [vmem:[%s2 + $0x30] sm:$0xff]
      %v2051 = vld [vmem:[%s2 + $0x38] sm:$0xff]
      %v2052 = vld [vmem:[%s2 + $0x40] sm:$0xff]
      %vm2053 = vcmask 588800
      %v2055 = vsel %vm2053, %v2012, 0
      %v2058 = vsel %vm2053, %v2013, 0
      %v2061 = vsel %vm2053, %v2014, 0
      %v2064 = vsel %vm2053, %v2015, 0
      %v2067 = vsel %vm2053, %v2016, 0
      %v2070 = vsel %vm2053, %v2017, 0
      %v2073 = vsel %vm2053, %v2018, 0
      %v2076 = vsel %vm2053, %v2019, 0
      %v2079 = vsel %vm2053, %v2020, 0
      %v2082 = vsel %vm2053, %v2021, 0
      %v2085 = vsel %vm2053, %v2022, 0
      %v2088 = vsel %vm2053, %v2023, 0
      %v2091 = vsel %vm2053, %v2024, 0
      %v2094 = vsel %vm2053, %v2025, 0
      %v2097 = vsel %vm2053, %v2026, 0
      %v2100 = vsel %vm2053, %v2027, 0
      %v2103 = vsel %vm2053, %v2028, 0
      %v2106 = vsel %vm2053, %v2029, 0
      %v2109 = vsel %vm2053, %v2030, 0
      %v2112 = vsel %vm2053, %v2031, 0
      %v2115 = vsel %vm2053, %v2032, 0
      %v2118 = vsel %vm2053, %v2033, 0
      %v2121 = vsel %vm2053, %v2034, 0
      %v2124 = vsel %vm2053, %v2035, 0
      %v2127 = vsel %vm2053, %v2036, 0
      %v2130 = vsel %vm2053, %v2037, 0
      %v2133 = vsel %vm2053, %v2038, 0
      %v2136 = vsel %vm2053, %v2039, 0
      %v2139 = vsel %vm2053, %v2040, 0
      %v2142 = vsel %vm2053, %v2041, 0
      %v2145 = vsel %vm2053, %v2042, 0
      %v2148 = vsel %vm2053, %v2043, 0
      %2150 = vmatprep.subr.mxu0 0.0
      %2151 = vmatpush1.msra.mxu0 %v2044
      %2152 = vmatprep.subr.mxu0 0.0
      %2153 = vmatpush1.msra.mxu0 %v2045
      %2154 = vmatprep.subr.mxu0 0.0
      %2155 = vmatpush1.msra.mxu0 %v2046
      %2156 = vmatprep.subr.mxu0 0.0
      %2157 = vmatpush1.msra.mxu0 %v2047
      %2158 = vmatprep.subr.mxu0 0.0
      %2159 = vmatpush1.msra.mxu0 %v2048
      %2160 = vmatprep.subr.mxu0 0.0
      %2161 = vmatpush1.msra.mxu0 %v2049
      %2162 = vmatprep.subr.mxu0 0.0
      %2163 = vmatpush1.msra.mxu0 %v2050
      %2164 = vmatprep.subr.mxu0 0.0
      %2165 = vmatpush1.msra.mxu0 %v2051
      %2166 = vmatprep.subr.mxu0 0.0
      %2167 = vmatpush1.msra.mxu0 %v2052
      %2168 = vmatprep.subr.mxu0 0.0
      %2169 = vmatpush1.msra.mxu0 0.0
      %2170 = vmatprep.subr.mxu0 0.0
      %2171 = vmatpush1.msra.mxu0 0.0
      %2172 = vmatprep.subr.mxu0 0.0
      %2173 = vmatpush1.msra.mxu0 0.0
      %2174 = vmatprep.subr.mxu0 0.0
      %2175 = vmatpush1.msra.mxu0 0.0
      %2176 = vmatprep.subr.mxu0 0.0
      %2177 = vmatpush1.msra.mxu0 0.0
      %2178 = vmatprep.subr.mxu0 0.0
      %2179 = vmatpush1.msra.mxu0 0.0
      %2180 = vmatprep.subr.mxu0 0.0
      %2181 = vmatpush1.msra.mxu0 0.0
      %2182 = vmatprep.subr.mxu0 0.0
      %2183 = vmatpush1.msra.mxu0 0.0
      %2184 = vmatprep.subr.mxu0 0.0
      %2185 = vmatpush1.msra.mxu0 0.0
      %2186 = vmatprep.subr.mxu0 0.0
      %2187 = vmatpush1.msra.mxu0 0.0
      %2188 = vmatprep.subr.mxu0 0.0
      %2189 = vmatpush1.msra.mxu0 0.0
      %2190 = vmatprep.subr.mxu0 0.0
      %2191 = vmatpush1.msra.mxu0 0.0
      %2192 = vmatprep.subr.mxu0 0.0
      %2193 = vmatpush1.msra.mxu0 0.0
      %2194 = vmatprep.subr.mxu0 0.0
      %2195 = vmatpush1.msra.mxu0 0.0
      %2196 = vmatprep.subr.mxu0 0.0
      %2197 = vmatpush1.msra.mxu0 0.0
      %2198 = vmatprep.subr.mxu0 0.0
      %2199 = vmatpush1.msra.mxu0 0.0
      %2200 = vmatprep.subr.mxu0 0.0
      %2201 = vmatpush1.msra.mxu0 0.0
      %2202 = vmatprep.subr.mxu0 0.0
      %2203 = vmatpush1.msra.mxu0 0.0
      %2204 = vmatprep.subr.mxu0 0.0
      %2205 = vmatpush1.msra.mxu0 0.0
      %2206 = vmatprep.subr.mxu0 0.0
      %2207 = vmatpush1.msra.mxu0 0.0
      %2208 = vmatprep.subr.mxu0 0.0
      %2209 = vmatpush1.msra.mxu0 0.0
      %2210 = vmatprep.subr.mxu0 0.0
      %2211 = vmatpush1.msra.mxu0 0.0
      %2212 = vmatprep.subr.mxu0 0.0
      %2213 = vmatpush1.msra.mxu0 0.0
      %2214 = vmatprep.mubr.f32.mxu0 0.0
      %2215 = vmatmul.mubr.f32.gmra.mrb[0].mxu0 %v2055
      %v2216 = vpop.f32.mrb[0].mxu0
      %v2217 = vadd.f32 0.0, %v2216
      %v2218 = vpop.f32.mrb[0].mxu0
      %2219 = vmatprep.mubr.f32.mxu0 0.0
      %2220 = vmatmul.mubr.f32.gmra.mrb[0].mxu0 %v2058
      %v2221 = vpop.f32.mrb[0].mxu0
      %v2222 = vadd.f32 0.0, %v2221
      %v2223 = vpop.f32.mrb[0].mxu0
      %2224 = vmatprep.mubr.f32.mxu0 0.0
      %2225 = vmatmul.mubr.f32.gmra.mrb[0].mxu0 %v2061
      %v2226 = vpop.f32.mrb[0].mxu0
      %v2227 = vadd.f32 0.0, %v2226
      %v2228 = vpop.f32.mrb[0].mxu0
      %2229 = vmatprep.mubr.f32.mxu0 0.0
      %2230 = vmatmul.mubr.f32.gmra.mrb[0].mxu0 %v2064
      %v2231 = vpop.f32.mrb[0].mxu0
      %v2232 = vadd.f32 0.0, %v2231
      %v2233 = vpop.f32.mrb[0].mxu0
      %2234 = vmatprep.mubr.f32.mxu0 0.0
      %2235 = vmatmul.mubr.f32.gmra.mrb[0].mxu0 %v2067
      %v2236 = vpop.f32.mrb[0].mxu0
      %v2237 = vadd.f32 0.0, %v2236
      %v2238 = vpop.f32.mrb[0].mxu0
      %2239 = vmatprep.mubr.f32.mxu0 0.0
      %2240 = vmatmul.mubr.f32.gmra.mrb[0].mxu0 %v2070
      %v2241 = vpop.f32.mrb[0].mxu0
      %v2242 = vadd.f32 0.0, %v2241
      %v2243 = vpop.f32.mrb[0].mxu0
      %2244 = vmatprep.mubr.f32.mxu0 0.0
      %2245 = vmatmul.mubr.f32.gmra.mrb[0].mxu0 %v2073
      %v2246 = vpop.f32.mrb[0].mxu0
      %v2247 = vadd.f32 0.0, %v2246
      %v2248 = vpop.f32.mrb[0].mxu0
      %2249 = vmatprep.mubr.f32.mxu0 0.0
      %2250 = vmatmul.mubr.f32.gmra.mrb[0].mxu0 %v2076
      %v2251 = vpop.f32.mrb[0].mxu0
      %v2252 = vadd.f32 0.0, %v2251
      %v2253 = vpop.f32.mrb[0].mxu0
      %2254 = vmatprep.mubr.f32.mxu0 0.0
      %2255 = vmatmul.mubr.f32.gmra.mrb[0].mxu0 %v2079
      %v2256 = vpop.f32.mrb[0].mxu0
      %v2257 = vadd.f32 0.0, %v2256
      %v2258 = vpop.f32.mrb[0].mxu0
      %2259 = vmatprep.mubr.f32.mxu0 0.0
      %2260 = vmatmul.mubr.f32.gmra.mrb[0].mxu0 %v2082
      %v2261 = vpop.f32.mrb[0].mxu0
      %v2262 = vadd.f32 0.0, %v2261
      %v2263 = vpop.f32.mrb[0].mxu0
      %2264 = vmatprep.mubr.f32.mxu0 0.0
      %2265 = vmatmul.mubr.f32.gmra.mrb[0].mxu0 %v2085
      %v2266 = vpop.f32.mrb[0].mxu0
      %v2267 = vadd.f32 0.0, %v2266
      %v2268 = vpop.f32.mrb[0].mxu0
      %2269 = vmatprep.mubr.f32.mxu0 0.0
      %2270 = vmatmul.mubr.f32.gmra.mrb[0].mxu0 %v2088
      %v2271 = vpop.f32.mrb[0].mxu0
      %v2272 = vadd.f32 0.0, %v2271
      %v2273 = vpop.f32.mrb[0].mxu0
      %2274 = vmatprep.mubr.f32.mxu0 0.0
      %2275 = vmatmul.mubr.f32.gmra.mrb[0].mxu0 %v2091
      %v2276 = vpop.f32.mrb[0].mxu0
      %v2277 = vadd.f32 0.0, %v2276
      %v2278 = vpop.f32.mrb[0].mxu0
      %2279 = vmatprep.mubr.f32.mxu0 0.0
      %2280 = vmatmul.mubr.f32.gmra.mrb[0].mxu0 %v2094
      %v2281 = vpop.f32.mrb[0].mxu0
      %v2282 = vadd.f32 0.0, %v2281
      %v2283 = vpop.f32.mrb[0].mxu0
      %2284 = vmatprep.mubr.f32.mxu0 0.0
      %2285 = vmatmul.mubr.f32.gmra.mrb[0].mxu0 %v2097
      %v2286 = vpop.f32.mrb[0].mxu0
      %v2287 = vadd.f32 0.0, %v2286
      %v2288 = vpop.f32.mrb[0].mxu0
      %2289 = vmatprep.mubr.f32.mxu0 0.0
      %2290 = vmatmul.mubr.f32.gmra.mrb[0].mxu0 %v2100
      %v2291 = vpop.f32.mrb[0].mxu0
      %v2292 = vadd.f32 0.0, %v2291
      %v2293 = vpop.f32.mrb[0].mxu0
      %2294 = vmatprep.mubr.f32.mxu0 0.0
      %2295 = vmatmul.mubr.f32.gmra.mrb[0].mxu0 %v2103
      %v2296 = vpop.f32.mrb[0].mxu0
      %v2297 = vadd.f32 0.0, %v2296
      %v2298 = vpop.f32.mrb[0].mxu0
      %2299 = vmatprep.mubr.f32.mxu0 0.0
      %2300 = vmatmul.mubr.f32.gmra.mrb[0].mxu0 %v2106
      %v2301 = vpop.f32.mrb[0].mxu0
      %v2302 = vadd.f32 0.0, %v2301
      %v2303 = vpop.f32.mrb[0].mxu0
      %2304 = vmatprep.mubr.f32.mxu0 0.0
      %2305 = vmatmul.mubr.f32.gmra.mrb[0].mxu0 %v2109
      %v2306 = vpop.f32.mrb[0].mxu0
      %v2307 = vadd.f32 0.0, %v2306
      %v2308 = vpop.f32.mrb[0].mxu0
      %2309 = vmatprep.mubr.f32.mxu0 0.0
      %2310 = vmatmul.mubr.f32.gmra.mrb[0].mxu0 %v2112
      %v2311 = vpop.f32.mrb[0].mxu0
      %v2312 = vadd.f32 0.0, %v2311
      %v2313 = vpop.f32.mrb[0].mxu0
      %2314 = vmatprep.mubr.f32.mxu0 0.0
      %2315 = vmatmul.mubr.f32.gmra.mrb[0].mxu0 %v2115
      %v2316 = vpop.f32.mrb[0].mxu0
      %v2317 = vadd.f32 0.0, %v2316
      %v2318 = vpop.f32.mrb[0].mxu0
      %2319 = vmatprep.mubr.f32.mxu0 0.0
      %2320 = vmatmul.mubr.f32.gmra.mrb[0].mxu0 %v2118
      %v2321 = vpop.f32.mrb[0].mxu0
      %v2322 = vadd.f32 0.0, %v2321
      %v2323 = vpop.f32.mrb[0].mxu0
      %2324 = vmatprep.mubr.f32.mxu0 0.0
      %2325 = vmatmul.mubr.f32.gmra.mrb[0].mxu0 %v2121
      %v2326 = vpop.f32.mrb[0].mxu0
      %v2327 = vadd.f32 0.0, %v2326
      %v2328 = vpop.f32.mrb[0].mxu0
      %2329 = vmatprep.mubr.f32.mxu0 0.0
      %2330 = vmatmul.mubr.f32.gmra.mrb[0].mxu0 %v2124
      %v2331 = vpop.f32.mrb[0].mxu0
      %v2332 = vadd.f32 0.0, %v2331
      %v2333 = vpop.f32.mrb[0].mxu0
      %2334 = vmatprep.mubr.f32.mxu0 0.0
      %2335 = vmatmul.mubr.f32.gmra.mrb[0].mxu0 %v2127
      %v2336 = vpop.f32.mrb[0].mxu0
      %v2337 = vadd.f32 0.0, %v2336
      %v2338 = vpop.f32.mrb[0].mxu0
      %2339 = vmatprep.mubr.f32.mxu0 0.0
      %2340 = vmatmul.mubr.f32.gmra.mrb[0].mxu0 %v2130
      %v2341 = vpop.f32.mrb[0].mxu0
      %v2342 = vadd.f32 0.0, %v2341
      %v2343 = vpop.f32.mrb[0].mxu0
      %2344 = vmatprep.mubr.f32.mxu0 0.0
      %2345 = vmatmul.mubr.f32.gmra.mrb[0].mxu0 %v2133
      %v2346 = vpop.f32.mrb[0].mxu0
      %v2347 = vadd.f32 0.0, %v2346
      %v2348 = vpop.f32.mrb[0].mxu0
      %2349 = vmatprep.mubr.f32.mxu0 0.0
      %2350 = vmatmul.mubr.f32.gmra.mrb[0].mxu0 %v2136
      %v2351 = vpop.f32.mrb[0].mxu0
      %v2352 = vadd.f32 0.0, %v2351
      %v2353 = vpop.f32.mrb[0].mxu0
      %2354 = vmatprep.mubr.f32.mxu0 0.0
      %2355 = vmatmul.mubr.f32.gmra.mrb[0].mxu0 %v2139
      %v2356 = vpop.f32.mrb[0].mxu0
      %v2357 = vadd.f32 0.0, %v2356
      %v2358 = vpop.f32.mrb[0].mxu0
      %2359 = vmatprep.mubr.f32.mxu0 0.0
      %2360 = vmatmul.mubr.f32.gmra.mrb[0].mxu0 %v2142
      %v2361 = vpop.f32.mrb[0].mxu0
      %v2362 = vadd.f32 0.0, %v2361
      %v2363 = vpop.f32.mrb[0].mxu0
      %2364 = vmatprep.mubr.f32.mxu0 0.0
      %2365 = vmatmul.mubr.f32.gmra.mrb[0].mxu0 %v2145
      %v2366 = vpop.f32.mrb[0].mxu0
      %v2367 = vadd.f32 0.0, %v2366
      %v2368 = vpop.f32.mrb[0].mxu0
      %2369 = vmatprep.mubr.f32.mxu0 0.0
      %2370 = vmatmul.mubr.f32.gmra.mrb[0].mxu0 %v2148
      %v2371 = vpop.f32.mrb[0].mxu0
      %v2372 = vadd.f32 0.0, %v2371
      %v2373 = vpop.f32.mrb[0].mxu0
      %2374 = vdwg.mxu0
      %v2375 = vld [vmem:[%s3] sm:$0x1]
      %v2377 = vlaneseq
      %v2378 = vshrl.u32 %v2377, 7
      %v2379 = vsub.s32 0, %v2378
      %v2380 = vrot.slane %v2375, %v2379
      %v2382 = vmul.f32 %v2217, %v2380
      %v2383 = vmul.f32 %v2222, %v2380
      %v2384 = vmul.f32 %v2227, %v2380
      %v2385 = vmul.f32 %v2232, %v2380
      %v2386 = vmul.f32 %v2237, %v2380
      %v2387 = vmul.f32 %v2242, %v2380
      %v2388 = vmul.f32 %v2247, %v2380
      %v2389 = vmul.f32 %v2252, %v2380
      %v2390 = vmul.f32 %v2257, %v2380
      %v2391 = vmul.f32 %v2262, %v2380
      %v2392 = vmul.f32 %v2267, %v2380
      %v2393 = vmul.f32 %v2272, %v2380
      %v2394 = vmul.f32 %v2277, %v2380
      %v2395 = vmul.f32 %v2282, %v2380
      %v2396 = vmul.f32 %v2287, %v2380
      %v2397 = vmul.f32 %v2292, %v2380
      %v2398 = vmul.f32 %v2297, %v2380
      %v2399 = vmul.f32 %v2302, %v2380
      %v2400 = vmul.f32 %v2307, %v2380
      %v2401 = vmul.f32 %v2312, %v2380
      %v2402 = vmul.f32 %v2317, %v2380
      %v2403 = vmul.f32 %v2322, %v2380
      %v2404 = vmul.f32 %v2327, %v2380
      %v2405 = vmul.f32 %v2332, %v2380
      %v2406 = vmul.f32 %v2337, %v2380
      %v2407 = vmul.f32 %v2342, %v2380
      %v2408 = vmul.f32 %v2347, %v2380
      %v2409 = vmul.f32 %v2352, %v2380
      %v2410 = vmul.f32 %v2357, %v2380
      %v2411 = vmul.f32 %v2362, %v2380
      %v2412 = vmul.f32 %v2367, %v2380
      %v2413 = vmul.f32 %v2372, %v2380
      %v2414 = vld [vmem:[%s4] sm:$0x1]
      %v2416 = vlaneseq
      %v2417 = vshrl.u32 %v2416, 7
      %v2418 = vsub.s32 0, %v2417
      %v2419 = vrot.slane %v2414, %v2418
      %v2421 = vadd.f32 %v2382, %v2419
      %v2422 = vadd.f32 %v2383, %v2419
      %v2423 = vadd.f32 %v2384, %v2419
      %v2424 = vadd.f32 %v2385, %v2419
      %v2425 = vadd.f32 %v2386, %v2419
      %v2426 = vadd.f32 %v2387, %v2419
      %v2427 = vadd.f32 %v2388, %v2419
      %v2428 = vadd.f32 %v2389, %v2419
      %v2429 = vadd.f32 %v2390, %v2419
      %v2430 = vadd.f32 %v2391, %v2419
      %v2431 = vadd.f32 %v2392, %v2419
      %v2432 = vadd.f32 %v2393, %v2419
      %v2433 = vadd.f32 %v2394, %v2419
      %v2434 = vadd.f32 %v2395, %v2419
      %v2435 = vadd.f32 %v2396, %v2419
      %v2436 = vadd.f32 %v2397, %v2419
      %v2437 = vadd.f32 %v2398, %v2419
      %v2438 = vadd.f32 %v2399, %v2419
      %v2439 = vadd.f32 %v2400, %v2419
      %v2440 = vadd.f32 %v2401, %v2419
      %v2441 = vadd.f32 %v2402, %v2419
      %v2442 = vadd.f32 %v2403, %v2419
      %v2443 = vadd.f32 %v2404, %v2419
      %v2444 = vadd.f32 %v2405, %v2419
      %v2445 = vadd.f32 %v2406, %v2419
      %v2446 = vadd.f32 %v2407, %v2419
      %v2447 = vadd.f32 %v2408, %v2419
      %v2448 = vadd.f32 %v2409, %v2419
      %v2449 = vadd.f32 %v2410, %v2419
      %v2450 = vadd.f32 %v2411, %v2419
      %v2451 = vadd.f32 %v2412, %v2419
      %v2452 = vadd.f32 %v2413, %v2419
      %v2453 = vmax.f32 %v2421, 0.0
      %v2454 = vmax.f32 %v2422, 0.0
      %v2455 = vmax.f32 %v2423, 0.0
      %v2456 = vmax.f32 %v2424, 0.0
      %v2457 = vmax.f32 %v2425, 0.0
      %v2458 = vmax.f32 %v2426, 0.0
      %v2459 = vmax.f32 %v2427, 0.0
      %v2460 = vmax.f32 %v2428, 0.0
      %v2461 = vmax.f32 %v2429, 0.0
      %v2462 = vmax.f32 %v2430, 0.0
      %v2463 = vmax.f32 %v2431, 0.0
      %v2464 = vmax.f32 %v2432, 0.0
      %v2465 = vmax.f32 %v2433, 0.0
      %v2466 = vmax.f32 %v2434, 0.0
      %v2467 = vmax.f32 %v2435, 0.0
      %v2468 = vmax.f32 %v2436, 0.0
      %v2469 = vmax.f32 %v2437, 0.0
      %v2470 = vmax.f32 %v2438, 0.0
      %v2471 = vmax.f32 %v2439, 0.0
      %v2472 = vmax.f32 %v2440, 0.0
      %v2473 = vmax.f32 %v2441, 0.0
      %v2474 = vmax.f32 %v2442, 0.0
      %v2475 = vmax.f32 %v2443, 0.0
      %v2476 = vmax.f32 %v2444, 0.0
      %v2477 = vmax.f32 %v2445, 0.0
      %v2478 = vmax.f32 %v2446, 0.0
      %v2479 = vmax.f32 %v2447, 0.0
      %v2480 = vmax.f32 %v2448, 0.0
      %v2481 = vmax.f32 %v2449, 0.0
      %v2482 = vmax.f32 %v2450, 0.0
      %v2483 = vmax.f32 %v2451, 0.0
      %v2484 = vmax.f32 %v2452, 0.0
      %2485 = vst.msk [vmem:[%s268] sm:$0xff] %vm358, %v2453
      %2486 = vst.msk [vmem:[%s268 + $0x8] sm:$0xff] %vm358, %v2454
      %2487 = vst.msk [vmem:[%s268 + $0x10] sm:$0xff] %vm358, %v2455
      %2488 = vst.msk [vmem:[%s268 + $0x18] sm:$0xff] %vm358, %v2456
      %2489 = vst.msk [vmem:[%s268 + $0x20] sm:$0xff] %vm358, %v2457
      %2490 = vst.msk [vmem:[%s268 + $0x28] sm:$0xff] %vm358, %v2458
      %2491 = vst.msk [vmem:[%s268 + $0x30] sm:$0xff] %vm358, %v2459
      %2492 = vst.msk [vmem:[%s268 + $0x38] sm:$0xff] %vm358, %v2460
      %2493 = vst.msk [vmem:[%s268 + $0x40] sm:$0xff] %vm358, %v2461
      %2494 = vst.msk [vmem:[%s268 + $0x48] sm:$0xff] %vm358, %v2462
      %2495 = vst.msk [vmem:[%s268 + $0x50] sm:$0xff] %vm358, %v2463
      %2496 = vst.msk [vmem:[%s268 + $0x58] sm:$0xff] %vm358, %v2464
      %2497 = vst.msk [vmem:[%s268 + $0x60] sm:$0xff] %vm358, %v2465
      %2498 = vst.msk [vmem:[%s268 + $0x68] sm:$0xff] %vm358, %v2466
      %2499 = vst.msk [vmem:[%s268 + $0x70] sm:$0xff] %vm358, %v2467
      %2500 = vst.msk [vmem:[%s268 + $0x78] sm:$0xff] %vm358, %v2468
      %2501 = vst.msk [vmem:[%s268 + $0x80] sm:$0xff] %vm358, %v2469
      %2502 = vst.msk [vmem:[%s268 + $0x88] sm:$0xff] %vm358, %v2470
      %2503 = vst.msk [vmem:[%s268 + $0x90] sm:$0xff] %vm358, %v2471
      %2504 = vst.msk [vmem:[%s268 + $0x98] sm:$0xff] %vm358, %v2472
      %2505 = vst.msk [vmem:[%s268 + $0xa0] sm:$0xff] %vm358, %v2473
      %2506 = vst.msk [vmem:[%s268 + $0xa8] sm:$0xff] %vm358, %v2474
      %2507 = vst.msk [vmem:[%s268 + $0xb0] sm:$0xff] %vm358, %v2475
      %2508 = vst.msk [vmem:[%s268 + $0xb8] sm:$0xff] %vm358, %v2476
      %2509 = vst.msk [vmem:[%s268 + $0xc0] sm:$0xff] %vm358, %v2477
      %2510 = vst.msk [vmem:[%s268 + $0xc8] sm:$0xff] %vm358, %v2478
      %2511 = vst.msk [vmem:[%s268 + $0xd0] sm:$0xff] %vm358, %v2479
      %2512 = vst.msk [vmem:[%s268 + $0xd8] sm:$0xff] %vm358, %v2480
      %2513 = vst.msk [vmem:[%s268 + $0xe0] sm:$0xff] %vm358, %v2481
      %2514 = vst.msk [vmem:[%s268 + $0xe8] sm:$0xff] %vm358, %v2482
      %2515 = vst.msk [vmem:[%s268 + $0xf0] sm:$0xff] %vm358, %v2483
      %2516 = vst.msk [vmem:[%s268 + $0xf8] sm:$0xff] %vm358, %v2484
      %s2517 = smul.u32 8, %s21
      %p2518 = scmp.lt.s32.totalorder %s20, 1
      %s2519 = scalar_select %p2518, %s20, 1
      %p2520 = scmp.lt.s32.totalorder %s2517, 31
      %s2521 = scalar_select %p2520, %s2517, 31
      %s2522 = smul.addr %s2521, 4
      %s2523 = smul.addr %s2519, 128
      %s2524 = sadd.s32 %s2522, %s2523
      %s2525 = smul.addr %s2524, 8
      %s2526 = scalar_lea.vmem %s5, %s2525
      // Predicated region
      $region49: #{upsampling_forward.4} parent=39 // pred_check
        %p2527 = pneg %p163
      $region50: #{upsampling_forward.4} parent=39 // pred_check_branch
        %2529 = sbr.rel (%p2527) target = $region52
      $region51: #{upsampling_forward.4} parent=39 // pred_region
        %s2530 = smul.u32 8, %s21
      $region52: #{upsampling_forward.4} parent=39 // pred_fallthru
        _
    $region40: #{upsampling_forward.4} parent=5 // pred_fallthru
      _
    %p2531 = scmp.le.s32.totalorder 2, %s11
    // Predicated region
    $region53: #{upsampling_forward.4} parent=5 // pred_check
      %p2532 = pneg %p2531
    $region54: #{upsampling_forward.4} parent=5 // pred_check_branch
      %2534 = sbr.rel (%p2532) target = $region56
    $region55: #{upsampling_forward.4} parent=5 // pred_region
      %s2535 = ssub.s32 %s11, 2
      // Predicated region
      $region57: #{upsampling_forward.4} parent=55 // pred_check
        %p2536 = pneg %p169
      $region58: #{upsampling_forward.4} parent=55 // pred_check_branch
        %2538 = sbr.rel (%p2536) target = $region60
      $region59: #{upsampling_forward.4} parent=55 // pred_region
        %s2539 = smul.u32 8, %s23
        %p2540 = scmp.lt.s32.totalorder %s22, 1
        %s2541 = scalar_select %p2540, %s22, 1
        %p2542 = scmp.lt.s32.totalorder %s2539, 31
        %s2543 = scalar_select %p2542, %s2539, 31
        %s2544 = smul.addr %s2543, 4
        %s2545 = smul.addr %s2541, 128
        %s2546 = sadd.s32 %s2544, %s2545
        %s2547 = smul.addr %s2546, 8
        %s2548 = scalar_lea.vmem %s5, %s2547
      $region60: #{upsampling_forward.4} parent=55 // pred_fallthru
        _
    $region56: #{upsampling_forward.4} parent=5 // pred_fallthru
      _
  $region6: #{upsampling_forward.4} parent=0 // loop_footer
    %s15 = sadd.s32 1, %s11
  $region7: #{upsampling_forward.4} parent=0 // loop_footer_branch
    %10 = sbr.rel target = $region3
  $region8: #{upsampling_forward.4} parent=0 // loop_exit
    _

// kernel: upsampling_forward.5
$region0: #{upsampling_forward.5}
  #allocation0 [shape = 'u32[]', space=smem, size = 0x4, offset = 0x4, fixed_abs, tag = 'smem constant byte address 0x4 - core index']
  #allocation1 [shape = 'u32[144,128]{1,0:T(1,128)}', space=vmem, size = 0x12000, scoped, tag = 'internal scratch']
  #allocation2 [shape = 'f32[10,34,4]{2,1,0:T(8,128)}', space=vmem, size = 0x32000, scoped, tag = 'scratch operand']
  #allocation3 [shape = 'f32[256,36]{1,0:T(8,128)}', space=vmem, size = 0x20000, scoped, tag = 'scratch operand']
  %s0 = inlined_call_operand.vmem [shape: f32[2,32,32,4], index: 0, kind: input, shape index: {}]
  %s1 = inlined_call_operand.vmem [shape: f32[36,4], index: 1, kind: input, shape index: {}]
  %s2 = inlined_call_operand.vmem [shape: f32[1,4], index: 2, kind: input, shape index: {}]
  %s3 = inlined_call_operand.vmem [shape: f32[1,4], index: 3, kind: input, shape index: {}]
  %s4 = inlined_call_operand.vmem [shape: f32[2,32,32,4], index: 4, kind: output, shape index: {}]
  %s5 = sld [smem:[#allocation0]]
  $region57: #{upsampling_forward.5} parent=0
    _
  %s7 = ssub.s32 1, %s5
  %s8 = scalar_select 0, %s7, %s5
  loop: start=0, step=1, limit=10
  $region2: #{upsampling_forward.5} parent=0 // loop_pre_header
    _
  $region3: #{upsampling_forward.5} parent=0 // loop_header
    %s10 = sphi 0, %s14
    %p11 = scmp.ge.s32.totalorder %s10, 10
    %s17 = sphi 0, %s29
    %s18 = sphi 0, %s25
    %s19 = sphi 0, %s17
    %s20 = sphi 0, %s18
    %s21 = sphi 0, %s19
    %s22 = sphi 0, %s20
    %s32 = sphi 0, %s34
    %s35 = sphi 0, %s32
    %s36 = sphi 0, %s35
    %s52 = sphi 0, %s36
    %s56 = sphi 0, %s56
    %s58 = sphi 0, %s56
    %s59 = sphi 0, %s58
    %s73 = sphi 0, %s59
    %s77 = sphi 0, %s77
    %s79 = sphi 0, %s77
    %s80 = sphi 0, %s79
    %s94 = sphi 0, %s80
    %s98 = sphi 0, %s98
    %s100 = sphi 0, %s98
    %s101 = sphi 0, %s100
    %s115 = sphi 0, %s101
    %s123 = sphi 0, %s125
    %s126 = sphi 0, %s123
    %s127 = sphi 0, %s126
    %s143 = sphi 0, %s127
  $region4: #{upsampling_forward.5} parent=0 // loop_header_branch
    %13 = sbr.rel (%p11) target = $region8
  $region5: #{upsampling_forward.5} parent=0 // loop_body
    %s15 = ssub.s32 %s10, 1
    %s16 = ssub.s32 %s10, 2
    %s23 = sadd.s32 1, %s18
    %p24 = scmp.ge.s32.totalorder %s23, 4
    %s25 = scalar_select %p24, 0, %s23
    %s26 = sadd.s32 1, %s17
    %s27 = scalar_select %p24, %s26, %s17
    %p28 = scmp.ge.s32.totalorder %s27, 2
    %s29 = scalar_select %p28, 0, %s27
    %s30 = ssub.s32 %s17, %s29
    %p31 = scmp.eq.s32.totalorder %s30, 0
    %s33 = sadd.s32 %s32, 1
    %s34 = scalar_select %p31, %s32, %s33
    %p37 = pneg %p31
    %p38 = scmp.eq.s32.totalorder %s10, 7
    %p39 = por %p37, %p38
    %p40 = scmp.ne.s32.totalorder %s32, %s35
    %p41 = scmp.eq.s32.totalorder %s10, 0
    %p42 = por %p40, %p41
    %p43 = scmp.ne.s32.totalorder %s32, %s35
    %p44 = scmp.eq.s32.totalorder %s15, 7
    %p45 = por %p43, %p44
    %p46 = scmp.ne.s32.totalorder %s35, %s36
    %p47 = scmp.eq.s32.totalorder %s15, 0
    %p48 = por %p46, %p47
    %p49 = scmp.ne.s32.totalorder %s35, %s36
    %p50 = scmp.eq.s32.totalorder %s16, 7
    %p51 = por %p49, %p50
    %p53 = scmp.ne.s32.totalorder %s36, %s52
    %p54 = scmp.eq.s32.totalorder %s16, 0
    %p55 = por %p53, %p54
    %s57 = sadd.s32 %s56, 1
    %p60 = scmp.eq.s32.totalorder %s10, 7
    %p61 = scmp.ne.s32.totalorder %s56, %s58
    %p62 = scmp.eq.s32.totalorder %s10, 0
    %p63 = por %p61, %p62
    %p64 = scmp.ne.s32.totalorder %s56, %s58
    %p65 = scmp.eq.s32.totalorder %s15, 7
    %p66 = por %p64, %p65
    %p67 = scmp.ne.s32.totalorder %s58, %s59
    %p68 = scmp.eq.s32.totalorder %s15, 0
    %p69 = por %p67, %p68
    %p70 = scmp.ne.s32.totalorder %s58, %s59
    %p71 = scmp.eq.s32.totalorder %s16, 7
    %p72 = por %p70, %p71
    %p74 = scmp.ne.s32.totalorder %s59, %s73
    %p75 = scmp.eq.s32.totalorder %s16, 0
    %p76 = por %p74, %p75
    %s78 = sadd.s32 %s77, 1
    %p81 = scmp.eq.s32.totalorder %s10, 7
    %p82 = scmp.ne.s32.totalorder %s77, %s79
    %p83 = scmp.eq.s32.totalorder %s10, 0
    %p84 = por %p82, %p83
    %p85 = scmp.ne.s32.totalorder %s77, %s79
    %p86 = scmp.eq.s32.totalorder %s15, 7
    %p87 = por %p85, %p86
    %p88 = scmp.ne.s32.totalorder %s79, %s80
    %p89 = scmp.eq.s32.totalorder %s15, 0
    %p90 = por %p88, %p89
    %p91 = scmp.ne.s32.totalorder %s79, %s80
    %p92 = scmp.eq.s32.totalorder %s16, 7
    %p93 = por %p91, %p92
    %p95 = scmp.ne.s32.totalorder %s80, %s94
    %p96 = scmp.eq.s32.totalorder %s16, 0
    %p97 = por %p95, %p96
    %s99 = sadd.s32 %s98, 1
    %p102 = scmp.eq.s32.totalorder %s10, 7
    %p103 = scmp.ne.s32.totalorder %s98, %s100
    %p104 = scmp.eq.s32.totalorder %s10, 0
    %p105 = por %p103, %p104
    %p106 = scmp.ne.s32.totalorder %s98, %s100
    %p107 = scmp.eq.s32.totalorder %s15, 7
    %p108 = por %p106, %p107
    %p109 = scmp.ne.s32.totalorder %s100, %s101
    %p110 = scmp.eq.s32.totalorder %s15, 0
    %p111 = por %p109, %p110
    %p112 = scmp.ne.s32.totalorder %s100, %s101
    %p113 = scmp.eq.s32.totalorder %s16, 7
    %p114 = por %p112, %p113
    %p116 = scmp.ne.s32.totalorder %s101, %s115
    %p117 = scmp.eq.s32.totalorder %s16, 0
    %p118 = por %p116, %p117
    %s119 = ssub.s32 %s17, %s29
    %s120 = ssub.s32 %s18, %s25
    %s121 = sor.u32 %s119, %s120
    %p122 = scmp.eq.s32.totalorder %s121, 0
    %s124 = sadd.s32 %s123, 1
    %s125 = scalar_select %p122, %s123, %s124
    %p128 = pneg %p122
    %p129 = scmp.eq.s32.totalorder %s10, 7
    %p130 = por %p128, %p129
    %p131 = scmp.ne.s32.totalorder %s123, %s126
    %p132 = scmp.eq.s32.totalorder %s10, 0
    %p133 = por %p131, %p132
    %p134 = scmp.ne.s32.totalorder %s123, %s126
    %p135 = scmp.eq.s32.totalorder %s15, 7
    %p136 = por %p134, %p135
    %p137 = scmp.ne.s32.totalorder %s126, %s127
    %p138 = scmp.eq.s32.totalorder %s15, 0
    %p139 = por %p137, %p138
    %p140 = scmp.ne.s32.totalorder %s126, %s127
    %p141 = scmp.eq.s32.totalorder %s16, 7
    %p142 = por %p140, %p141
    %p144 = scmp.ne.s32.totalorder %s127, %s143
    %p145 = scmp.eq.s32.totalorder %s16, 0
    %p146 = por %p144, %p145
    %p147 = scmp.le.s32.totalorder 1, %s10
    %p148 = scmp.lt.s32.totalorder %s10, 9
    %p149 = pnand %p147, %p148
    %p150 = pneg %p149
    // Predicated region
    $region9: #{upsampling_forward.5} parent=5 // pred_check
      _
    $region10: #{upsampling_forward.5} parent=5 // pred_check_branch
      %152 = sbr.rel (%p149) target = $region12
    $region11: #{upsampling_forward.5} parent=5 // pred_region
      %s153 = ssub.s32 %s10, 1
      // Predicated region
      $region13: #{upsampling_forward.5} parent=11 // pred_check
        %p154 = pneg %p69
      $region14: #{upsampling_forward.5} parent=11 // pred_check_branch
        %156 = sbr.rel (%p154) target = $region16
      $region15: #{upsampling_forward.5} parent=11 // pred_region
        _
      $region16: #{upsampling_forward.5} parent=11 // pred_fallthru
        _
      // Predicated region
      $region17: #{upsampling_forward.5} parent=11 // pred_check
        %p157 = pneg %p90
      $region18: #{upsampling_forward.5} parent=11 // pred_check_branch
        %159 = sbr.rel (%p157) target = $region20
      $region19: #{upsampling_forward.5} parent=11 // pred_region
        _
      $region20: #{upsampling_forward.5} parent=11 // pred_fallthru
        _
      // Predicated region
      $region21: #{upsampling_forward.5} parent=11 // pred_check
        %p160 = pneg %p111
      $region22: #{upsampling_forward.5} parent=11 // pred_check_branch
        %162 = sbr.rel (%p160) target = $region24
      $region23: #{upsampling_forward.5} parent=11 // pred_region
        _
      $region24: #{upsampling_forward.5} parent=11 // pred_fallthru
        _
    $region12: #{upsampling_forward.5} parent=5 // pred_fallthru
      _
    %p163 = scmp.lt.s32.totalorder %s10, 8
    // Predicated region
    $region25: #{upsampling_forward.5} parent=5 // pred_check
      %p164 = pneg %p163
    $region26: #{upsampling_forward.5} parent=5 // pred_check_branch
      %166 = sbr.rel (%p164) target = $region28
    $region27: #{upsampling_forward.5} parent=5 // pred_region
      // Predicated region
      $region29: #{upsampling_forward.5} parent=27 // pred_check
        %p167 = pneg %p42
      $region30: #{upsampling_forward.5} parent=27 // pred_check_branch
        %169 = sbr.rel (%p167) target = $region32
      $region31: #{upsampling_forward.5} parent=27 // pred_region
        %p170 = scmp.lt.s32.totalorder %s17, 1
        %s171 = scalar_select %p170, %s17, 1
        %s172 = smul.addr %s171, 128
        %s173 = smul.addr %s172, 8
        %s174 = scalar_lea.vmem %s0, %s173
      $region32: #{upsampling_forward.5} parent=27 // pred_fallthru
        _
    $region28: #{upsampling_forward.5} parent=5 // pred_fallthru
      _
    %p175 = scmp.le.s32.totalorder 1, %s10
    %p176 = scmp.lt.s32.totalorder %s10, 9
    %p177 = pnand %p175, %p176
    %p178 = pneg %p177
    // Predicated region
    $region33: #{upsampling_forward.5} parent=5 // pred_check
      _
    $region34: #{upsampling_forward.5} parent=5 // pred_check_branch
      %180 = sbr.rel (%p177) target = $region36
    $region35: #{upsampling_forward.5} parent=5 // pred_region
      %s181 = ssub.s32 %s10, 1
      %p182 = scmp.lt.s32.totalorder %s19, 1
      %s183 = scalar_select %p182, %s19, 1
      %s184 = smul.addr %s183, 128
      %s185 = smul.addr %s184, 8
      %s186 = scalar_lea.vmem %s0, %s185
      %p187 = pneg %p48
      %p188 = pneg %p45
      %p189 = pneg %p69
      %p190 = pneg %p66
      %p191 = pneg %p90
      %p192 = pneg %p87
      %p193 = pneg %p111
      %p194 = pneg %p108
      %p195 = pneg %p139
      %p196 = pneg %p136
      %s197 = smul.u32 8, %s20
      %p198 = scmp.lt.s32.totalorder %s19, 1
      %s199 = scalar_select %p198, %s19, 1
      %p200 = scmp.lt.s32.totalorder %s197, 31
      %s201 = scalar_select %p200, %s197, 31
      %s202 = smul.addr %s201, 4
      %s203 = smul.addr %s199, 128
      %s204 = sadd.s32 %s202, %s203
      %s205 = smul.addr %s204, 8
      %s206 = scalar_lea.vmem %s4, %s205
      %p207 = scmp.lt.s32.totalorder %s19, 1
      %s208 = scalar_select %p207, %s19, 1
      %s209 = smul.addr %s208, 128
      %s210 = smul.addr %s209, 8
      %s211 = scalar_lea.vmem %s0, %s210
      %s212 = smul.u32 8, %s20
      %p213 = scmp.lt.s32.totalorder %s19, 1
      %s214 = scalar_select %p213, %s19, 1
      %p215 = scmp.lt.s32.totalorder %s212, 31
      %s216 = scalar_select %p215, %s212, 31
      %s217 = smul.addr %s216, 4
      %s218 = smul.addr %s214, 128
      %s219 = sadd.s32 %s217, %s218
      %s220 = smul.addr %s219, 8
      %s221 = scalar_lea.vmem %s4, %s220
      %s222 = smul.u32 8, %s20
      %s223 = smul.u32 %s20, 8
      %vm224 = vcmask 31744
      %225 = vst.msk [vmem:[#allocation2] sm:$0xff] %vm224, 0.0
      %226 = vst.msk [vmem:[#allocation2 + $0x8] sm:$0xff] %vm224, 0.0
      %227 = vst.msk [vmem:[#allocation2 + $0x10] sm:$0xff] %vm224, 0.0
      %228 = vst.msk [vmem:[#allocation2 + $0x18] sm:$0xff] %vm224, 0.0
      %vm229 = vcmask 25600
      %230 = vst.msk [vmem:[#allocation2 + $0x20] sm:$0x3] %vm229, 0.0
      %231 = vst.msk [vmem:[#allocation2 + $0x28] sm:$0xff] %vm224, 0.0
      %232 = vst.msk [vmem:[#allocation2 + $0x30] sm:$0xff] %vm224, 0.0
      %233 = vst.msk [vmem:[#allocation2 + $0x38] sm:$0xff] %vm224, 0.0
      %234 = vst.msk [vmem:[#allocation2 + $0x40] sm:$0xff] %vm224, 0.0
      %235 = vst.msk [vmem:[#allocation2 + $0x48] sm:$0x3] %vm229, 0.0
      %236 = vst.msk [vmem:[#allocation2 + $0x50] sm:$0xff] %vm224, 0.0
      %237 = vst.msk [vmem:[#allocation2 + $0x58] sm:$0xff] %vm224, 0.0
      %238 = vst.msk [vmem:[#allocation2 + $0x60] sm:$0xff] %vm224, 0.0
      %239 = vst.msk [vmem:[#allocation2 + $0x68] sm:$0xff] %vm224, 0.0
      %240 = vst.msk [vmem:[#allocation2 + $0x70] sm:$0x3] %vm229, 0.0
      %241 = vst.msk [vmem:[#allocation2 + $0x78] sm:$0xff] %vm224, 0.0
      %242 = vst.msk [vmem:[#allocation2 + $0x80] sm:$0xff] %vm224, 0.0
      %243 = vst.msk [vmem:[#allocation2 + $0x88] sm:$0xff] %vm224, 0.0
      %244 = vst.msk [vmem:[#allocation2 + $0x90] sm:$0xff] %vm224, 0.0
      %245 = vst.msk [vmem:[#allocation2 + $0x98] sm:$0x3] %vm229, 0.0
      %246 = vst.msk [vmem:[#allocation2 + $0xa0] sm:$0xff] %vm224, 0.0
      %247 = vst.msk [vmem:[#allocation2 + $0xa8] sm:$0xff] %vm224, 0.0
      %248 = vst.msk [vmem:[#allocation2 + $0xb0] sm:$0xff] %vm224, 0.0
      %249 = vst.msk [vmem:[#allocation2 + $0xb8] sm:$0xff] %vm224, 0.0
      %250 = vst.msk [vmem:[#allocation2 + $0xc0] sm:$0x3] %vm229, 0.0
      %251 = vst.msk [vmem:[#allocation2 + $0xc8] sm:$0xff] %vm224, 0.0
      %252 = vst.msk [vmem:[#allocation2 + $0xd0] sm:$0xff] %vm224, 0.0
      %253 = vst.msk [vmem:[#allocation2 + $0xd8] sm:$0xff] %vm224, 0.0
      %254 = vst.msk [vmem:[#allocation2 + $0xe0] sm:$0xff] %vm224, 0.0
      %255 = vst.msk [vmem:[#allocation2 + $0xe8] sm:$0x3] %vm229, 0.0
      %256 = vst.msk [vmem:[#allocation2 + $0xf0] sm:$0xff] %vm224, 0.0
      %257 = vst.msk [vmem:[#allocation2 + $0xf8] sm:$0xff] %vm224, 0.0
      %258 = vst.msk [vmem:[#allocation2 + $0x100] sm:$0xff] %vm224, 0.0
      %259 = vst.msk [vmem:[#allocation2 + $0x108] sm:$0xff] %vm224, 0.0
      %260 = vst.msk [vmem:[#allocation2 + $0x110] sm:$0x3] %vm229, 0.0
      %261 = vst.msk [vmem:[#allocation2 + $0x118] sm:$0xff] %vm224, 0.0
      %262 = vst.msk [vmem:[#allocation2 + $0x120] sm:$0xff] %vm224, 0.0
      %263 = vst.msk [vmem:[#allocation2 + $0x128] sm:$0xff] %vm224, 0.0
      %264 = vst.msk [vmem:[#allocation2 + $0x130] sm:$0xff] %vm224, 0.0
      %265 = vst.msk [vmem:[#allocation2 + $0x138] sm:$0x3] %vm229, 0.0
      %266 = vst.msk [vmem:[#allocation2 + $0x140] sm:$0xff] %vm224, 0.0
      %267 = vst.msk [vmem:[#allocation2 + $0x148] sm:$0xff] %vm224, 0.0
      %268 = vst.msk [vmem:[#allocation2 + $0x150] sm:$0xff] %vm224, 0.0
      %269 = vst.msk [vmem:[#allocation2 + $0x158] sm:$0xff] %vm224, 0.0
      %270 = vst.msk [vmem:[#allocation2 + $0x160] sm:$0x3] %vm229, 0.0
      %271 = vst.msk [vmem:[#allocation2 + $0x168] sm:$0xff] %vm224, 0.0
      %272 = vst.msk [vmem:[#allocation2 + $0x170] sm:$0xff] %vm224, 0.0
      %273 = vst.msk [vmem:[#allocation2 + $0x178] sm:$0xff] %vm224, 0.0
      %274 = vst.msk [vmem:[#allocation2 + $0x180] sm:$0xff] %vm224, 0.0
      %275 = vst.msk [vmem:[#allocation2 + $0x188] sm:$0x3] %vm229, 0.0
      %s276 = smul.u32 %s223, 32
      %s277 = scalar_lea.vmem %s211, %s276
      %v278 = vld [vmem:[%s277] sm:$0xff]
      %v279 = vld [vmem:[%s277 + $0x8] sm:$0xff]
      %v280 = vld [vmem:[%s277 + $0x10] sm:$0xff]
      %v281 = vld [vmem:[%s277 + $0x18] sm:$0xff]
      %v282 = vld [vmem:[%s277 + $0x20] sm:$0xff]
      %v283 = vld [vmem:[%s277 + $0x28] sm:$0xff]
      %v284 = vld [vmem:[%s277 + $0x30] sm:$0xff]
      %v285 = vld [vmem:[%s277 + $0x38] sm:$0xff]
      %v286 = vld [vmem:[%s277 + $0x40] sm:$0xff]
      %v287 = vld [vmem:[%s277 + $0x48] sm:$0xff]
      %v288 = vld [vmem:[%s277 + $0x50] sm:$0xff]
      %v289 = vld [vmem:[%s277 + $0x58] sm:$0xff]
      %v290 = vld [vmem:[%s277 + $0x60] sm:$0xff]
      %v291 = vld [vmem:[%s277 + $0x68] sm:$0xff]
      %v292 = vld [vmem:[%s277 + $0x70] sm:$0xff]
      %v293 = vld [vmem:[%s277 + $0x78] sm:$0xff]
      %v294 = vld [vmem:[%s277 + $0x80] sm:$0xff]
      %v295 = vld [vmem:[%s277 + $0x88] sm:$0xff]
      %v296 = vld [vmem:[%s277 + $0x90] sm:$0xff]
      %v297 = vld [vmem:[%s277 + $0x98] sm:$0xff]
      %v298 = vld [vmem:[%s277 + $0xa0] sm:$0xff]
      %v299 = vld [vmem:[%s277 + $0xa8] sm:$0xff]
      %v300 = vld [vmem:[%s277 + $0xb0] sm:$0xff]
      %v301 = vld [vmem:[%s277 + $0xb8] sm:$0xff]
      %v302 = vld [vmem:[%s277 + $0xc0] sm:$0xff]
      %v303 = vld [vmem:[%s277 + $0xc8] sm:$0xff]
      %v304 = vld [vmem:[%s277 + $0xd0] sm:$0xff]
      %v305 = vld [vmem:[%s277 + $0xd8] sm:$0xff]
      %v306 = vld [vmem:[%s277 + $0xe0] sm:$0xff]
      %v307 = vld [vmem:[%s277 + $0xe8] sm:$0xff]
      %v308 = vld [vmem:[%s277 + $0xf0] sm:$0xff]
      %v309 = vld [vmem:[%s277 + $0xf8] sm:$0xff]
      %s310 = scalar_lea.vmem [#allocation2], 40
      %311 = vst.msk [vmem:[%s310 + $0x1] sm:$0xff] %vm224, %v278
      %312 = vst.msk [vmem:[%s310 + $0x9] sm:$0xff] %vm224, %v279
      %313 = vst.msk [vmem:[%s310 + $0x11] sm:$0xff] %vm224, %v280
      %314 = vst.msk [vmem:[%s310 + $0x19] sm:$0xff] %vm224, %v281
      %315 = vst.msk [vmem:[%s310 + $0x29] sm:$0xff] %vm224, %v282
      %316 = vst.msk [vmem:[%s310 + $0x31] sm:$0xff] %vm224, %v283
      %317 = vst.msk [vmem:[%s310 + $0x39] sm:$0xff] %vm224, %v284
      %318 = vst.msk [vmem:[%s310 + $0x41] sm:$0xff] %vm224, %v285
      %319 = vst.msk [vmem:[%s310 + $0x51] sm:$0xff] %vm224, %v286
      %320 = vst.msk [vmem:[%s310 + $0x59] sm:$0xff] %vm224, %v287
      %321 = vst.msk [vmem:[%s310 + $0x61] sm:$0xff] %vm224, %v288
      %322 = vst.msk [vmem:[%s310 + $0x69] sm:$0xff] %vm224, %v289
      %323 = vst.msk [vmem:[%s310 + $0x79] sm:$0xff] %vm224, %v290
      %324 = vst.msk [vmem:[%s310 + $0x81] sm:$0xff] %vm224, %v291
      %325 = vst.msk [vmem:[%s310 + $0x89] sm:$0xff] %vm224, %v292
      %326 = vst.msk [vmem:[%s310 + $0x91] sm:$0xff] %vm224, %v293
      %327 = vst.msk [vmem:[%s310 + $0xa1] sm:$0xff] %vm224, %v294
      %328 = vst.msk [vmem:[%s310 + $0xa9] sm:$0xff] %vm224, %v295
      %329 = vst.msk [vmem:[%s310 + $0xb1] sm:$0xff] %vm224, %v296
      %330 = vst.msk [vmem:[%s310 + $0xb9] sm:$0xff] %vm224, %v297
      %331 = vst.msk [vmem:[%s310 + $0xc9] sm:$0xff] %vm224, %v298
      %332 = vst.msk [vmem:[%s310 + $0xd1] sm:$0xff] %vm224, %v299
      %333 = vst.msk [vmem:[%s310 + $0xd9] sm:$0xff] %vm224, %v300
      %334 = vst.msk [vmem:[%s310 + $0xe1] sm:$0xff] %vm224, %v301
      %335 = vst.msk [vmem:[%s310 + $0xf1] sm:$0xff] %vm224, %v302
      %336 = vst.msk [vmem:[%s310 + $0xf9] sm:$0xff] %vm224, %v303
      %337 = vst.msk [vmem:[%s310 + $0x101] sm:$0xff] %vm224, %v304
      %338 = vst.msk [vmem:[%s310 + $0x109] sm:$0xff] %vm224, %v305
      %339 = vst.msk [vmem:[%s310 + $0x119] sm:$0xff] %vm224, %v306
      %340 = vst.msk [vmem:[%s310 + $0x121] sm:$0xff] %vm224, %v307
      %341 = vst.msk [vmem:[%s310 + $0x129] sm:$0xff] %vm224, %v308
      %342 = vst.msk [vmem:[%s310 + $0x131] sm:$0xff] %vm224, %v309
      %p343 = scmp.gt.s32.totalorder %s20, 0
      // Predicated region
      $region37: #{upsampling_forward.5} parent=35 // pred_check
        %p344 = pneg %p343
      $region38: #{upsampling_forward.5} parent=35 // pred_check_branch
        %346 = sbr.rel (%p344) target = $region40
      $region39: #{upsampling_forward.5} parent=35 // pred_region
        %s347 = ssub.s32 %s223, 1
        %s348 = smul.u32 %s347, 32
        %s349 = scalar_lea.vmem %s211, %s348
        %v350 = vld [vmem:[%s349] sm:$0xff]
        %v351 = vld [vmem:[%s349 + $0x8] sm:$0xff]
        %v352 = vld [vmem:[%s349 + $0x10] sm:$0xff]
        %v353 = vld [vmem:[%s349 + $0x18] sm:$0xff]
        %354 = vst.msk [vmem:[#allocation2 + $0x1] sm:$0xff] %vm224, %v350
        %355 = vst.msk [vmem:[#allocation2 + $0x9] sm:$0xff] %vm224, %v351
        %356 = vst.msk [vmem:[#allocation2 + $0x11] sm:$0xff] %vm224, %v352
        %357 = vst.msk [vmem:[#allocation2 + $0x19] sm:$0xff] %vm224, %v353
      $region40: #{upsampling_forward.5} parent=35 // pred_fallthru
        _
      %p358 = scmp.lt.s32.totalorder %s20, 3
      // Predicated region
      $region41: #{upsampling_forward.5} parent=35 // pred_check
        %p359 = pneg %p358
      $region42: #{upsampling_forward.5} parent=35 // pred_check_branch
        %361 = sbr.rel (%p359) target = $region44
      $region43: #{upsampling_forward.5} parent=35 // pred_region
        %s362 = sadd.s32 %s223, 8
        %s363 = smul.u32 %s362, 32
        %s364 = scalar_lea.vmem %s211, %s363
        %v365 = vld [vmem:[%s364] sm:$0xff]
        %v366 = vld [vmem:[%s364 + $0x8] sm:$0xff]
        %v367 = vld [vmem:[%s364 + $0x10] sm:$0xff]
        %v368 = vld [vmem:[%s364 + $0x18] sm:$0xff]
        %s369 = scalar_lea.vmem [#allocation2], 360
        %370 = vst.msk [vmem:[%s369 + $0x1] sm:$0xff] %vm224, %v365
        %371 = vst.msk [vmem:[%s369 + $0x9] sm:$0xff] %vm224, %v366
        %372 = vst.msk [vmem:[%s369 + $0x11] sm:$0xff] %vm224, %v367
        %373 = vst.msk [vmem:[%s369 + $0x19] sm:$0xff] %vm224, %v368
      $region44: #{upsampling_forward.5} parent=35 // pred_fallthru
        _
      %v374 = vld [vmem:[#allocation2] sm:$0xff]
      %v375 = vld [vmem:[#allocation2 + $0x8] sm:$0xff]
      %v376 = vld [vmem:[#allocation2 + $0x10] sm:$0xff]
      %v377 = vld [vmem:[#allocation2 + $0x18] sm:$0xff]
      %v378 = vld [vmem:[#allocation2 + $0x20] sm:$0x3]
      %v379 = vld [vmem:[#allocation2 + $0x28] sm:$0xff]
      %v380 = vld [vmem:[#allocation2 + $0x30] sm:$0xff]
      %v381 = vld [vmem:[#allocation2 + $0x38] sm:$0xff]
      %v382 = vld [vmem:[#allocation2 + $0x40] sm:$0xff]
      %v383 = vld [vmem:[#allocation2 + $0x48] sm:$0x3]
      %v384 = vld [vmem:[#allocation2 + $0x50] sm:$0xff]
      %v385 = vld [vmem:[#allocation2 + $0x58] sm:$0xff]
      %v386 = vld [vmem:[#allocation2 + $0x60] sm:$0xff]
      %v387 = vld [vmem:[#allocation2 + $0x68] sm:$0xff]
      %v388 = vld [vmem:[#allocation2 + $0x70] sm:$0x3]
      %v389 = vld [vmem:[#allocation2 + $0x78] sm:$0xff]
      %v390 = vld [vmem:[#allocation2 + $0x80] sm:$0xff]
      %v391 = vld [vmem:[#allocation2 + $0x88] sm:$0xff]
      %v392 = vld [vmem:[#allocation2 + $0x90] sm:$0xff]
      %v393 = vld [vmem:[#allocation2 + $0x98] sm:$0x3]
      %v394 = vld [vmem:[#allocation2 + $0xa0] sm:$0xff]
      %v395 = vld [vmem:[#allocation2 + $0xa8] sm:$0xff]
      %v396 = vld [vmem:[#allocation2 + $0xb0] sm:$0xff]
      %v397 = vld [vmem:[#allocation2 + $0xb8] sm:$0xff]
      %v398 = vld [vmem:[#allocation2 + $0xc0] sm:$0x3]
      %v399 = vld [vmem:[#allocation2 + $0xc8] sm:$0xff]
      %v400 = vld [vmem:[#allocation2 + $0xd0] sm:$0xff]
      %v401 = vld [vmem:[#allocation2 + $0xd8] sm:$0xff]
      %v402 = vld [vmem:[#allocation2 + $0xe0] sm:$0xff]
      %v403 = vld [vmem:[#allocation2 + $0xe8] sm:$0x3]
      %v404 = vld [vmem:[#allocation2 + $0xf0] sm:$0xff]
      %v405 = vld [vmem:[#allocation2 + $0xf8] sm:$0xff]
      %v406 = vld [vmem:[#allocation2 + $0x100] sm:$0xff]
      %v407 = vld [vmem:[#allocation2 + $0x108] sm:$0xff]
      %v408 = vld [vmem:[#allocation2 + $0x110] sm:$0x3]
      %v409 = vld [vmem:[#allocation2 + $0x118] sm:$0xff]
      %v410 = vld [vmem:[#allocation2 + $0x120] sm:$0xff]
      %v411 = vld [vmem:[#allocation2 + $0x128] sm:$0xff]
      %v412 = vld [vmem:[#allocation2 + $0x130] sm:$0xff]
      %v413 = vld [vmem:[#allocation2 + $0x138] sm:$0x3]
      %v414 = vld [vmem:[#allocation2 + $0x140] sm:$0xff]
      %v415 = vld [vmem:[#allocation2 + $0x148] sm:$0xff]
      %v416 = vld [vmem:[#allocation2 + $0x150] sm:$0xff]
      %v417 = vld [vmem:[#allocation2 + $0x158] sm:$0xff]
      %v418 = vld [vmem:[#allocation2 + $0x160] sm:$0x3]
      %v419 = vld [vmem:[#allocation2 + $0x168] sm:$0xff]
      %v420 = vld [vmem:[#allocation2 + $0x170] sm:$0xff]
      %v421 = vld [vmem:[#allocation2 + $0x178] sm:$0xff]
      %v422 = vld [vmem:[#allocation2 + $0x180] sm:$0xff]
      %v423 = vld [vmem:[#allocation2 + $0x188] sm:$0x3]
      %424 = vst.msk [vmem:[#allocation3] sm:$0xff] %vm224, %v374
      %425 = vst.msk [vmem:[#allocation3 + $0x8] sm:$0xff] %vm224, %v375
      %426 = vst.msk [vmem:[#allocation3 + $0x10] sm:$0xff] %vm224, %v376
      %427 = vst.msk [vmem:[#allocation3 + $0x18] sm:$0xff] %vm224, %v377
      %428 = vst.msk [vmem:[#allocation3 + $0x20] sm:$0xff] %vm224, %v379
      %429 = vst.msk [vmem:[#allocation3 + $0x28] sm:$0xff] %vm224, %v380
      %430 = vst.msk [vmem:[#allocation3 + $0x30] sm:$0xff] %vm224, %v381
      %431 = vst.msk [vmem:[#allocation3 + $0x38] sm:$0xff] %vm224, %v382
      %432 = vst.msk [vmem:[#allocation3 + $0x40] sm:$0xff] %vm224, %v384
      %433 = vst.msk [vmem:[#allocation3 + $0x48] sm:$0xff] %vm224, %v385
      %434 = vst.msk [vmem:[#allocation3 + $0x50] sm:$0xff] %vm224, %v386
      %435 = vst.msk [vmem:[#allocation3 + $0x58] sm:$0xff] %vm224, %v387
      %436 = vst.msk [vmem:[#allocation3 + $0x60] sm:$0xff] %vm224, %v389
      %437 = vst.msk [vmem:[#allocation3 + $0x68] sm:$0xff] %vm224, %v390
      %438 = vst.msk [vmem:[#allocation3 + $0x70] sm:$0xff] %vm224, %v391
      %439 = vst.msk [vmem:[#allocation3 + $0x78] sm:$0xff] %vm224, %v392
      %440 = vst.msk [vmem:[#allocation3 + $0x80] sm:$0xff] %vm224, %v394
      %441 = vst.msk [vmem:[#allocation3 + $0x88] sm:$0xff] %vm224, %v395
      %442 = vst.msk [vmem:[#allocation3 + $0x90] sm:$0xff] %vm224, %v396
      %443 = vst.msk [vmem:[#allocation3 + $0x98] sm:$0xff] %vm224, %v397
      %444 = vst.msk [vmem:[#allocation3 + $0xa0] sm:$0xff] %vm224, %v399
      %445 = vst.msk [vmem:[#allocation3 + $0xa8] sm:$0xff] %vm224, %v400
      %446 = vst.msk [vmem:[#allocation3 + $0xb0] sm:$0xff] %vm224, %v401
      %447 = vst.msk [vmem:[#allocation3 + $0xb8] sm:$0xff] %vm224, %v402
      %448 = vst.msk [vmem:[#allocation3 + $0xc0] sm:$0xff] %vm224, %v404
      %449 = vst.msk [vmem:[#allocation3 + $0xc8] sm:$0xff] %vm224, %v405
      %450 = vst.msk [vmem:[#allocation3 + $0xd0] sm:$0xff] %vm224, %v406
      %451 = vst.msk [vmem:[#allocation3 + $0xd8] sm:$0xff] %vm224, %v407
      %452 = vst.msk [vmem:[#allocation3 + $0xe0] sm:$0xff] %vm224, %v409
      %453 = vst.msk [vmem:[#allocation3 + $0xe8] sm:$0xff] %vm224, %v410
      %454 = vst.msk [vmem:[#allocation3 + $0xf0] sm:$0xff] %vm224, %v411
      %455 = vst.msk [vmem:[#allocation3 + $0xf8] sm:$0xff] %vm224, %v412
      %vm496 = vcmask 1046528
      %v497 = vrot.slane %v374, 1
      %v498 = vrot.slane %v375, 1
      %v499 = vsel %vm496, %v497, %v498
      %v500 = vrot.slane %v376, 1
      %v501 = vsel %vm496, %v498, %v500
      %v502 = vrot.slane %v377, 1
      %v503 = vsel %vm496, %v500, %v502
      %v504 = vrot.slane %v378, 1
      %v505 = vsel %vm496, %v502, %v504
      %v506 = vrot.slane %v379, 1
      %v507 = vrot.slane %v380, 1
      %v508 = vsel %vm496, %v506, %v507
      %v509 = vrot.slane %v381, 1
      %v510 = vsel %vm496, %v507, %v509
      %v511 = vrot.slane %v382, 1
      %v512 = vsel %vm496, %v509, %v511
      %v513 = vrot.slane %v383, 1
      %v514 = vsel %vm496, %v511, %v513
      %v515 = vrot.slane %v384, 1
      %v516 = vrot.slane %v385, 1
      %v517 = vsel %vm496, %v515, %v516
      %v518 = vrot.slane %v386, 1
      %v519 = vsel %vm496, %v516, %v518
      %v520 = vrot.slane %v387, 1
      %v521 = vsel %vm496, %v518, %v520
      %v522 = vrot.slane %v388, 1
      %v523 = vsel %vm496, %v520, %v522
      %v524 = vrot.slane %v389, 1
      %v525 = vrot.slane %v390, 1
      %v526 = vsel %vm496, %v524, %v525
      %v527 = vrot.slane %v391, 1
      %v528 = vsel %vm496, %v525, %v527
      %v529 = vrot.slane %v392, 1
      %v530 = vsel %vm496, %v527, %v529
      %v531 = vrot.slane %v393, 1
      %v532 = vsel %vm496, %v529, %v531
      %v533 = vrot.slane %v394, 1
      %v534 = vrot.slane %v395, 1
      %v535 = vsel %vm496, %v533, %v534
      %v536 = vrot.slane %v396, 1
      %v537 = vsel %vm496, %v534, %v536
      %v538 = vrot.slane %v397, 1
      %v539 = vsel %vm496, %v536, %v538
      %v540 = vrot.slane %v398, 1
      %v541 = vsel %vm496, %v538, %v540
      %v542 = vrot.slane %v399, 1
      %v543 = vrot.slane %v400, 1
      %v544 = vsel %vm496, %v542, %v543
      %v545 = vrot.slane %v401, 1
      %v546 = vsel %vm496, %v543, %v545
      %v547 = vrot.slane %v402, 1
      %v548 = vsel %vm496, %v545, %v547
      %v549 = vrot.slane %v403, 1
      %v550 = vsel %vm496, %v547, %v549
      %v551 = vrot.slane %v404, 1
      %v552 = vrot.slane %v405, 1
      %v553 = vsel %vm496, %v551, %v552
      %v554 = vrot.slane %v406, 1
      %v555 = vsel %vm496, %v552, %v554
      %v556 = vrot.slane %v407, 1
      %v557 = vsel %vm496, %v554, %v556
      %v558 = vrot.slane %v408, 1
      %v559 = vsel %vm496, %v556, %v558
      %v560 = vrot.slane %v409, 1
      %v561 = vrot.slane %v410, 1
      %v562 = vsel %vm496, %v560, %v561
      %v563 = vrot.slane %v411, 1
      %v564 = vsel %vm496, %v561, %v563
      %v565 = vrot.slane %v412, 1
      %v566 = vsel %vm496, %v563, %v565
      %v567 = vrot.slane %v413, 1
      %v568 = vsel %vm496, %v565, %v567
      %569 = vrot.lane.b32.xlu0 %v499, 4
      %v570 = vpop.permute.xlu0 %569
      %571 = vrot.lane.b32.xlu0 %v501, 4
      %v572 = vpop.permute.xlu0 %571
      %573 = vrot.lane.b32.xlu0 %v503, 4
      %v574 = vpop.permute.xlu0 %573
      %575 = vrot.lane.b32.xlu0 %v505, 4
      %v576 = vpop.permute.xlu0 %575
      %577 = vrot.lane.b32.xlu0 %v508, 4
      %v578 = vpop.permute.xlu0 %577
      %579 = vrot.lane.b32.xlu0 %v510, 4
      %v580 = vpop.permute.xlu0 %579
      %581 = vrot.lane.b32.xlu0 %v512, 4
      %v582 = vpop.permute.xlu0 %581
      %583 = vrot.lane.b32.xlu0 %v514, 4
      %v584 = vpop.permute.xlu0 %583
      %585 = vrot.lane.b32.xlu0 %v517, 4
      %v586 = vpop.permute.xlu0 %585
      %587 = vrot.lane.b32.xlu0 %v519, 4
      %v588 = vpop.permute.xlu0 %587
      %589 = vrot.lane.b32.xlu0 %v521, 4
      %v590 = vpop.permute.xlu0 %589
      %591 = vrot.lane.b32.xlu0 %v523, 4
      %v592 = vpop.permute.xlu0 %591
      %593 = vrot.lane.b32.xlu0 %v526, 4
      %v594 = vpop.permute.xlu0 %593
      %595 = vrot.lane.b32.xlu0 %v528, 4
      %v596 = vpop.permute.xlu0 %595
      %597 = vrot.lane.b32.xlu0 %v530, 4
      %v598 = vpop.permute.xlu0 %597
      %599 = vrot.lane.b32.xlu0 %v532, 4
      %v600 = vpop.permute.xlu0 %599
      %601 = vrot.lane.b32.xlu0 %v535, 4
      %v602 = vpop.permute.xlu0 %601
      %603 = vrot.lane.b32.xlu0 %v537, 4
      %v604 = vpop.permute.xlu0 %603
      %605 = vrot.lane.b32.xlu0 %v539, 4
      %v606 = vpop.permute.xlu0 %605
      %607 = vrot.lane.b32.xlu0 %v541, 4
      %v608 = vpop.permute.xlu0 %607
      %609 = vrot.lane.b32.xlu0 %v544, 4
      %v610 = vpop.permute.xlu0 %609
      %611 = vrot.lane.b32.xlu0 %v546, 4
      %v612 = vpop.permute.xlu0 %611
      %613 = vrot.lane.b32.xlu0 %v548, 4
      %v614 = vpop.permute.xlu0 %613
      %615 = vrot.lane.b32.xlu0 %v550, 4
      %v616 = vpop.permute.xlu0 %615
      %617 = vrot.lane.b32.xlu0 %v553, 4
      %v618 = vpop.permute.xlu0 %617
      %619 = vrot.lane.b32.xlu0 %v555, 4
      %v620 = vpop.permute.xlu0 %619
      %621 = vrot.lane.b32.xlu0 %v557, 4
      %v622 = vpop.permute.xlu0 %621
      %623 = vrot.lane.b32.xlu0 %v559, 4
      %v624 = vpop.permute.xlu0 %623
      %625 = vrot.lane.b32.xlu0 %v562, 4
      %v626 = vpop.permute.xlu0 %625
      %627 = vrot.lane.b32.xlu0 %v564, 4
      %v628 = vpop.permute.xlu0 %627
      %629 = vrot.lane.b32.xlu0 %v566, 4
      %v630 = vpop.permute.xlu0 %629
      %631 = vrot.lane.b32.xlu0 %v568, 4
      %v632 = vpop.permute.xlu0 %631
      %vm665 = vcmask 64544
      %666 = vst.msk [vmem:[#allocation3] sm:$0xff] %vm665, %v570
      %667 = vst.msk [vmem:[#allocation3 + $0x8] sm:$0xff] %vm665, %v572
      %668 = vst.msk [vmem:[#allocation3 + $0x10] sm:$0xff] %vm665, %v574
      %669 = vst.msk [vmem:[#allocation3 + $0x18] sm:$0xff] %vm665, %v576
      %670 = vst.msk [vmem:[#allocation3 + $0x20] sm:$0xff] %vm665, %v578
      %671 = vst.msk [vmem:[#allocation3 + $0x28] sm:$0xff] %vm665, %v580
      %672 = vst.msk [vmem:[#allocation3 + $0x30] sm:$0xff] %vm665, %v582
      %673 = vst.msk [vmem:[#allocation3 + $0x38] sm:$0xff] %vm665, %v584
      %674 = vst.msk [vmem:[#allocation3 + $0x40] sm:$0xff] %vm665, %v586
      %675 = vst.msk [vmem:[#allocation3 + $0x48] sm:$0xff] %vm665, %v588
      %676 = vst.msk [vmem:[#allocation3 + $0x50] sm:$0xff] %vm665, %v590
      %677 = vst.msk [vmem:[#allocation3 + $0x58] sm:$0xff] %vm665, %v592
      %678 = vst.msk [vmem:[#allocation3 + $0x60] sm:$0xff] %vm665, %v594
      %679 = vst.msk [vmem:[#allocation3 + $0x68] sm:$0xff] %vm665, %v596
      %680 = vst.msk [vmem:[#allocation3 + $0x70] sm:$0xff] %vm665, %v598
      %681 = vst.msk [vmem:[#allocation3 + $0x78] sm:$0xff] %vm665, %v600
      %682 = vst.msk [vmem:[#allocation3 + $0x80] sm:$0xff] %vm665, %v602
      %683 = vst.msk [vmem:[#allocation3 + $0x88] sm:$0xff] %vm665, %v604
      %684 = vst.msk [vmem:[#allocation3 + $0x90] sm:$0xff] %vm665, %v606
      %685 = vst.msk [vmem:[#allocation3 + $0x98] sm:$0xff] %vm665, %v608
      %686 = vst.msk [vmem:[#allocation3 + $0xa0] sm:$0xff] %vm665, %v610
      %687 = vst.msk [vmem:[#allocation3 + $0xa8] sm:$0xff] %vm665, %v612
      %688 = vst.msk [vmem:[#allocation3 + $0xb0] sm:$0xff] %vm665, %v614
      %689 = vst.msk [vmem:[#allocation3 + $0xb8] sm:$0xff] %vm665, %v616
      %690 = vst.msk [vmem:[#allocation3 + $0xc0] sm:$0xff] %vm665, %v618
      %691 = vst.msk [vmem:[#allocation3 + $0xc8] sm:$0xff] %vm665, %v620
      %692 = vst.msk [vmem:[#allocation3 + $0xd0] sm:$0xff] %vm665, %v622
      %693 = vst.msk [vmem:[#allocation3 + $0xd8] sm:$0xff] %vm665, %v624
      %694 = vst.msk [vmem:[#allocation3 + $0xe0] sm:$0xff] %vm665, %v626
      %695 = vst.msk [vmem:[#allocation3 + $0xe8] sm:$0xff] %vm665, %v628
      %696 = vst.msk [vmem:[#allocation3 + $0xf0] sm:$0xff] %vm665, %v630
      %697 = vst.msk [vmem:[#allocation3 + $0xf8] sm:$0xff] %vm665, %v632
      %vm698 = vcmask 1045504
      %v699 = vrot.slane %v374, 2
      %v700 = vrot.slane %v375, 2
      %v701 = vsel %vm698, %v699, %v700
      %v702 = vrot.slane %v376, 2
      %v703 = vsel %vm698, %v700, %v702
      %v704 = vrot.slane %v377, 2
      %v705 = vsel %vm698, %v702, %v704
      %v706 = vrot.slane %v378, 2
      %v707 = vsel %vm698, %v704, %v706
      %v708 = vrot.slane %v379, 2
      %v709 = vrot.slane %v380, 2
      %v710 = vsel %vm698, %v708, %v709
      %v711 = vrot.slane %v381, 2
      %v712 = vsel %vm698, %v709, %v711
      %v713 = vrot.slane %v382, 2
      %v714 = vsel %vm698, %v711, %v713
      %v715 = vrot.slane %v383, 2
      %v716 = vsel %vm698, %v713, %v715
      %v717 = vrot.slane %v384, 2
      %v718 = vrot.slane %v385, 2
      %v719 = vsel %vm698, %v717, %v718
      %v720 = vrot.slane %v386, 2
      %v721 = vsel %vm698, %v718, %v720
      %v722 = vrot.slane %v387, 2
      %v723 = vsel %vm698, %v720, %v722
      %v724 = vrot.slane %v388, 2
      %v725 = vsel %vm698, %v722, %v724
      %v726 = vrot.slane %v389, 2
      %v727 = vrot.slane %v390, 2
      %v728 = vsel %vm698, %v726, %v727
      %v729 = vrot.slane %v391, 2
      %v730 = vsel %vm698, %v727, %v729
      %v731 = vrot.slane %v392, 2
      %v732 = vsel %vm698, %v729, %v731
      %v733 = vrot.slane %v393, 2
      %v734 = vsel %vm698, %v731, %v733
      %v735 = vrot.slane %v394, 2
      %v736 = vrot.slane %v395, 2
      %v737 = vsel %vm698, %v735, %v736
      %v738 = vrot.slane %v396, 2
      %v739 = vsel %vm698, %v736, %v738
      %v740 = vrot.slane %v397, 2
      %v741 = vsel %vm698, %v738, %v740
      %v742 = vrot.slane %v398, 2
      %v743 = vsel %vm698, %v740, %v742
      %v744 = vrot.slane %v399, 2
      %v745 = vrot.slane %v400, 2
      %v746 = vsel %vm698, %v744, %v745
      %v747 = vrot.slane %v401, 2
      %v748 = vsel %vm698, %v745, %v747
      %v749 = vrot.slane %v402, 2
      %v750 = vsel %vm698, %v747, %v749
      %v751 = vrot.slane %v403, 2
      %v752 = vsel %vm698, %v749, %v751
      %v753 = vrot.slane %v404, 2
      %v754 = vrot.slane %v405, 2
      %v755 = vsel %vm698, %v753, %v754
      %v756 = vrot.slane %v406, 2
      %v757 = vsel %vm698, %v754, %v756
      %v758 = vrot.slane %v407, 2
      %v759 = vsel %vm698, %v756, %v758
      %v760 = vrot.slane %v408, 2
      %v761 = vsel %vm698, %v758, %v760
      %v762 = vrot.slane %v409, 2
      %v763 = vrot.slane %v410, 2
      %v764 = vsel %vm698, %v762, %v763
      %v765 = vrot.slane %v411, 2
      %v766 = vsel %vm698, %v763, %v765
      %v767 = vrot.slane %v412, 2
      %v768 = vsel %vm698, %v765, %v767
      %v769 = vrot.slane %v413, 2
      %v770 = vsel %vm698, %v767, %v769
      %771 = vrot.lane.b32.xlu0 %v701, 8
      %v772 = vpop.permute.xlu0 %771
      %773 = vrot.lane.b32.xlu0 %v703, 8
      %v774 = vpop.permute.xlu0 %773
      %775 = vrot.lane.b32.xlu0 %v705, 8
      %v776 = vpop.permute.xlu0 %775
      %777 = vrot.lane.b32.xlu0 %v707, 8
      %v778 = vpop.permute.xlu0 %777
      %779 = vrot.lane.b32.xlu0 %v710, 8
      %v780 = vpop.permute.xlu0 %779
      %781 = vrot.lane.b32.xlu0 %v712, 8
      %v782 = vpop.permute.xlu0 %781
      %783 = vrot.lane.b32.xlu0 %v714, 8
      %v784 = vpop.permute.xlu0 %783
      %785 = vrot.lane.b32.xlu0 %v716, 8
      %v786 = vpop.permute.xlu0 %785
      %787 = vrot.lane.b32.xlu0 %v719, 8
      %v788 = vpop.permute.xlu0 %787
      %789 = vrot.lane.b32.xlu0 %v721, 8
      %v790 = vpop.permute.xlu0 %789
      %791 = vrot.lane.b32.xlu0 %v723, 8
      %v792 = vpop.permute.xlu0 %791
      %793 = vrot.lane.b32.xlu0 %v725, 8
      %v794 = vpop.permute.xlu0 %793
      %795 = vrot.lane.b32.xlu0 %v728, 8
      %v796 = vpop.permute.xlu0 %795
      %797 = vrot.lane.b32.xlu0 %v730, 8
      %v798 = vpop.permute.xlu0 %797
      %799 = vrot.lane.b32.xlu0 %v732, 8
      %v800 = vpop.permute.xlu0 %799
      %801 = vrot.lane.b32.xlu0 %v734, 8
      %v802 = vpop.permute.xlu0 %801
      %803 = vrot.lane.b32.xlu0 %v737, 8
      %v804 = vpop.permute.xlu0 %803
      %805 = vrot.lane.b32.xlu0 %v739, 8
      %v806 = vpop.permute.xlu0 %805
      %807 = vrot.lane.b32.xlu0 %v741, 8
      %v808 = vpop.permute.xlu0 %807
      %809 = vrot.lane.b32.xlu0 %v743, 8
      %v810 = vpop.permute.xlu0 %809
      %811 = vrot.lane.b32.xlu0 %v746, 8
      %v812 = vpop.permute.xlu0 %811
      %813 = vrot.lane.b32.xlu0 %v748, 8
      %v814 = vpop.permute.xlu0 %813
      %815 = vrot.lane.b32.xlu0 %v750, 8
      %v816 = vpop.permute.xlu0 %815
      %817 = vrot.lane.b32.xlu0 %v752, 8
      %v818 = vpop.permute.xlu0 %817
      %819 = vrot.lane.b32.xlu0 %v755, 8
      %v820 = vpop.permute.xlu0 %819
      %821 = vrot.lane.b32.xlu0 %v757, 8
      %v822 = vpop.permute.xlu0 %821
      %823 = vrot.lane.b32.xlu0 %v759, 8
      %v824 = vpop.permute.xlu0 %823
      %825 = vrot.lane.b32.xlu0 %v761, 8
      %v826 = vpop.permute.xlu0 %825
      %827 = vrot.lane.b32.xlu0 %v764, 8
      %v828 = vpop.permute.xlu0 %827
      %829 = vrot.lane.b32.xlu0 %v766, 8
      %v830 = vpop.permute.xlu0 %829
      %831 = vrot.lane.b32.xlu0 %v768, 8
      %v832 = vpop.permute.xlu0 %831
      %833 = vrot.lane.b32.xlu0 %v770, 8
      %v834 = vpop.permute.xlu0 %833
      %vm867 = vcmask 97344
      %868 = vst.msk [vmem:[#allocation3] sm:$0xff] %vm867, %v772
      %869 = vst.msk [vmem:[#allocation3 + $0x8] sm:$0xff] %vm867, %v774
      %870 = vst.msk [vmem:[#allocation3 + $0x10] sm:$0xff] %vm867, %v776
      %871 = vst.msk [vmem:[#allocation3 + $0x18] sm:$0xff] %vm867, %v778
      %872 = vst.msk [vmem:[#allocation3 + $0x20] sm:$0xff] %vm867, %v780
      %873 = vst.msk [vmem:[#allocation3 + $0x28] sm:$0xff] %vm867, %v782
      %874 = vst.msk [vmem:[#allocation3 + $0x30] sm:$0xff] %vm867, %v784
      %875 = vst.msk [vmem:[#allocation3 + $0x38] sm:$0xff] %vm867, %v786
      %876 = vst.msk [vmem:[#allocation3 + $0x40] sm:$0xff] %vm867, %v788
      %877 = vst.msk [vmem:[#allocation3 + $0x48] sm:$0xff] %vm867, %v790
      %878 = vst.msk [vmem:[#allocation3 + $0x50] sm:$0xff] %vm867, %v792
      %879 = vst.msk [vmem:[#allocation3 + $0x58] sm:$0xff] %vm867, %v794
      %880 = vst.msk [vmem:[#allocation3 + $0x60] sm:$0xff] %vm867, %v796
      %881 = vst.msk [vmem:[#allocation3 + $0x68] sm:$0xff] %vm867, %v798
      %882 = vst.msk [vmem:[#allocation3 + $0x70] sm:$0xff] %vm867, %v800
      %883 = vst.msk [vmem:[#allocation3 + $0x78] sm:$0xff] %vm867, %v802
      %884 = vst.msk [vmem:[#allocation3 + $0x80] sm:$0xff] %vm867, %v804
      %885 = vst.msk [vmem:[#allocation3 + $0x88] sm:$0xff] %vm867, %v806
      %886 = vst.msk [vmem:[#allocation3 + $0x90] sm:$0xff] %vm867, %v808
      %887 = vst.msk [vmem:[#allocation3 + $0x98] sm:$0xff] %vm867, %v810
      %888 = vst.msk [vmem:[#allocation3 + $0xa0] sm:$0xff] %vm867, %v812
      %889 = vst.msk [vmem:[#allocation3 + $0xa8] sm:$0xff] %vm867, %v814
      %890 = vst.msk [vmem:[#allocation3 + $0xb0] sm:$0xff] %vm867, %v816
      %891 = vst.msk [vmem:[#allocation3 + $0xb8] sm:$0xff] %vm867, %v818
      %892 = vst.msk [vmem:[#allocation3 + $0xc0] sm:$0xff] %vm867, %v820
      %893 = vst.msk [vmem:[#allocation3 + $0xc8] sm:$0xff] %vm867, %v822
      %894 = vst.msk [vmem:[#allocation3 + $0xd0] sm:$0xff] %vm867, %v824
      %895 = vst.msk [vmem:[#allocation3 + $0xd8] sm:$0xff] %vm867, %v826
      %896 = vst.msk [vmem:[#allocation3 + $0xe0] sm:$0xff] %vm867, %v828
      %897 = vst.msk [vmem:[#allocation3 + $0xe8] sm:$0xff] %vm867, %v830
      %898 = vst.msk [vmem:[#allocation3 + $0xf0] sm:$0xff] %vm867, %v832
      %899 = vst.msk [vmem:[#allocation3 + $0xf8] sm:$0xff] %vm867, %v834
      %904 = vrot.lane.b32.xlu0 %v379, 12
      %v905 = vpop.permute.xlu0 %904
      %906 = vrot.lane.b32.xlu0 %v380, 12
      %v907 = vpop.permute.xlu0 %906
      %908 = vrot.lane.b32.xlu0 %v381, 12
      %v909 = vpop.permute.xlu0 %908
      %910 = vrot.lane.b32.xlu0 %v382, 12
      %v911 = vpop.permute.xlu0 %910
      %912 = vrot.lane.b32.xlu0 %v384, 12
      %v913 = vpop.permute.xlu0 %912
      %914 = vrot.lane.b32.xlu0 %v385, 12
      %v915 = vpop.permute.xlu0 %914
      %916 = vrot.lane.b32.xlu0 %v386, 12
      %v917 = vpop.permute.xlu0 %916
      %918 = vrot.lane.b32.xlu0 %v387, 12
      %v919 = vpop.permute.xlu0 %918
      %920 = vrot.lane.b32.xlu0 %v389, 12
      %v921 = vpop.permute.xlu0 %920
      %922 = vrot.lane.b32.xlu0 %v390, 12
      %v923 = vpop.permute.xlu0 %922
      %924 = vrot.lane.b32.xlu0 %v391, 12
      %v925 = vpop.permute.xlu0 %924
      %926 = vrot.lane.b32.xlu0 %v392, 12
      %v927 = vpop.permute.xlu0 %926
      %928 = vrot.lane.b32.xlu0 %v394, 12
      %v929 = vpop.permute.xlu0 %928
      %930 = vrot.lane.b32.xlu0 %v395, 12
      %v931 = vpop.permute.xlu0 %930
      %932 = vrot.lane.b32.xlu0 %v396, 12
      %v933 = vpop.permute.xlu0 %932
      %934 = vrot.lane.b32.xlu0 %v397, 12
      %v935 = vpop.permute.xlu0 %934
      %936 = vrot.lane.b32.xlu0 %v399, 12
      %v937 = vpop.permute.xlu0 %936
      %938 = vrot.lane.b32.xlu0 %v400, 12
      %v939 = vpop.permute.xlu0 %938
      %940 = vrot.lane.b32.xlu0 %v401, 12
      %v941 = vpop.permute.xlu0 %940
      %942 = vrot.lane.b32.xlu0 %v402, 12
      %v943 = vpop.permute.xlu0 %942
      %944 = vrot.lane.b32.xlu0 %v404, 12
      %v945 = vpop.permute.xlu0 %944
      %946 = vrot.lane.b32.xlu0 %v405, 12
      %v947 = vpop.permute.xlu0 %946
      %948 = vrot.lane.b32.xlu0 %v406, 12
      %v949 = vpop.permute.xlu0 %948
      %950 = vrot.lane.b32.xlu0 %v407, 12
      %v951 = vpop.permute.xlu0 %950
      %952 = vrot.lane.b32.xlu0 %v409, 12
      %v953 = vpop.permute.xlu0 %952
      %954 = vrot.lane.b32.xlu0 %v410, 12
      %v955 = vpop.permute.xlu0 %954
      %956 = vrot.lane.b32.xlu0 %v411, 12
      %v957 = vpop.permute.xlu0 %956
      %958 = vrot.lane.b32.xlu0 %v412, 12
      %v959 = vpop.permute.xlu0 %958
      %960 = vrot.lane.b32.xlu0 %v414, 12
      %v961 = vpop.permute.xlu0 %960
      %962 = vrot.lane.b32.xlu0 %v415, 12
      %v963 = vpop.permute.xlu0 %962
      %964 = vrot.lane.b32.xlu0 %v416, 12
      %v965 = vpop.permute.xlu0 %964
      %966 = vrot.lane.b32.xlu0 %v417, 12
      %v967 = vpop.permute.xlu0 %966
      %vm1000 = vcmask 130144
      %1001 = vst.msk [vmem:[#allocation3] sm:$0xff] %vm1000, %v905
      %1002 = vst.msk [vmem:[#allocation3 + $0x8] sm:$0xff] %vm1000, %v907
      %1003 = vst.msk [vmem:[#allocation3 + $0x10] sm:$0xff] %vm1000, %v909
      %1004 = vst.msk [vmem:[#allocation3 + $0x18] sm:$0xff] %vm1000, %v911
      %1005 = vst.msk [vmem:[#allocation3 + $0x20] sm:$0xff] %vm1000, %v913
      %1006 = vst.msk [vmem:[#allocation3 + $0x28] sm:$0xff] %vm1000, %v915
      %1007 = vst.msk [vmem:[#allocation3 + $0x30] sm:$0xff] %vm1000, %v917
      %1008 = vst.msk [vmem:[#allocation3 + $0x38] sm:$0xff] %vm1000, %v919
      %1009 = vst.msk [vmem:[#allocation3 + $0x40] sm:$0xff] %vm1000, %v921
      %1010 = vst.msk [vmem:[#allocation3 + $0x48] sm:$0xff] %vm1000, %v923
      %1011 = vst.msk [vmem:[#allocation3 + $0x50] sm:$0xff] %vm1000, %v925
      %1012 = vst.msk [vmem:[#allocation3 + $0x58] sm:$0xff] %vm1000, %v927
      %1013 = vst.msk [vmem:[#allocation3 + $0x60] sm:$0xff] %vm1000, %v929
      %1014 = vst.msk [vmem:[#allocation3 + $0x68] sm:$0xff] %vm1000, %v931
      %1015 = vst.msk [vmem:[#allocation3 + $0x70] sm:$0xff] %vm1000, %v933
      %1016 = vst.msk [vmem:[#allocation3 + $0x78] sm:$0xff] %vm1000, %v935
      %1017 = vst.msk [vmem:[#allocation3 + $0x80] sm:$0xff] %vm1000, %v937
      %1018 = vst.msk [vmem:[#allocation3 + $0x88] sm:$0xff] %vm1000, %v939
      %1019 = vst.msk [vmem:[#allocation3 + $0x90] sm:$0xff] %vm1000, %v941
      %1020 = vst.msk [vmem:[#allocation3 + $0x98] sm:$0xff] %vm1000, %v943
      %1021 = vst.msk [vmem:[#allocation3 + $0xa0] sm:$0xff] %vm1000, %v945
      %1022 = vst.msk [vmem:[#allocation3 + $0xa8] sm:$0xff] %vm1000, %v947
      %1023 = vst.msk [vmem:[#allocation3 + $0xb0] sm:$0xff] %vm1000, %v949
      %1024 = vst.msk [vmem:[#allocation3 + $0xb8] sm:$0xff] %vm1000, %v951
      %1025 = vst.msk [vmem:[#allocation3 + $0xc0] sm:$0xff] %vm1000, %v953
      %1026 = vst.msk [vmem:[#allocation3 + $0xc8] sm:$0xff] %vm1000, %v955
      %1027 = vst.msk [vmem:[#allocation3 + $0xd0] sm:$0xff] %vm1000, %v957
      %1028 = vst.msk [vmem:[#allocation3 + $0xd8] sm:$0xff] %vm1000, %v959
      %1029 = vst.msk [vmem:[#allocation3 + $0xe0] sm:$0xff] %vm1000, %v961
      %1030 = vst.msk [vmem:[#allocation3 + $0xe8] sm:$0xff] %vm1000, %v963
      %1031 = vst.msk [vmem:[#allocation3 + $0xf0] sm:$0xff] %vm1000, %v965
      %1032 = vst.msk [vmem:[#allocation3 + $0xf8] sm:$0xff] %vm1000, %v967
      %v1034 = vrot.slane %v414, 1
      %v1035 = vrot.slane %v415, 1
      %v1036 = vsel %vm496, %v1034, %v1035
      %v1037 = vrot.slane %v416, 1
      %v1038 = vsel %vm496, %v1035, %v1037
      %v1039 = vrot.slane %v417, 1
      %v1040 = vsel %vm496, %v1037, %v1039
      %v1041 = vrot.slane %v418, 1
      %v1042 = vsel %vm496, %v1039, %v1041
      %1043 = vrot.lane.b32.xlu0 %v508, 16
      %v1044 = vpop.permute.xlu0 %1043
      %1045 = vrot.lane.b32.xlu0 %v510, 16
      %v1046 = vpop.permute.xlu0 %1045
      %1047 = vrot.lane.b32.xlu0 %v512, 16
      %v1048 = vpop.permute.xlu0 %1047
      %1049 = vrot.lane.b32.xlu0 %v514, 16
      %v1050 = vpop.permute.xlu0 %1049
      %1051 = vrot.lane.b32.xlu0 %v517, 16
      %v1052 = vpop.permute.xlu0 %1051
      %1053 = vrot.lane.b32.xlu0 %v519, 16
      %v1054 = vpop.permute.xlu0 %1053
      %1055 = vrot.lane.b32.xlu0 %v521, 16
      %v1056 = vpop.permute.xlu0 %1055
      %1057 = vrot.lane.b32.xlu0 %v523, 16
      %v1058 = vpop.permute.xlu0 %1057
      %1059 = vrot.lane.b32.xlu0 %v526, 16
      %v1060 = vpop.permute.xlu0 %1059
      %1061 = vrot.lane.b32.xlu0 %v528, 16
      %v1062 = vpop.permute.xlu0 %1061
      %1063 = vrot.lane.b32.xlu0 %v530, 16
      %v1064 = vpop.permute.xlu0 %1063
      %1065 = vrot.lane.b32.xlu0 %v532, 16
      %v1066 = vpop.permute.xlu0 %1065
      %1067 = vrot.lane.b32.xlu0 %v535, 16
      %v1068 = vpop.permute.xlu0 %1067
      %1069 = vrot.lane.b32.xlu0 %v537, 16
      %v1070 = vpop.permute.xlu0 %1069
      %1071 = vrot.lane.b32.xlu0 %v539, 16
      %v1072 = vpop.permute.xlu0 %1071
      %1073 = vrot.lane.b32.xlu0 %v541, 16
      %v1074 = vpop.permute.xlu0 %1073
      %1075 = vrot.lane.b32.xlu0 %v544, 16
      %v1076 = vpop.permute.xlu0 %1075
      %1077 = vrot.lane.b32.xlu0 %v546, 16
      %v1078 = vpop.permute.xlu0 %1077
      %1079 = vrot.lane.b32.xlu0 %v548, 16
      %v1080 = vpop.permute.xlu0 %1079
      %1081 = vrot.lane.b32.xlu0 %v550, 16
      %v1082 = vpop.permute.xlu0 %1081
      %1083 = vrot.lane.b32.xlu0 %v553, 16
      %v1084 = vpop.permute.xlu0 %1083
      %1085 = vrot.lane.b32.xlu0 %v555, 16
      %v1086 = vpop.permute.xlu0 %1085
      %1087 = vrot.lane.b32.xlu0 %v557, 16
      %v1088 = vpop.permute.xlu0 %1087
      %1089 = vrot.lane.b32.xlu0 %v559, 16
      %v1090 = vpop.permute.xlu0 %1089
      %1091 = vrot.lane.b32.xlu0 %v562, 16
      %v1092 = vpop.permute.xlu0 %1091
      %1093 = vrot.lane.b32.xlu0 %v564, 16
      %v1094 = vpop.permute.xlu0 %1093
      %1095 = vrot.lane.b32.xlu0 %v566, 16
      %v1096 = vpop.permute.xlu0 %1095
      %1097 = vrot.lane.b32.xlu0 %v568, 16
      %v1098 = vpop.permute.xlu0 %1097
      %1099 = vrot.lane.b32.xlu0 %v1036, 16
      %v1100 = vpop.permute.xlu0 %1099
      %1101 = vrot.lane.b32.xlu0 %v1038, 16
      %v1102 = vpop.permute.xlu0 %1101
      %1103 = vrot.lane.b32.xlu0 %v1040, 16
      %v1104 = vpop.permute.xlu0 %1103
      %1105 = vrot.lane.b32.xlu0 %v1042, 16
      %v1106 = vpop.permute.xlu0 %1105
      %vm1139 = vcmask 162944
      %1140 = vst.msk [vmem:[#allocation3] sm:$0xff] %vm1139, %v1044
      %1141 = vst.msk [vmem:[#allocation3 + $0x8] sm:$0xff] %vm1139, %v1046
      %1142 = vst.msk [vmem:[#allocation3 + $0x10] sm:$0xff] %vm1139, %v1048
      %1143 = vst.msk [vmem:[#allocation3 + $0x18] sm:$0xff] %vm1139, %v1050
      %1144 = vst.msk [vmem:[#allocation3 + $0x20] sm:$0xff] %vm1139, %v1052
      %1145 = vst.msk [vmem:[#allocation3 + $0x28] sm:$0xff] %vm1139, %v1054
      %1146 = vst.msk [vmem:[#allocation3 + $0x30] sm:$0xff] %vm1139, %v1056
      %1147 = vst.msk [vmem:[#allocation3 + $0x38] sm:$0xff] %vm1139, %v1058
      %1148 = vst.msk [vmem:[#allocation3 + $0x40] sm:$0xff] %vm1139, %v1060
      %1149 = vst.msk [vmem:[#allocation3 + $0x48] sm:$0xff] %vm1139, %v1062
      %1150 = vst.msk [vmem:[#allocation3 + $0x50] sm:$0xff] %vm1139, %v1064
      %1151 = vst.msk [vmem:[#allocation3 + $0x58] sm:$0xff] %vm1139, %v1066
      %1152 = vst.msk [vmem:[#allocation3 + $0x60] sm:$0xff] %vm1139, %v1068
      %1153 = vst.msk [vmem:[#allocation3 + $0x68] sm:$0xff] %vm1139, %v1070
      %1154 = vst.msk [vmem:[#allocation3 + $0x70] sm:$0xff] %vm1139, %v1072
      %1155 = vst.msk [vmem:[#allocation3 + $0x78] sm:$0xff] %vm1139, %v1074
      %1156 = vst.msk [vmem:[#allocation3 + $0x80] sm:$0xff] %vm1139, %v1076
      %1157 = vst.msk [vmem:[#allocation3 + $0x88] sm:$0xff] %vm1139, %v1078
      %1158 = vst.msk [vmem:[#allocation3 + $0x90] sm:$0xff] %vm1139, %v1080
      %1159 = vst.msk [vmem:[#allocation3 + $0x98] sm:$0xff] %vm1139, %v1082
      %1160 = vst.msk [vmem:[#allocation3 + $0xa0] sm:$0xff] %vm1139, %v1084
      %1161 = vst.msk [vmem:[#allocation3 + $0xa8] sm:$0xff] %vm1139, %v1086
      %1162 = vst.msk [vmem:[#allocation3 + $0xb0] sm:$0xff] %vm1139, %v1088
      %1163 = vst.msk [vmem:[#allocation3 + $0xb8] sm:$0xff] %vm1139, %v1090
      %1164 = vst.msk [vmem:[#allocation3 + $0xc0] sm:$0xff] %vm1139, %v1092
      %1165 = vst.msk [vmem:[#allocation3 + $0xc8] sm:$0xff] %vm1139, %v1094
      %1166 = vst.msk [vmem:[#allocation3 + $0xd0] sm:$0xff] %vm1139, %v1096
      %1167 = vst.msk [vmem:[#allocation3 + $0xd8] sm:$0xff] %vm1139, %v1098
      %1168 = vst.msk [vmem:[#allocation3 + $0xe0] sm:$0xff] %vm1139, %v1100
      %1169 = vst.msk [vmem:[#allocation3 + $0xe8] sm:$0xff] %vm1139, %v1102
      %1170 = vst.msk [vmem:[#allocation3 + $0xf0] sm:$0xff] %vm1139, %v1104
      %1171 = vst.msk [vmem:[#allocation3 + $0xf8] sm:$0xff] %vm1139, %v1106
      %v1172 = vrot.slane %v414, 2
      %v1173 = vrot.slane %v415, 2
      %v1174 = vsel %vm698, %v1172, %v1173
      %v1175 = vrot.slane %v416, 2
      %v1176 = vsel %vm698, %v1173, %v1175
      %v1177 = vrot.slane %v417, 2
      %v1178 = vsel %vm698, %v1175, %v1177
      %v1179 = vrot.slane %v418, 2
      %v1180 = vsel %vm698, %v1177, %v1179
      %1181 = vrot.lane.b32.xlu0 %v710, 20
      %v1182 = vpop.permute.xlu0 %1181
      %1183 = vrot.lane.b32.xlu0 %v712, 20
      %v1184 = vpop.permute.xlu0 %1183
      %1185 = vrot.lane.b32.xlu0 %v714, 20
      %v1186 = vpop.permute.xlu0 %1185
      %1187 = vrot.lane.b32.xlu0 %v716, 20
      %v1188 = vpop.permute.xlu0 %1187
      %1189 = vrot.lane.b32.xlu0 %v719, 20
      %v1190 = vpop.permute.xlu0 %1189
      %1191 = vrot.lane.b32.xlu0 %v721, 20
      %v1192 = vpop.permute.xlu0 %1191
      %1193 = vrot.lane.b32.xlu0 %v723, 20
      %v1194 = vpop.permute.xlu0 %1193
      %1195 = vrot.lane.b32.xlu0 %v725, 20
      %v1196 = vpop.permute.xlu0 %1195
      %1197 = vrot.lane.b32.xlu0 %v728, 20
      %v1198 = vpop.permute.xlu0 %1197
      %1199 = vrot.lane.b32.xlu0 %v730, 20
      %v1200 = vpop.permute.xlu0 %1199
      %1201 = vrot.lane.b32.xlu0 %v732, 20
      %v1202 = vpop.permute.xlu0 %1201
      %1203 = vrot.lane.b32.xlu0 %v734, 20
      %v1204 = vpop.permute.xlu0 %1203
      %1205 = vrot.lane.b32.xlu0 %v737, 20
      %v1206 = vpop.permute.xlu0 %1205
      %1207 = vrot.lane.b32.xlu0 %v739, 20
      %v1208 = vpop.permute.xlu0 %1207
      %1209 = vrot.lane.b32.xlu0 %v741, 20
      %v1210 = vpop.permute.xlu0 %1209
      %1211 = vrot.lane.b32.xlu0 %v743, 20
      %v1212 = vpop.permute.xlu0 %1211
      %1213 = vrot.lane.b32.xlu0 %v746, 20
      %v1214 = vpop.permute.xlu0 %1213
      %1215 = vrot.lane.b32.xlu0 %v748, 20
      %v1216 = vpop.permute.xlu0 %1215
      %1217 = vrot.lane.b32.xlu0 %v750, 20
      %v1218 = vpop.permute.xlu0 %1217
      %1219 = vrot.lane.b32.xlu0 %v752, 20
      %v1220 = vpop.permute.xlu0 %1219
      %1221 = vrot.lane.b32.xlu0 %v755, 20
      %v1222 = vpop.permute.xlu0 %1221
      %1223 = vrot.lane.b32.xlu0 %v757, 20
      %v1224 = vpop.permute.xlu0 %1223
      %1225 = vrot.lane.b32.xlu0 %v759, 20
      %v1226 = vpop.permute.xlu0 %1225
      %1227 = vrot.lane.b32.xlu0 %v761, 20
      %v1228 = vpop.permute.xlu0 %1227
      %1229 = vrot.lane.b32.xlu0 %v764, 20
      %v1230 = vpop.permute.xlu0 %1229
      %1231 = vrot.lane.b32.xlu0 %v766, 20
      %v1232 = vpop.permute.xlu0 %1231
      %1233 = vrot.lane.b32.xlu0 %v768, 20
      %v1234 = vpop.permute.xlu0 %1233
      %1235 = vrot.lane.b32.xlu0 %v770, 20
      %v1236 = vpop.permute.xlu0 %1235
      %1237 = vrot.lane.b32.xlu0 %v1174, 20
      %v1238 = vpop.permute.xlu0 %1237
      %1239 = vrot.lane.b32.xlu0 %v1176, 20
      %v1240 = vpop.permute.xlu0 %1239
      %1241 = vrot.lane.b32.xlu0 %v1178, 20
      %v1242 = vpop.permute.xlu0 %1241
      %1243 = vrot.lane.b32.xlu0 %v1180, 20
      %v1244 = vpop.permute.xlu0 %1243
      %vm1277 = vcmask 195744
      %1278 = vst.msk [vmem:[#allocation3] sm:$0xff] %vm1277, %v1182
      %1279 = vst.msk [vmem:[#allocation3 + $0x8] sm:$0xff] %vm1277, %v1184
      %1280 = vst.msk [vmem:[#allocation3 + $0x10] sm:$0xff] %vm1277, %v1186
      %1281 = vst.msk [vmem:[#allocation3 + $0x18] sm:$0xff] %vm1277, %v1188
      %1282 = vst.msk [vmem:[#allocation3 + $0x20] sm:$0xff] %vm1277, %v1190
      %1283 = vst.msk [vmem:[#allocation3 + $0x28] sm:$0xff] %vm1277, %v1192
      %1284 = vst.msk [vmem:[#allocation3 + $0x30] sm:$0xff] %vm1277, %v1194
      %1285 = vst.msk [vmem:[#allocation3 + $0x38] sm:$0xff] %vm1277, %v1196
      %1286 = vst.msk [vmem:[#allocation3 + $0x40] sm:$0xff] %vm1277, %v1198
      %1287 = vst.msk [vmem:[#allocation3 + $0x48] sm:$0xff] %vm1277, %v1200
      %1288 = vst.msk [vmem:[#allocation3 + $0x50] sm:$0xff] %vm1277, %v1202
      %1289 = vst.msk [vmem:[#allocation3 + $0x58] sm:$0xff] %vm1277, %v1204
      %1290 = vst.msk [vmem:[#allocation3 + $0x60] sm:$0xff] %vm1277, %v1206
      %1291 = vst.msk [vmem:[#allocation3 + $0x68] sm:$0xff] %vm1277, %v1208
      %1292 = vst.msk [vmem:[#allocation3 + $0x70] sm:$0xff] %vm1277, %v1210
      %1293 = vst.msk [vmem:[#allocation3 + $0x78] sm:$0xff] %vm1277, %v1212
      %1294 = vst.msk [vmem:[#allocation3 + $0x80] sm:$0xff] %vm1277, %v1214
      %1295 = vst.msk [vmem:[#allocation3 + $0x88] sm:$0xff] %vm1277, %v1216
      %1296 = vst.msk [vmem:[#allocation3 + $0x90] sm:$0xff] %vm1277, %v1218
      %1297 = vst.msk [vmem:[#allocation3 + $0x98] sm:$0xff] %vm1277, %v1220
      %1298 = vst.msk [vmem:[#allocation3 + $0xa0] sm:$0xff] %vm1277, %v1222
      %1299 = vst.msk [vmem:[#allocation3 + $0xa8] sm:$0xff] %vm1277, %v1224
      %1300 = vst.msk [vmem:[#allocation3 + $0xb0] sm:$0xff] %vm1277, %v1226
      %1301 = vst.msk [vmem:[#allocation3 + $0xb8] sm:$0xff] %vm1277, %v1228
      %1302 = vst.msk [vmem:[#allocation3 + $0xc0] sm:$0xff] %vm1277, %v1230
      %1303 = vst.msk [vmem:[#allocation3 + $0xc8] sm:$0xff] %vm1277, %v1232
      %1304 = vst.msk [vmem:[#allocation3 + $0xd0] sm:$0xff] %vm1277, %v1234
      %1305 = vst.msk [vmem:[#allocation3 + $0xd8] sm:$0xff] %vm1277, %v1236
      %1306 = vst.msk [vmem:[#allocation3 + $0xe0] sm:$0xff] %vm1277, %v1238
      %1307 = vst.msk [vmem:[#allocation3 + $0xe8] sm:$0xff] %vm1277, %v1240
      %1308 = vst.msk [vmem:[#allocation3 + $0xf0] sm:$0xff] %vm1277, %v1242
      %1309 = vst.msk [vmem:[#allocation3 + $0xf8] sm:$0xff] %vm1277, %v1244
      %1314 = vrot.lane.b32.xlu0 %v384, 24
      %v1315 = vpop.permute.xlu0 %1314
      %1316 = vrot.lane.b32.xlu0 %v385, 24
      %v1317 = vpop.permute.xlu0 %1316
      %1318 = vrot.lane.b32.xlu0 %v386, 24
      %v1319 = vpop.permute.xlu0 %1318
      %1320 = vrot.lane.b32.xlu0 %v387, 24
      %v1321 = vpop.permute.xlu0 %1320
      %1322 = vrot.lane.b32.xlu0 %v389, 24
      %v1323 = vpop.permute.xlu0 %1322
      %1324 = vrot.lane.b32.xlu0 %v390, 24
      %v1325 = vpop.permute.xlu0 %1324
      %1326 = vrot.lane.b32.xlu0 %v391, 24
      %v1327 = vpop.permute.xlu0 %1326
      %1328 = vrot.lane.b32.xlu0 %v392, 24
      %v1329 = vpop.permute.xlu0 %1328
      %1330 = vrot.lane.b32.xlu0 %v394, 24
      %v1331 = vpop.permute.xlu0 %1330
      %1332 = vrot.lane.b32.xlu0 %v395, 24
      %v1333 = vpop.permute.xlu0 %1332
      %1334 = vrot.lane.b32.xlu0 %v396, 24
      %v1335 = vpop.permute.xlu0 %1334
      %1336 = vrot.lane.b32.xlu0 %v397, 24
      %v1337 = vpop.permute.xlu0 %1336
      %1338 = vrot.lane.b32.xlu0 %v399, 24
      %v1339 = vpop.permute.xlu0 %1338
      %1340 = vrot.lane.b32.xlu0 %v400, 24
      %v1341 = vpop.permute.xlu0 %1340
      %1342 = vrot.lane.b32.xlu0 %v401, 24
      %v1343 = vpop.permute.xlu0 %1342
      %1344 = vrot.lane.b32.xlu0 %v402, 24
      %v1345 = vpop.permute.xlu0 %1344
      %1346 = vrot.lane.b32.xlu0 %v404, 24
      %v1347 = vpop.permute.xlu0 %1346
      %1348 = vrot.lane.b32.xlu0 %v405, 24
      %v1349 = vpop.permute.xlu0 %1348
      %1350 = vrot.lane.b32.xlu0 %v406, 24
      %v1351 = vpop.permute.xlu0 %1350
      %1352 = vrot.lane.b32.xlu0 %v407, 24
      %v1353 = vpop.permute.xlu0 %1352
      %1354 = vrot.lane.b32.xlu0 %v409, 24
      %v1355 = vpop.permute.xlu0 %1354
      %1356 = vrot.lane.b32.xlu0 %v410, 24
      %v1357 = vpop.permute.xlu0 %1356
      %1358 = vrot.lane.b32.xlu0 %v411, 24
      %v1359 = vpop.permute.xlu0 %1358
      %1360 = vrot.lane.b32.xlu0 %v412, 24
      %v1361 = vpop.permute.xlu0 %1360
      %1362 = vrot.lane.b32.xlu0 %v414, 24
      %v1363 = vpop.permute.xlu0 %1362
      %1364 = vrot.lane.b32.xlu0 %v415, 24
      %v1365 = vpop.permute.xlu0 %1364
      %1366 = vrot.lane.b32.xlu0 %v416, 24
      %v1367 = vpop.permute.xlu0 %1366
      %1368 = vrot.lane.b32.xlu0 %v417, 24
      %v1369 = vpop.permute.xlu0 %1368
      %1370 = vrot.lane.b32.xlu0 %v419, 24
      %v1371 = vpop.permute.xlu0 %1370
      %1372 = vrot.lane.b32.xlu0 %v420, 24
      %v1373 = vpop.permute.xlu0 %1372
      %1374 = vrot.lane.b32.xlu0 %v421, 24
      %v1375 = vpop.permute.xlu0 %1374
      %1376 = vrot.lane.b32.xlu0 %v422, 24
      %v1377 = vpop.permute.xlu0 %1376
      %vm1410 = vcmask 228544
      %1411 = vst.msk [vmem:[#allocation3] sm:$0xff] %vm1410, %v1315
      %1412 = vst.msk [vmem:[#allocation3 + $0x8] sm:$0xff] %vm1410, %v1317
      %1413 = vst.msk [vmem:[#allocation3 + $0x10] sm:$0xff] %vm1410, %v1319
      %1414 = vst.msk [vmem:[#allocation3 + $0x18] sm:$0xff] %vm1410, %v1321
      %1415 = vst.msk [vmem:[#allocation3 + $0x20] sm:$0xff] %vm1410, %v1323
      %1416 = vst.msk [vmem:[#allocation3 + $0x28] sm:$0xff] %vm1410, %v1325
      %1417 = vst.msk [vmem:[#allocation3 + $0x30] sm:$0xff] %vm1410, %v1327
      %1418 = vst.msk [vmem:[#allocation3 + $0x38] sm:$0xff] %vm1410, %v1329
      %1419 = vst.msk [vmem:[#allocation3 + $0x40] sm:$0xff] %vm1410, %v1331
      %1420 = vst.msk [vmem:[#allocation3 + $0x48] sm:$0xff] %vm1410, %v1333
      %1421 = vst.msk [vmem:[#allocation3 + $0x50] sm:$0xff] %vm1410, %v1335
      %1422 = vst.msk [vmem:[#allocation3 + $0x58] sm:$0xff] %vm1410, %v1337
      %1423 = vst.msk [vmem:[#allocation3 + $0x60] sm:$0xff] %vm1410, %v1339
      %1424 = vst.msk [vmem:[#allocation3 + $0x68] sm:$0xff] %vm1410, %v1341
      %1425 = vst.msk [vmem:[#allocation3 + $0x70] sm:$0xff] %vm1410, %v1343
      %1426 = vst.msk [vmem:[#allocation3 + $0x78] sm:$0xff] %vm1410, %v1345
      %1427 = vst.msk [vmem:[#allocation3 + $0x80] sm:$0xff] %vm1410, %v1347
      %1428 = vst.msk [vmem:[#allocation3 + $0x88] sm:$0xff] %vm1410, %v1349
      %1429 = vst.msk [vmem:[#allocation3 + $0x90] sm:$0xff] %vm1410, %v1351
      %1430 = vst.msk [vmem:[#allocation3 + $0x98] sm:$0xff] %vm1410, %v1353
      %1431 = vst.msk [vmem:[#allocation3 + $0xa0] sm:$0xff] %vm1410, %v1355
      %1432 = vst.msk [vmem:[#allocation3 + $0xa8] sm:$0xff] %vm1410, %v1357
      %1433 = vst.msk [vmem:[#allocation3 + $0xb0] sm:$0xff] %vm1410, %v1359
      %1434 = vst.msk [vmem:[#allocation3 + $0xb8] sm:$0xff] %vm1410, %v1361
      %1435 = vst.msk [vmem:[#allocation3 + $0xc0] sm:$0xff] %vm1410, %v1363
      %1436 = vst.msk [vmem:[#allocation3 + $0xc8] sm:$0xff] %vm1410, %v1365
      %1437 = vst.msk [vmem:[#allocation3 + $0xd0] sm:$0xff] %vm1410, %v1367
      %1438 = vst.msk [vmem:[#allocation3 + $0xd8] sm:$0xff] %vm1410, %v1369
      %1439 = vst.msk [vmem:[#allocation3 + $0xe0] sm:$0xff] %vm1410, %v1371
      %1440 = vst.msk [vmem:[#allocation3 + $0xe8] sm:$0xff] %vm1410, %v1373
      %1441 = vst.msk [vmem:[#allocation3 + $0xf0] sm:$0xff] %vm1410, %v1375
      %1442 = vst.msk [vmem:[#allocation3 + $0xf8] sm:$0xff] %vm1410, %v1377
      %v1444 = vrot.slane %v419, 1
      %v1445 = vrot.slane %v420, 1
      %v1446 = vsel %vm496, %v1444, %v1445
      %v1447 = vrot.slane %v421, 1
      %v1448 = vsel %vm496, %v1445, %v1447
      %v1449 = vrot.slane %v422, 1
      %v1450 = vsel %vm496, %v1447, %v1449
      %v1451 = vrot.slane %v423, 1
      %v1452 = vsel %vm496, %v1449, %v1451
      %1453 = vrot.lane.b32.xlu0 %v517, 28
      %v1454 = vpop.permute.xlu0 %1453
      %1455 = vrot.lane.b32.xlu0 %v519, 28
      %v1456 = vpop.permute.xlu0 %1455
      %1457 = vrot.lane.b32.xlu0 %v521, 28
      %v1458 = vpop.permute.xlu0 %1457
      %1459 = vrot.lane.b32.xlu0 %v523, 28
      %v1460 = vpop.permute.xlu0 %1459
      %1461 = vrot.lane.b32.xlu0 %v526, 28
      %v1462 = vpop.permute.xlu0 %1461
      %1463 = vrot.lane.b32.xlu0 %v528, 28
      %v1464 = vpop.permute.xlu0 %1463
      %1465 = vrot.lane.b32.xlu0 %v530, 28
      %v1466 = vpop.permute.xlu0 %1465
      %1467 = vrot.lane.b32.xlu0 %v532, 28
      %v1468 = vpop.permute.xlu0 %1467
      %1469 = vrot.lane.b32.xlu0 %v535, 28
      %v1470 = vpop.permute.xlu0 %1469
      %1471 = vrot.lane.b32.xlu0 %v537, 28
      %v1472 = vpop.permute.xlu0 %1471
      %1473 = vrot.lane.b32.xlu0 %v539, 28
      %v1474 = vpop.permute.xlu0 %1473
      %1475 = vrot.lane.b32.xlu0 %v541, 28
      %v1476 = vpop.permute.xlu0 %1475
      %1477 = vrot.lane.b32.xlu0 %v544, 28
      %v1478 = vpop.permute.xlu0 %1477
      %1479 = vrot.lane.b32.xlu0 %v546, 28
      %v1480 = vpop.permute.xlu0 %1479
      %1481 = vrot.lane.b32.xlu0 %v548, 28
      %v1482 = vpop.permute.xlu0 %1481
      %1483 = vrot.lane.b32.xlu0 %v550, 28
      %v1484 = vpop.permute.xlu0 %1483
      %1485 = vrot.lane.b32.xlu0 %v553, 28
      %v1486 = vpop.permute.xlu0 %1485
      %1487 = vrot.lane.b32.xlu0 %v555, 28
      %v1488 = vpop.permute.xlu0 %1487
      %1489 = vrot.lane.b32.xlu0 %v557, 28
      %v1490 = vpop.permute.xlu0 %1489
      %1491 = vrot.lane.b32.xlu0 %v559, 28
      %v1492 = vpop.permute.xlu0 %1491
      %1493 = vrot.lane.b32.xlu0 %v562, 28
      %v1494 = vpop.permute.xlu0 %1493
      %1495 = vrot.lane.b32.xlu0 %v564, 28
      %v1496 = vpop.permute.xlu0 %1495
      %1497 = vrot.lane.b32.xlu0 %v566, 28
      %v1498 = vpop.permute.xlu0 %1497
      %1499 = vrot.lane.b32.xlu0 %v568, 28
      %v1500 = vpop.permute.xlu0 %1499
      %1501 = vrot.lane.b32.xlu0 %v1036, 28
      %v1502 = vpop.permute.xlu0 %1501
      %1503 = vrot.lane.b32.xlu0 %v1038, 28
      %v1504 = vpop.permute.xlu0 %1503
      %1505 = vrot.lane.b32.xlu0 %v1040, 28
      %v1506 = vpop.permute.xlu0 %1505
      %1507 = vrot.lane.b32.xlu0 %v1042, 28
      %v1508 = vpop.permute.xlu0 %1507
      %1509 = vrot.lane.b32.xlu0 %v1446, 28
      %v1510 = vpop.permute.xlu0 %1509
      %1511 = vrot.lane.b32.xlu0 %v1448, 28
      %v1512 = vpop.permute.xlu0 %1511
      %1513 = vrot.lane.b32.xlu0 %v1450, 28
      %v1514 = vpop.permute.xlu0 %1513
      %1515 = vrot.lane.b32.xlu0 %v1452, 28
      %v1516 = vpop.permute.xlu0 %1515
      %vm1549 = vcmask 261344
      %1550 = vst.msk [vmem:[#allocation3] sm:$0xff] %vm1549, %v1454
      %1551 = vst.msk [vmem:[#allocation3 + $0x8] sm:$0xff] %vm1549, %v1456
      %1552 = vst.msk [vmem:[#allocation3 + $0x10] sm:$0xff] %vm1549, %v1458
      %1553 = vst.msk [vmem:[#allocation3 + $0x18] sm:$0xff] %vm1549, %v1460
      %1554 = vst.msk [vmem:[#allocation3 + $0x20] sm:$0xff] %vm1549, %v1462
      %1555 = vst.msk [vmem:[#allocation3 + $0x28] sm:$0xff] %vm1549, %v1464
      %1556 = vst.msk [vmem:[#allocation3 + $0x30] sm:$0xff] %vm1549, %v1466
      %1557 = vst.msk [vmem:[#allocation3 + $0x38] sm:$0xff] %vm1549, %v1468
      %1558 = vst.msk [vmem:[#allocation3 + $0x40] sm:$0xff] %vm1549, %v1470
      %1559 = vst.msk [vmem:[#allocation3 + $0x48] sm:$0xff] %vm1549, %v1472
      %1560 = vst.msk [vmem:[#allocation3 + $0x50] sm:$0xff] %vm1549, %v1474
      %1561 = vst.msk [vmem:[#allocation3 + $0x58] sm:$0xff] %vm1549, %v1476
      %1562 = vst.msk [vmem:[#allocation3 + $0x60] sm:$0xff] %vm1549, %v1478
      %1563 = vst.msk [vmem:[#allocation3 + $0x68] sm:$0xff] %vm1549, %v1480
      %1564 = vst.msk [vmem:[#allocation3 + $0x70] sm:$0xff] %vm1549, %v1482
      %1565 = vst.msk [vmem:[#allocation3 + $0x78] sm:$0xff] %vm1549, %v1484
      %1566 = vst.msk [vmem:[#allocation3 + $0x80] sm:$0xff] %vm1549, %v1486
      %1567 = vst.msk [vmem:[#allocation3 + $0x88] sm:$0xff] %vm1549, %v1488
      %1568 = vst.msk [vmem:[#allocation3 + $0x90] sm:$0xff] %vm1549, %v1490
      %1569 = vst.msk [vmem:[#allocation3 + $0x98] sm:$0xff] %vm1549, %v1492
      %1570 = vst.msk [vmem:[#allocation3 + $0xa0] sm:$0xff] %vm1549, %v1494
      %1571 = vst.msk [vmem:[#allocation3 + $0xa8] sm:$0xff] %vm1549, %v1496
      %1572 = vst.msk [vmem:[#allocation3 + $0xb0] sm:$0xff] %vm1549, %v1498
      %1573 = vst.msk [vmem:[#allocation3 + $0xb8] sm:$0xff] %vm1549, %v1500
      %1574 = vst.msk [vmem:[#allocation3 + $0xc0] sm:$0xff] %vm1549, %v1502
      %1575 = vst.msk [vmem:[#allocation3 + $0xc8] sm:$0xff] %vm1549, %v1504
      %1576 = vst.msk [vmem:[#allocation3 + $0xd0] sm:$0xff] %vm1549, %v1506
      %1577 = vst.msk [vmem:[#allocation3 + $0xd8] sm:$0xff] %vm1549, %v1508
      %1578 = vst.msk [vmem:[#allocation3 + $0xe0] sm:$0xff] %vm1549, %v1510
      %1579 = vst.msk [vmem:[#allocation3 + $0xe8] sm:$0xff] %vm1549, %v1512
      %1580 = vst.msk [vmem:[#allocation3 + $0xf0] sm:$0xff] %vm1549, %v1514
      %1581 = vst.msk [vmem:[#allocation3 + $0xf8] sm:$0xff] %vm1549, %v1516
      %v1582 = vrot.slane %v419, 2
      %v1583 = vrot.slane %v420, 2
      %v1584 = vsel %vm698, %v1582, %v1583
      %v1585 = vrot.slane %v421, 2
      %v1586 = vsel %vm698, %v1583, %v1585
      %v1587 = vrot.slane %v422, 2
      %v1588 = vsel %vm698, %v1585, %v1587
      %v1589 = vrot.slane %v423, 2
      %v1590 = vsel %vm698, %v1587, %v1589
      %1591 = vrot.lane.b32.xlu0 %v719, 32
      %v1592 = vpop.permute.xlu0 %1591
      %1593 = vrot.lane.b32.xlu0 %v721, 32
      %v1594 = vpop.permute.xlu0 %1593
      %1595 = vrot.lane.b32.xlu0 %v723, 32
      %v1596 = vpop.permute.xlu0 %1595
      %1597 = vrot.lane.b32.xlu0 %v725, 32
      %v1598 = vpop.permute.xlu0 %1597
      %1599 = vrot.lane.b32.xlu0 %v728, 32
      %v1600 = vpop.permute.xlu0 %1599
      %1601 = vrot.lane.b32.xlu0 %v730, 32
      %v1602 = vpop.permute.xlu0 %1601
      %1603 = vrot.lane.b32.xlu0 %v732, 32
      %v1604 = vpop.permute.xlu0 %1603
      %1605 = vrot.lane.b32.xlu0 %v734, 32
      %v1606 = vpop.permute.xlu0 %1605
      %1607 = vrot.lane.b32.xlu0 %v737, 32
      %v1608 = vpop.permute.xlu0 %1607
      %1609 = vrot.lane.b32.xlu0 %v739, 32
      %v1610 = vpop.permute.xlu0 %1609
      %1611 = vrot.lane.b32.xlu0 %v741, 32
      %v1612 = vpop.permute.xlu0 %1611
      %1613 = vrot.lane.b32.xlu0 %v743, 32
      %v1614 = vpop.permute.xlu0 %1613
      %1615 = vrot.lane.b32.xlu0 %v746, 32
      %v1616 = vpop.permute.xlu0 %1615
      %1617 = vrot.lane.b32.xlu0 %v748, 32
      %v1618 = vpop.permute.xlu0 %1617
      %1619 = vrot.lane.b32.xlu0 %v750, 32
      %v1620 = vpop.permute.xlu0 %1619
      %1621 = vrot.lane.b32.xlu0 %v752, 32
      %v1622 = vpop.permute.xlu0 %1621
      %1623 = vrot.lane.b32.xlu0 %v755, 32
      %v1624 = vpop.permute.xlu0 %1623
      %1625 = vrot.lane.b32.xlu0 %v757, 32
      %v1626 = vpop.permute.xlu0 %1625
      %1627 = vrot.lane.b32.xlu0 %v759, 32
      %v1628 = vpop.permute.xlu0 %1627
      %1629 = vrot.lane.b32.xlu0 %v761, 32
      %v1630 = vpop.permute.xlu0 %1629
      %1631 = vrot.lane.b32.xlu0 %v764, 32
      %v1632 = vpop.permute.xlu0 %1631
      %1633 = vrot.lane.b32.xlu0 %v766, 32
      %v1634 = vpop.permute.xlu0 %1633
      %1635 = vrot.lane.b32.xlu0 %v768, 32
      %v1636 = vpop.permute.xlu0 %1635
      %1637 = vrot.lane.b32.xlu0 %v770, 32
      %v1638 = vpop.permute.xlu0 %1637
      %1639 = vrot.lane.b32.xlu0 %v1174, 32
      %v1640 = vpop.permute.xlu0 %1639
      %1641 = vrot.lane.b32.xlu0 %v1176, 32
      %v1642 = vpop.permute.xlu0 %1641
      %1643 = vrot.lane.b32.xlu0 %v1178, 32
      %v1644 = vpop.permute.xlu0 %1643
      %1645 = vrot.lane.b32.xlu0 %v1180, 32
      %v1646 = vpop.permute.xlu0 %1645
      %1647 = vrot.lane.b32.xlu0 %v1584, 32
      %v1648 = vpop.permute.xlu0 %1647
      %1649 = vrot.lane.b32.xlu0 %v1586, 32
      %v1650 = vpop.permute.xlu0 %1649
      %1651 = vrot.lane.b32.xlu0 %v1588, 32
      %v1652 = vpop.permute.xlu0 %1651
      %1653 = vrot.lane.b32.xlu0 %v1590, 32
      %v1654 = vpop.permute.xlu0 %1653
      %vm1687 = vcmask 294144
      %1688 = vst.msk [vmem:[#allocation3] sm:$0xff] %vm1687, %v1592
      %1689 = vst.msk [vmem:[#allocation3 + $0x8] sm:$0xff] %vm1687, %v1594
      %1690 = vst.msk [vmem:[#allocation3 + $0x10] sm:$0xff] %vm1687, %v1596
      %1691 = vst.msk [vmem:[#allocation3 + $0x18] sm:$0xff] %vm1687, %v1598
      %1692 = vst.msk [vmem:[#allocation3 + $0x20] sm:$0xff] %vm1687, %v1600
      %1693 = vst.msk [vmem:[#allocation3 + $0x28] sm:$0xff] %vm1687, %v1602
      %1694 = vst.msk [vmem:[#allocation3 + $0x30] sm:$0xff] %vm1687, %v1604
      %1695 = vst.msk [vmem:[#allocation3 + $0x38] sm:$0xff] %vm1687, %v1606
      %1696 = vst.msk [vmem:[#allocation3 + $0x40] sm:$0xff] %vm1687, %v1608
      %1697 = vst.msk [vmem:[#allocation3 + $0x48] sm:$0xff] %vm1687, %v1610
      %1698 = vst.msk [vmem:[#allocation3 + $0x50] sm:$0xff] %vm1687, %v1612
      %1699 = vst.msk [vmem:[#allocation3 + $0x58] sm:$0xff] %vm1687, %v1614
      %1700 = vst.msk [vmem:[#allocation3 + $0x60] sm:$0xff] %vm1687, %v1616
      %1701 = vst.msk [vmem:[#allocation3 + $0x68] sm:$0xff] %vm1687, %v1618
      %1702 = vst.msk [vmem:[#allocation3 + $0x70] sm:$0xff] %vm1687, %v1620
      %1703 = vst.msk [vmem:[#allocation3 + $0x78] sm:$0xff] %vm1687, %v1622
      %1704 = vst.msk [vmem:[#allocation3 + $0x80] sm:$0xff] %vm1687, %v1624
      %1705 = vst.msk [vmem:[#allocation3 + $0x88] sm:$0xff] %vm1687, %v1626
      %1706 = vst.msk [vmem:[#allocation3 + $0x90] sm:$0xff] %vm1687, %v1628
      %1707 = vst.msk [vmem:[#allocation3 + $0x98] sm:$0xff] %vm1687, %v1630
      %1708 = vst.msk [vmem:[#allocation3 + $0xa0] sm:$0xff] %vm1687, %v1632
      %1709 = vst.msk [vmem:[#allocation3 + $0xa8] sm:$0xff] %vm1687, %v1634
      %1710 = vst.msk [vmem:[#allocation3 + $0xb0] sm:$0xff] %vm1687, %v1636
      %1711 = vst.msk [vmem:[#allocation3 + $0xb8] sm:$0xff] %vm1687, %v1638
      %1712 = vst.msk [vmem:[#allocation3 + $0xc0] sm:$0xff] %vm1687, %v1640
      %1713 = vst.msk [vmem:[#allocation3 + $0xc8] sm:$0xff] %vm1687, %v1642
      %1714 = vst.msk [vmem:[#allocation3 + $0xd0] sm:$0xff] %vm1687, %v1644
      %1715 = vst.msk [vmem:[#allocation3 + $0xd8] sm:$0xff] %vm1687, %v1646
      %1716 = vst.msk [vmem:[#allocation3 + $0xe0] sm:$0xff] %vm1687, %v1648
      %1717 = vst.msk [vmem:[#allocation3 + $0xe8] sm:$0xff] %vm1687, %v1650
      %1718 = vst.msk [vmem:[#allocation3 + $0xf0] sm:$0xff] %vm1687, %v1652
      %1719 = vst.msk [vmem:[#allocation3 + $0xf8] sm:$0xff] %vm1687, %v1654
      %v1720 = vld [vmem:[#allocation3] sm:$0xff]
      %v1721 = vld [vmem:[#allocation3 + $0x8] sm:$0xff]
      %v1722 = vld [vmem:[#allocation3 + $0x10] sm:$0xff]
      %v1723 = vld [vmem:[#allocation3 + $0x18] sm:$0xff]
      %v1724 = vld [vmem:[#allocation3 + $0x20] sm:$0xff]
      %v1725 = vld [vmem:[#allocation3 + $0x28] sm:$0xff]
      %v1726 = vld [vmem:[#allocation3 + $0x30] sm:$0xff]
      %v1727 = vld [vmem:[#allocation3 + $0x38] sm:$0xff]
      %v1728 = vld [vmem:[#allocation3 + $0x40] sm:$0xff]
      %v1729 = vld [vmem:[#allocation3 + $0x48] sm:$0xff]
      %v1730 = vld [vmem:[#allocation3 + $0x50] sm:$0xff]
      %v1731 = vld [vmem:[#allocation3 + $0x58] sm:$0xff]
      %v1732 = vld [vmem:[#allocation3 + $0x60] sm:$0xff]
      %v1733 = vld [vmem:[#allocation3 + $0x68] sm:$0xff]
      %v1734 = vld [vmem:[#allocation3 + $0x70] sm:$0xff]
      %v1735 = vld [vmem:[#allocation3 + $0x78] sm:$0xff]
      %v1736 = vld [vmem:[#allocation3 + $0x80] sm:$0xff]
      %v1737 = vld [vmem:[#allocation3 + $0x88] sm:$0xff]
      %v1738 = vld [vmem:[#allocation3 + $0x90] sm:$0xff]
      %v1739 = vld [vmem:[#allocation3 + $0x98] sm:$0xff]
      %v1740 = vld [vmem:[#allocation3 + $0xa0] sm:$0xff]
      %v1741 = vld [vmem:[#allocation3 + $0xa8] sm:$0xff]
      %v1742 = vld [vmem:[#allocation3 + $0xb0] sm:$0xff]
      %v1743 = vld [vmem:[#allocation3 + $0xb8] sm:$0xff]
      %v1744 = vld [vmem:[#allocation3 + $0xc0] sm:$0xff]
      %v1745 = vld [vmem:[#allocation3 + $0xc8] sm:$0xff]
      %v1746 = vld [vmem:[#allocation3 + $0xd0] sm:$0xff]
      %v1747 = vld [vmem:[#allocation3 + $0xd8] sm:$0xff]
      %v1748 = vld [vmem:[#allocation3 + $0xe0] sm:$0xff]
      %v1749 = vld [vmem:[#allocation3 + $0xe8] sm:$0xff]
      %v1750 = vld [vmem:[#allocation3 + $0xf0] sm:$0xff]
      %v1751 = vld [vmem:[#allocation3 + $0xf8] sm:$0xff]
      %v1752 = vld [vmem:[%s1] sm:$0xff]
      %v1753 = vld [vmem:[%s1 + $0x8] sm:$0xff]
      %v1754 = vld [vmem:[%s1 + $0x10] sm:$0xff]
      %v1755 = vld [vmem:[%s1 + $0x18] sm:$0xff]
      %v1756 = vld [vmem:[%s1 + $0x20] sm:$0xf]
      %vm1757 = vcmask 293888
      %v1759 = vsel %vm1757, %v1720, 0
      %v1762 = vsel %vm1757, %v1721, 0
      %v1765 = vsel %vm1757, %v1722, 0
      %v1768 = vsel %vm1757, %v1723, 0
      %v1771 = vsel %vm1757, %v1724, 0
      %v1774 = vsel %vm1757, %v1725, 0
      %v1777 = vsel %vm1757, %v1726, 0
      %v1780 = vsel %vm1757, %v1727, 0
      %v1783 = vsel %vm1757, %v1728, 0
      %v1786 = vsel %vm1757, %v1729, 0
      %v1789 = vsel %vm1757, %v1730, 0
      %v1792 = vsel %vm1757, %v1731, 0
      %v1795 = vsel %vm1757, %v1732, 0
      %v1798 = vsel %vm1757, %v1733, 0
      %v1801 = vsel %vm1757, %v1734, 0
      %v1804 = vsel %vm1757, %v1735, 0
      %v1807 = vsel %vm1757, %v1736, 0
      %v1810 = vsel %vm1757, %v1737, 0
      %v1813 = vsel %vm1757, %v1738, 0
      %v1816 = vsel %vm1757, %v1739, 0
      %v1819 = vsel %vm1757, %v1740, 0
      %v1822 = vsel %vm1757, %v1741, 0
      %v1825 = vsel %vm1757, %v1742, 0
      %v1828 = vsel %vm1757, %v1743, 0
      %v1831 = vsel %vm1757, %v1744, 0
      %v1834 = vsel %vm1757, %v1745, 0
      %v1837 = vsel %vm1757, %v1746, 0
      %v1840 = vsel %vm1757, %v1747, 0
      %v1843 = vsel %vm1757, %v1748, 0
      %v1846 = vsel %vm1757, %v1749, 0
      %v1849 = vsel %vm1757, %v1750, 0
      %v1852 = vsel %vm1757, %v1751, 0
      %vm1854 = vcmask 1043456
      %v1856 = vsel %vm1854, %v1756, 0
      %1858 = vmatprep.subr.mxu0 0.0
      %1859 = vmatpush1.msra.mxu0 %v1752
      %1860 = vmatprep.subr.mxu0 0.0
      %1861 = vmatpush1.msra.mxu0 %v1753
      %1862 = vmatprep.subr.mxu0 0.0
      %1863 = vmatpush1.msra.mxu0 %v1754
      %1864 = vmatprep.subr.mxu0 0.0
      %1865 = vmatpush1.msra.mxu0 %v1755
      %1866 = vmatprep.subr.mxu0 0.0
      %1867 = vmatpush1.msra.mxu0 %v1856
      %1868 = vmatprep.subr.mxu0 0.0
      %1869 = vmatpush1.msra.mxu0 0.0
      %1870 = vmatprep.subr.mxu0 0.0
      %1871 = vmatpush1.msra.mxu0 0.0
      %1872 = vmatprep.subr.mxu0 0.0
      %1873 = vmatpush1.msra.mxu0 0.0
      %1874 = vmatprep.subr.mxu0 0.0
      %1875 = vmatpush1.msra.mxu0 0.0
      %1876 = vmatprep.subr.mxu0 0.0
      %1877 = vmatpush1.msra.mxu0 0.0
      %1878 = vmatprep.subr.mxu0 0.0
      %1879 = vmatpush1.msra.mxu0 0.0
      %1880 = vmatprep.subr.mxu0 0.0
      %1881 = vmatpush1.msra.mxu0 0.0
      %1882 = vmatprep.subr.mxu0 0.0
      %1883 = vmatpush1.msra.mxu0 0.0
      %1884 = vmatprep.subr.mxu0 0.0
      %1885 = vmatpush1.msra.mxu0 0.0
      %1886 = vmatprep.subr.mxu0 0.0
      %1887 = vmatpush1.msra.mxu0 0.0
      %1888 = vmatprep.subr.mxu0 0.0
      %1889 = vmatpush1.msra.mxu0 0.0
      %1890 = vmatprep.subr.mxu0 0.0
      %1891 = vmatpush1.msra.mxu0 0.0
      %1892 = vmatprep.subr.mxu0 0.0
      %1893 = vmatpush1.msra.mxu0 0.0
      %1894 = vmatprep.subr.mxu0 0.0
      %1895 = vmatpush1.msra.mxu0 0.0
      %1896 = vmatprep.subr.mxu0 0.0
      %1897 = vmatpush1.msra.mxu0 0.0
      %1898 = vmatprep.subr.mxu0 0.0
      %1899 = vmatpush1.msra.mxu0 0.0
      %1900 = vmatprep.subr.mxu0 0.0
      %1901 = vmatpush1.msra.mxu0 0.0
      %1902 = vmatprep.subr.mxu0 0.0
      %1903 = vmatpush1.msra.mxu0 0.0
      %1904 = vmatprep.subr.mxu0 0.0
      %1905 = vmatpush1.msra.mxu0 0.0
      %1906 = vmatprep.subr.mxu0 0.0
      %1907 = vmatpush1.msra.mxu0 0.0
      %1908 = vmatprep.subr.mxu0 0.0
      %1909 = vmatpush1.msra.mxu0 0.0
      %1910 = vmatprep.subr.mxu0 0.0
      %1911 = vmatpush1.msra.mxu0 0.0
      %1912 = vmatprep.subr.mxu0 0.0
      %1913 = vmatpush1.msra.mxu0 0.0
      %1914 = vmatprep.subr.mxu0 0.0
      %1915 = vmatpush1.msra.mxu0 0.0
      %1916 = vmatprep.subr.mxu0 0.0
      %1917 = vmatpush1.msra.mxu0 0.0
      %1918 = vmatprep.subr.mxu0 0.0
      %1919 = vmatpush1.msra.mxu0 0.0
      %1920 = vmatprep.subr.mxu0 0.0
      %1921 = vmatpush1.msra.mxu0 0.0
      %1922 = vmatprep.mubr.f32.mxu0 0.0
      %1923 = vmatmul.mubr.f32.gmra.mrb[0].mxu0 %v1759
      %v1924 = vpop.f32.mrb[0].mxu0
      %v1925 = vadd.f32 0.0, %v1924
      %v1926 = vpop.f32.mrb[0].mxu0
      %1927 = vmatprep.mubr.f32.mxu0 0.0
      %1928 = vmatmul.mubr.f32.gmra.mrb[0].mxu0 %v1762
      %v1929 = vpop.f32.mrb[0].mxu0
      %v1930 = vadd.f32 0.0, %v1929
      %v1931 = vpop.f32.mrb[0].mxu0
      %1932 = vmatprep.mubr.f32.mxu0 0.0
      %1933 = vmatmul.mubr.f32.gmra.mrb[0].mxu0 %v1765
      %v1934 = vpop.f32.mrb[0].mxu0
      %v1935 = vadd.f32 0.0, %v1934
      %v1936 = vpop.f32.mrb[0].mxu0
      %1937 = vmatprep.mubr.f32.mxu0 0.0
      %1938 = vmatmul.mubr.f32.gmra.mrb[0].mxu0 %v1768
      %v1939 = vpop.f32.mrb[0].mxu0
      %v1940 = vadd.f32 0.0, %v1939
      %v1941 = vpop.f32.mrb[0].mxu0
      %1942 = vmatprep.mubr.f32.mxu0 0.0
      %1943 = vmatmul.mubr.f32.gmra.mrb[0].mxu0 %v1771
      %v1944 = vpop.f32.mrb[0].mxu0
      %v1945 = vadd.f32 0.0, %v1944
      %v1946 = vpop.f32.mrb[0].mxu0
      %1947 = vmatprep.mubr.f32.mxu0 0.0
      %1948 = vmatmul.mubr.f32.gmra.mrb[0].mxu0 %v1774
      %v1949 = vpop.f32.mrb[0].mxu0
      %v1950 = vadd.f32 0.0, %v1949
      %v1951 = vpop.f32.mrb[0].mxu0
      %1952 = vmatprep.mubr.f32.mxu0 0.0
      %1953 = vmatmul.mubr.f32.gmra.mrb[0].mxu0 %v1777
      %v1954 = vpop.f32.mrb[0].mxu0
      %v1955 = vadd.f32 0.0, %v1954
      %v1956 = vpop.f32.mrb[0].mxu0
      %1957 = vmatprep.mubr.f32.mxu0 0.0
      %1958 = vmatmul.mubr.f32.gmra.mrb[0].mxu0 %v1780
      %v1959 = vpop.f32.mrb[0].mxu0
      %v1960 = vadd.f32 0.0, %v1959
      %v1961 = vpop.f32.mrb[0].mxu0
      %1962 = vmatprep.mubr.f32.mxu0 0.0
      %1963 = vmatmul.mubr.f32.gmra.mrb[0].mxu0 %v1783
      %v1964 = vpop.f32.mrb[0].mxu0
      %v1965 = vadd.f32 0.0, %v1964
      %v1966 = vpop.f32.mrb[0].mxu0
      %1967 = vmatprep.mubr.f32.mxu0 0.0
      %1968 = vmatmul.mubr.f32.gmra.mrb[0].mxu0 %v1786
      %v1969 = vpop.f32.mrb[0].mxu0
      %v1970 = vadd.f32 0.0, %v1969
      %v1971 = vpop.f32.mrb[0].mxu0
      %1972 = vmatprep.mubr.f32.mxu0 0.0
      %1973 = vmatmul.mubr.f32.gmra.mrb[0].mxu0 %v1789
      %v1974 = vpop.f32.mrb[0].mxu0
      %v1975 = vadd.f32 0.0, %v1974
      %v1976 = vpop.f32.mrb[0].mxu0
      %1977 = vmatprep.mubr.f32.mxu0 0.0
      %1978 = vmatmul.mubr.f32.gmra.mrb[0].mxu0 %v1792
      %v1979 = vpop.f32.mrb[0].mxu0
      %v1980 = vadd.f32 0.0, %v1979
      %v1981 = vpop.f32.mrb[0].mxu0
      %1982 = vmatprep.mubr.f32.mxu0 0.0
      %1983 = vmatmul.mubr.f32.gmra.mrb[0].mxu0 %v1795
      %v1984 = vpop.f32.mrb[0].mxu0
      %v1985 = vadd.f32 0.0, %v1984
      %v1986 = vpop.f32.mrb[0].mxu0
      %1987 = vmatprep.mubr.f32.mxu0 0.0
      %1988 = vmatmul.mubr.f32.gmra.mrb[0].mxu0 %v1798
      %v1989 = vpop.f32.mrb[0].mxu0
      %v1990 = vadd.f32 0.0, %v1989
      %v1991 = vpop.f32.mrb[0].mxu0
      %1992 = vmatprep.mubr.f32.mxu0 0.0
      %1993 = vmatmul.mubr.f32.gmra.mrb[0].mxu0 %v1801
      %v1994 = vpop.f32.mrb[0].mxu0
      %v1995 = vadd.f32 0.0, %v1994
      %v1996 = vpop.f32.mrb[0].mxu0
      %1997 = vmatprep.mubr.f32.mxu0 0.0
      %1998 = vmatmul.mubr.f32.gmra.mrb[0].mxu0 %v1804
      %v1999 = vpop.f32.mrb[0].mxu0
      %v2000 = vadd.f32 0.0, %v1999
      %v2001 = vpop.f32.mrb[0].mxu0
      %2002 = vmatprep.mubr.f32.mxu0 0.0
      %2003 = vmatmul.mubr.f32.gmra.mrb[0].mxu0 %v1807
      %v2004 = vpop.f32.mrb[0].mxu0
      %v2005 = vadd.f32 0.0, %v2004
      %v2006 = vpop.f32.mrb[0].mxu0
      %2007 = vmatprep.mubr.f32.mxu0 0.0
      %2008 = vmatmul.mubr.f32.gmra.mrb[0].mxu0 %v1810
      %v2009 = vpop.f32.mrb[0].mxu0
      %v2010 = vadd.f32 0.0, %v2009
      %v2011 = vpop.f32.mrb[0].mxu0
      %2012 = vmatprep.mubr.f32.mxu0 0.0
      %2013 = vmatmul.mubr.f32.gmra.mrb[0].mxu0 %v1813
      %v2014 = vpop.f32.mrb[0].mxu0
      %v2015 = vadd.f32 0.0, %v2014
      %v2016 = vpop.f32.mrb[0].mxu0
      %2017 = vmatprep.mubr.f32.mxu0 0.0
      %2018 = vmatmul.mubr.f32.gmra.mrb[0].mxu0 %v1816
      %v2019 = vpop.f32.mrb[0].mxu0
      %v2020 = vadd.f32 0.0, %v2019
      %v2021 = vpop.f32.mrb[0].mxu0
      %2022 = vmatprep.mubr.f32.mxu0 0.0
      %2023 = vmatmul.mubr.f32.gmra.mrb[0].mxu0 %v1819
      %v2024 = vpop.f32.mrb[0].mxu0
      %v2025 = vadd.f32 0.0, %v2024
      %v2026 = vpop.f32.mrb[0].mxu0
      %2027 = vmatprep.mubr.f32.mxu0 0.0
      %2028 = vmatmul.mubr.f32.gmra.mrb[0].mxu0 %v1822
      %v2029 = vpop.f32.mrb[0].mxu0
      %v2030 = vadd.f32 0.0, %v2029
      %v2031 = vpop.f32.mrb[0].mxu0
      %2032 = vmatprep.mubr.f32.mxu0 0.0
      %2033 = vmatmul.mubr.f32.gmra.mrb[0].mxu0 %v1825
      %v2034 = vpop.f32.mrb[0].mxu0
      %v2035 = vadd.f32 0.0, %v2034
      %v2036 = vpop.f32.mrb[0].mxu0
      %2037 = vmatprep.mubr.f32.mxu0 0.0
      %2038 = vmatmul.mubr.f32.gmra.mrb[0].mxu0 %v1828
      %v2039 = vpop.f32.mrb[0].mxu0
      %v2040 = vadd.f32 0.0, %v2039
      %v2041 = vpop.f32.mrb[0].mxu0
      %2042 = vmatprep.mubr.f32.mxu0 0.0
      %2043 = vmatmul.mubr.f32.gmra.mrb[0].mxu0 %v1831
      %v2044 = vpop.f32.mrb[0].mxu0
      %v2045 = vadd.f32 0.0, %v2044
      %v2046 = vpop.f32.mrb[0].mxu0
      %2047 = vmatprep.mubr.f32.mxu0 0.0
      %2048 = vmatmul.mubr.f32.gmra.mrb[0].mxu0 %v1834
      %v2049 = vpop.f32.mrb[0].mxu0
      %v2050 = vadd.f32 0.0, %v2049
      %v2051 = vpop.f32.mrb[0].mxu0
      %2052 = vmatprep.mubr.f32.mxu0 0.0
      %2053 = vmatmul.mubr.f32.gmra.mrb[0].mxu0 %v1837
      %v2054 = vpop.f32.mrb[0].mxu0
      %v2055 = vadd.f32 0.0, %v2054
      %v2056 = vpop.f32.mrb[0].mxu0
      %2057 = vmatprep.mubr.f32.mxu0 0.0
      %2058 = vmatmul.mubr.f32.gmra.mrb[0].mxu0 %v1840
      %v2059 = vpop.f32.mrb[0].mxu0
      %v2060 = vadd.f32 0.0, %v2059
      %v2061 = vpop.f32.mrb[0].mxu0
      %2062 = vmatprep.mubr.f32.mxu0 0.0
      %2063 = vmatmul.mubr.f32.gmra.mrb[0].mxu0 %v1843
      %v2064 = vpop.f32.mrb[0].mxu0
      %v2065 = vadd.f32 0.0, %v2064
      %v2066 = vpop.f32.mrb[0].mxu0
      %2067 = vmatprep.mubr.f32.mxu0 0.0
      %2068 = vmatmul.mubr.f32.gmra.mrb[0].mxu0 %v1846
      %v2069 = vpop.f32.mrb[0].mxu0
      %v2070 = vadd.f32 0.0, %v2069
      %v2071 = vpop.f32.mrb[0].mxu0
      %2072 = vmatprep.mubr.f32.mxu0 0.0
      %2073 = vmatmul.mubr.f32.gmra.mrb[0].mxu0 %v1849
      %v2074 = vpop.f32.mrb[0].mxu0
      %v2075 = vadd.f32 0.0, %v2074
      %v2076 = vpop.f32.mrb[0].mxu0
      %2077 = vmatprep.mubr.f32.mxu0 0.0
      %2078 = vmatmul.mubr.f32.gmra.mrb[0].mxu0 %v1852
      %v2079 = vpop.f32.mrb[0].mxu0
      %v2080 = vadd.f32 0.0, %v2079
      %v2081 = vpop.f32.mrb[0].mxu0
      %2082 = vdwg.mxu0
      %v2083 = vld [vmem:[%s2] sm:$0x1]
      %v2085 = vlaneseq
      %v2086 = vshrl.u32 %v2085, 7
      %v2087 = vsub.s32 0, %v2086
      %v2088 = vrot.slane %v2083, %v2087
      %v2090 = vmul.f32 %v1925, %v2088
      %v2091 = vmul.f32 %v1930, %v2088
      %v2092 = vmul.f32 %v1935, %v2088
      %v2093 = vmul.f32 %v1940, %v2088
      %v2094 = vmul.f32 %v1945, %v2088
      %v2095 = vmul.f32 %v1950, %v2088
      %v2096 = vmul.f32 %v1955, %v2088
      %v2097 = vmul.f32 %v1960, %v2088
      %v2098 = vmul.f32 %v1965, %v2088
      %v2099 = vmul.f32 %v1970, %v2088
      %v2100 = vmul.f32 %v1975, %v2088
      %v2101 = vmul.f32 %v1980, %v2088
      %v2102 = vmul.f32 %v1985, %v2088
      %v2103 = vmul.f32 %v1990, %v2088
      %v2104 = vmul.f32 %v1995, %v2088
      %v2105 = vmul.f32 %v2000, %v2088
      %v2106 = vmul.f32 %v2005, %v2088
      %v2107 = vmul.f32 %v2010, %v2088
      %v2108 = vmul.f32 %v2015, %v2088
      %v2109 = vmul.f32 %v2020, %v2088
      %v2110 = vmul.f32 %v2025, %v2088
      %v2111 = vmul.f32 %v2030, %v2088
      %v2112 = vmul.f32 %v2035, %v2088
      %v2113 = vmul.f32 %v2040, %v2088
      %v2114 = vmul.f32 %v2045, %v2088
      %v2115 = vmul.f32 %v2050, %v2088
      %v2116 = vmul.f32 %v2055, %v2088
      %v2117 = vmul.f32 %v2060, %v2088
      %v2118 = vmul.f32 %v2065, %v2088
      %v2119 = vmul.f32 %v2070, %v2088
      %v2120 = vmul.f32 %v2075, %v2088
      %v2121 = vmul.f32 %v2080, %v2088
      %v2122 = vld [vmem:[%s3] sm:$0x1]
      %v2124 = vlaneseq
      %v2125 = vshrl.u32 %v2124, 7
      %v2126 = vsub.s32 0, %v2125
      %v2127 = vrot.slane %v2122, %v2126
      %v2129 = vadd.f32 %v2090, %v2127
      %v2130 = vadd.f32 %v2091, %v2127
      %v2131 = vadd.f32 %v2092, %v2127
      %v2132 = vadd.f32 %v2093, %v2127
      %v2133 = vadd.f32 %v2094, %v2127
      %v2134 = vadd.f32 %v2095, %v2127
      %v2135 = vadd.f32 %v2096, %v2127
      %v2136 = vadd.f32 %v2097, %v2127
      %v2137 = vadd.f32 %v2098, %v2127
      %v2138 = vadd.f32 %v2099, %v2127
      %v2139 = vadd.f32 %v2100, %v2127
      %v2140 = vadd.f32 %v2101, %v2127
      %v2141 = vadd.f32 %v2102, %v2127
      %v2142 = vadd.f32 %v2103, %v2127
      %v2143 = vadd.f32 %v2104, %v2127
      %v2144 = vadd.f32 %v2105, %v2127
      %v2145 = vadd.f32 %v2106, %v2127
      %v2146 = vadd.f32 %v2107, %v2127
      %v2147 = vadd.f32 %v2108, %v2127
      %v2148 = vadd.f32 %v2109, %v2127
      %v2149 = vadd.f32 %v2110, %v2127
      %v2150 = vadd.f32 %v2111, %v2127
      %v2151 = vadd.f32 %v2112, %v2127
      %v2152 = vadd.f32 %v2113, %v2127
      %v2153 = vadd.f32 %v2114, %v2127
      %v2154 = vadd.f32 %v2115, %v2127
      %v2155 = vadd.f32 %v2116, %v2127
      %v2156 = vadd.f32 %v2117, %v2127
      %v2157 = vadd.f32 %v2118, %v2127
      %v2158 = vadd.f32 %v2119, %v2127
      %v2159 = vadd.f32 %v2120, %v2127
      %v2160 = vadd.f32 %v2121, %v2127
      %v2161 = vmax.f32 %v2129, 0.0
      %v2162 = vmax.f32 %v2130, 0.0
      %v2163 = vmax.f32 %v2131, 0.0
      %v2164 = vmax.f32 %v2132, 0.0
      %v2165 = vmax.f32 %v2133, 0.0
      %v2166 = vmax.f32 %v2134, 0.0
      %v2167 = vmax.f32 %v2135, 0.0
      %v2168 = vmax.f32 %v2136, 0.0
      %v2169 = vmax.f32 %v2137, 0.0
      %v2170 = vmax.f32 %v2138, 0.0
      %v2171 = vmax.f32 %v2139, 0.0
      %v2172 = vmax.f32 %v2140, 0.0
      %v2173 = vmax.f32 %v2141, 0.0
      %v2174 = vmax.f32 %v2142, 0.0
      %v2175 = vmax.f32 %v2143, 0.0
      %v2176 = vmax.f32 %v2144, 0.0
      %v2177 = vmax.f32 %v2145, 0.0
      %v2178 = vmax.f32 %v2146, 0.0
      %v2179 = vmax.f32 %v2147, 0.0
      %v2180 = vmax.f32 %v2148, 0.0
      %v2181 = vmax.f32 %v2149, 0.0
      %v2182 = vmax.f32 %v2150, 0.0
      %v2183 = vmax.f32 %v2151, 0.0
      %v2184 = vmax.f32 %v2152, 0.0
      %v2185 = vmax.f32 %v2153, 0.0
      %v2186 = vmax.f32 %v2154, 0.0
      %v2187 = vmax.f32 %v2155, 0.0
      %v2188 = vmax.f32 %v2156, 0.0
      %v2189 = vmax.f32 %v2157, 0.0
      %v2190 = vmax.f32 %v2158, 0.0
      %v2191 = vmax.f32 %v2159, 0.0
      %v2192 = vmax.f32 %v2160, 0.0
      %2193 = vst.msk [vmem:[%s221] sm:$0xff] %vm224, %v2161
      %2194 = vst.msk [vmem:[%s221 + $0x8] sm:$0xff] %vm224, %v2162
      %2195 = vst.msk [vmem:[%s221 + $0x10] sm:$0xff] %vm224, %v2163
      %2196 = vst.msk [vmem:[%s221 + $0x18] sm:$0xff] %vm224, %v2164
      %2197 = vst.msk [vmem:[%s221 + $0x20] sm:$0xff] %vm224, %v2165
      %2198 = vst.msk [vmem:[%s221 + $0x28] sm:$0xff] %vm224, %v2166
      %2199 = vst.msk [vmem:[%s221 + $0x30] sm:$0xff] %vm224, %v2167
      %2200 = vst.msk [vmem:[%s221 + $0x38] sm:$0xff] %vm224, %v2168
      %2201 = vst.msk [vmem:[%s221 + $0x40] sm:$0xff] %vm224, %v2169
      %2202 = vst.msk [vmem:[%s221 + $0x48] sm:$0xff] %vm224, %v2170
      %2203 = vst.msk [vmem:[%s221 + $0x50] sm:$0xff] %vm224, %v2171
      %2204 = vst.msk [vmem:[%s221 + $0x58] sm:$0xff] %vm224, %v2172
      %2205 = vst.msk [vmem:[%s221 + $0x60] sm:$0xff] %vm224, %v2173
      %2206 = vst.msk [vmem:[%s221 + $0x68] sm:$0xff] %vm224, %v2174
      %2207 = vst.msk [vmem:[%s221 + $0x70] sm:$0xff] %vm224, %v2175
      %2208 = vst.msk [vmem:[%s221 + $0x78] sm:$0xff] %vm224, %v2176
      %2209 = vst.msk [vmem:[%s221 + $0x80] sm:$0xff] %vm224, %v2177
      %2210 = vst.msk [vmem:[%s221 + $0x88] sm:$0xff] %vm224, %v2178
      %2211 = vst.msk [vmem:[%s221 + $0x90] sm:$0xff] %vm224, %v2179
      %2212 = vst.msk [vmem:[%s221 + $0x98] sm:$0xff] %vm224, %v2180
      %2213 = vst.msk [vmem:[%s221 + $0xa0] sm:$0xff] %vm224, %v2181
      %2214 = vst.msk [vmem:[%s221 + $0xa8] sm:$0xff] %vm224, %v2182
      %2215 = vst.msk [vmem:[%s221 + $0xb0] sm:$0xff] %vm224, %v2183
      %2216 = vst.msk [vmem:[%s221 + $0xb8] sm:$0xff] %vm224, %v2184
      %2217 = vst.msk [vmem:[%s221 + $0xc0] sm:$0xff] %vm224, %v2185
      %2218 = vst.msk [vmem:[%s221 + $0xc8] sm:$0xff] %vm224, %v2186
      %2219 = vst.msk [vmem:[%s221 + $0xd0] sm:$0xff] %vm224, %v2187
      %2220 = vst.msk [vmem:[%s221 + $0xd8] sm:$0xff] %vm224, %v2188
      %2221 = vst.msk [vmem:[%s221 + $0xe0] sm:$0xff] %vm224, %v2189
      %2222 = vst.msk [vmem:[%s221 + $0xe8] sm:$0xff] %vm224, %v2190
      %2223 = vst.msk [vmem:[%s221 + $0xf0] sm:$0xff] %vm224, %v2191
      %2224 = vst.msk [vmem:[%s221 + $0xf8] sm:$0xff] %vm224, %v2192
      %s2225 = smul.u32 8, %s20
      %p2226 = scmp.lt.s32.totalorder %s19, 1
      %s2227 = scalar_select %p2226, %s19, 1
      %p2228 = scmp.lt.s32.totalorder %s2225, 31
      %s2229 = scalar_select %p2228, %s2225, 31
      %s2230 = smul.addr %s2229, 4
      %s2231 = smul.addr %s2227, 128
      %s2232 = sadd.s32 %s2230, %s2231
      %s2233 = smul.addr %s2232, 8
      %s2234 = scalar_lea.vmem %s4, %s2233
      // Predicated region
      $region45: #{upsampling_forward.5} parent=35 // pred_check
        %p2235 = pneg %p136
      $region46: #{upsampling_forward.5} parent=35 // pred_check_branch
        %2237 = sbr.rel (%p2235) target = $region48
      $region47: #{upsampling_forward.5} parent=35 // pred_region
        %s2238 = smul.u32 8, %s20
      $region48: #{upsampling_forward.5} parent=35 // pred_fallthru
        _
    $region36: #{upsampling_forward.5} parent=5 // pred_fallthru
      _
    %p2239 = scmp.le.s32.totalorder 2, %s10
    // Predicated region
    $region49: #{upsampling_forward.5} parent=5 // pred_check
      %p2240 = pneg %p2239
    $region50: #{upsampling_forward.5} parent=5 // pred_check_branch
      %2242 = sbr.rel (%p2240) target = $region52
    $region51: #{upsampling_forward.5} parent=5 // pred_region
      %s2243 = ssub.s32 %s10, 2
      // Predicated region
      $region53: #{upsampling_forward.5} parent=51 // pred_check
        %p2244 = pneg %p142
      $region54: #{upsampling_forward.5} parent=51 // pred_check_branch
        %2246 = sbr.rel (%p2244) target = $region56
      $region55: #{upsampling_forward.5} parent=51 // pred_region
        %s2247 = smul.u32 8, %s22
        %p2248 = scmp.lt.s32.totalorder %s21, 1
        %s2249 = scalar_select %p2248, %s21, 1
        %p2250 = scmp.lt.s32.totalorder %s2247, 31
        %s2251 = scalar_select %p2250, %s2247, 31
        %s2252 = smul.addr %s2251, 4
        %s2253 = smul.addr %s2249, 128
        %s2254 = sadd.s32 %s2252, %s2253
        %s2255 = smul.addr %s2254, 8
        %s2256 = scalar_lea.vmem %s4, %s2255
      $region56: #{upsampling_forward.5} parent=51 // pred_fallthru
        _
    $region52: #{upsampling_forward.5} parent=5 // pred_fallthru
      _
  $region6: #{upsampling_forward.5} parent=0 // loop_footer
    %s14 = sadd.s32 1, %s10
  $region7: #{upsampling_forward.5} parent=0 // loop_footer_branch
    %9 = sbr.rel target = $region3
  $region8: #{upsampling_forward.5} parent=0 // loop_exit
    _

</llo_original>
